<compile_context>
chip_gen: v7x
topology: tpu7x:2x2x1
jax: 0.10.0
libtpu: 0.0.40
codegen_flags: <defaults>
</compile_context>

<pallas_src>
import functools

import jax
import jax.numpy as jnp
from jax.experimental import pallas as pl
from jax.experimental.pallas import tpu as pltpu


# ----------------------------------------------------------------------------
# Fused kernel: bi-LSTM layer 1 -> bi-LSTM layer 2 (last step only) -> FC head
# ----------------------------------------------------------------------------
def _lstm_classifier_kernel(
    gx1_ref,      # (T, B, 8H)  hoisted layer-1 input projection (fwd | bwd), gates [i,f,o,g]
    whh1f_ref,    # (H, 4H)
    whh1b_ref,    # (H, 4H)
    wih2_ref,     # (2H, 8H)
    b2_ref,       # (1, 8H)
    whh2f_ref,    # (H, 4H)
    fc1w_ref,     # (2H, 32)
    fc1b_ref,     # (1, 32)
    fc2w_ref,     # (32, 1)
    fc2b_ref,     # (1, 1)
    out_ref,      # (B, 1)
    hsf_sc,       # VMEM (T, B, H)   layer-1 forward hidden states
    hsb_sc,       # VMEM (T, B, H)   layer-1 backward hidden states
    gx2_sc,       # VMEM (T, B, 8H)  hoisted layer-2 input projection
    *, seq_len, batch, hidden,
):
    T, B, H = seq_len, batch, hidden
    G = 4 * H

    # Load every weight exactly once; all stay VMEM/vreg resident for the
    # whole forward pass.
    whh1_f = whh1f_ref[...]
    whh1_b = whh1b_ref[...]
    wih2 = wih2_ref[...]
    b2 = b2_ref[...]
    whh2_f = whh2f_ref[...]

    def cell(gates, c):
        # Gate layout [i, f, o, g]: one sigmoid over 3H lanes + one tanh over H.
        sig = jax.nn.sigmoid(gates[:, : 3 * H])
        g = jnp.tanh(gates[:, 3 * H:])
        i, f, o = sig[:, :H], sig[:, H:2 * H], sig[:, 2 * H:]
        c = f * c + i * g
        h = o * jnp.tanh(c)
        return h, c

    zeros = jnp.zeros((B, H), jnp.float32)

    # ---- layer 1, forward direction (input projection already hoisted)
    h, c = zeros, zeros
    for t in range(T):
        gates = gx1_ref[t, :, :G] + jnp.dot(
            h, whh1_f, preferred_element_type=jnp.float32)
        h, c = cell(gates, c)
        hsf_sc[t] = h

    # ---- layer 1, backward direction (time reversal via index, no jnp.flip)
    h, c = zeros, zeros
    for s in range(T):
        t = T - 1 - s
        gates = gx1_ref[t, :, G:] + jnp.dot(
            h, whh1_b, preferred_element_type=jnp.float32)
        h, c = cell(gates, c)
        hsb_sc[t] = h

    # ---- layer 2 input projection, hoisted off the recurrent serial chain.
    #      (Inter-layer LSTM dropout is inference-mode identity.)
    for t in range(T):
        x2_t = jnp.concatenate([hsf_sc[t], hsb_sc[t]], axis=-1)  # (B, 2H)
        gx2_sc[t] = jnp.dot(
            x2_t, wih2, preferred_element_type=jnp.float32) + b2

    # ---- layer 2, forward direction: only the final hidden state is consumed
    h, c = zeros, zeros
    for t in range(T):
        gates = gx2_sc[t, :, :G] + jnp.dot(
            h, whh2_f, preferred_element_type=jnp.float32)
        h, c = cell(gates, c)
    h2_f = h

    # ---- layer 2, backward direction: lstm_out[:, -1, :] only needs the FIRST
    #      backward step (t = T-1) from zero state, so h @ W_hh contributes 0.
    h2_b, _ = cell(gx2_sc[T - 1, :, G:], zeros)

    last = jnp.concatenate([h2_f, h2_b], axis=-1)  # (B, 2H), lane-dense

    # ---- FC head: relu(fc1) -> (dropout: inference identity) -> fc2 -> sigmoid
    hdn = jnp.dot(last, fc1w_ref[...], preferred_element_type=jnp.float32) + fc1b_ref[...]
    hdn = jnp.maximum(hdn, 0.0)
    z = jnp.dot(hdn, fc2w_ref[...], preferred_element_type=jnp.float32) + fc2b_ref[...]
    out_ref[...] = jax.nn.sigmoid(z)


def lstm_classifier_forward(kp, x):
    """x: (B, T, input_size), batch_first like PyTorch. Returns (B, 1)."""
    B, T, D = x.shape
    H = kp["whh1_f"].shape[0]

    # Hoisted layer-1 input projection: one (T*B, D) x (D, 8H) matmul for both
    # directions at once; 'tbg' output folds the time-major transpose in, so
    # the activations never take a separate transpose/flip HBM pass.
    gx1 = jnp.einsum("btd,dg->tbg", x, kp["wih1"]) + kp["b1"]  # (T, B, 8H) f32

    args = (
        gx1, kp["whh1_f"], kp["whh1_b"], kp["wih2"], kp["b2"], kp["whh2_f"],
        kp["fc1_w"], kp["fc1_b"], kp["fc2_w"], kp["fc2_b"],
    )

    kernel = functools.partial(
        _lstm_classifier_kernel, seq_len=T, batch=B, hidden=H)

    return pl.pallas_call(
        kernel,
        out_shape=jax.ShapeDtypeStruct((B, 1), jnp.float32),
        grid_spec=pltpu.PrefetchScalarGridSpec(
            num_scalar_prefetch=0,
            grid=(1,),
            in_specs=[
                pl.BlockSpec(a.shape, lambda i, n=a.ndim: (0,) * n)
                for a in args
            ],
            out_specs=pl.BlockSpec((B, 1), lambda i: (0, 0)),
            scratch_shapes=[
                pltpu.VMEM((T, B, H), jnp.float32),      # layer-1 fwd hidden seq
                pltpu.VMEM((T, B, H), jnp.float32),      # layer-1 bwd hidden seq
                pltpu.VMEM((T, B, 8 * H), jnp.float32),  # layer-2 hoisted gates
            ],
        ),
        compiler_params=pltpu.CompilerParams(
            dimension_semantics=("arbitrary",)),
    )(*args)


# ----------------------------------------------------------------------------
# Parameter init (PyTorch layout: per layer/direction, gate order [i, f, g, o])
# ----------------------------------------------------------------------------
def init_params(key, input_size, hidden_size=64, num_layers=2):
    bound = 1.0 / float(hidden_size) ** 0.5
    params = {"lstm": []}
    k = key
    layer_in = input_size
    for _ in range(num_layers):
        dirs = []
        for _d in range(2):  # forward, reverse
            k, k1, k2, k3 = jax.random.split(k, 4)
            w_ih = jax.random.uniform(k1, (layer_in, 4 * hidden_size), jnp.float32, -bound, bound)
            w_hh = jax.random.uniform(k2, (hidden_size, 4 * hidden_size), jnp.float32, -bound, bound)
            # combined b_ih + b_hh
            b = jax.random.uniform(k3, (1, 4 * hidden_size), jnp.float32, -bound, bound)
            dirs.append((w_ih, w_hh, b))
        params["lstm"].append(dirs)
        layer_in = 2 * hidden_size
    k, k1, k2, k3, k4 = jax.random.split(k, 5)
    params["fc1_w"] = jax.random.uniform(k1, (2 * hidden_size, 32), jnp.float32, -bound, bound)
    params["fc1_b"] = jax.random.uniform(k2, (1, 32), jnp.float32, -bound, bound)
    params["fc2_w"] = jax.random.uniform(k3, (32, 1), jnp.float32, -bound, bound)
    params["fc2_b"] = jax.random.uniform(k4, (1, 1), jnp.float32, -bound, bound)
    return params


def _reorder_ifgo_to_ifog(w):
    """Permute the packed-gate (last) dim from PyTorch [i,f,g,o] to [i,f,o,g]."""
    H = w.shape[-1] // 4
    i, f, g, o = w[..., :H], w[..., H:2 * H], w[..., 2 * H:3 * H], w[..., 3 * H:]
    return jnp.concatenate([i, f, o, g], axis=-1)


def prepare_kernel_params(params):
    """One-time repack of PyTorch-layout params into the fused-kernel layout."""
    assert len(params["lstm"]) == 2, "fused kernel is specialized for num_layers=2"
    r = _reorder_ifgo_to_ifog
    (wih1f, whh1f, b1f), (wih1b, whh1b, b1b) = params["lstm"][0]
    (wih2f, whh2f, b2f), (wih2b, _whh2b, b2b) = params["lstm"][1]
    kp = {
        "wih1": jnp.concatenate([r(wih1f), r(wih1b)], axis=-1),   # (D, 8H)
        "b1": jnp.concatenate([r(b1f), r(b1b)], axis=-1),         # (1, 8H)
        "whh1_f": r(whh1f),                                       # (H, 4H)
        "whh1_b": r(whh1b),                                       # (H, 4H)
        "wih2": jnp.concatenate([r(wih2f), r(wih2b)], axis=-1),   # (2H, 8H)
        "b2": jnp.concatenate([r(b2f), r(b2b)], axis=-1),         # (1, 8H)
        "whh2_f": r(whh2f),                                       # (H, 4H)
        # layer-2 backward W_hh is mathematically unused: only the first
        # backward step (zero state) feeds lstm_out[:, -1, :].
        "fc1_w": params["fc1_w"], "fc1_b": params["fc1_b"],
        "fc2_w": params["fc2_w"], "fc2_b": params["fc2_b"],
    }
    return kp


# ----------------------------------------------------------------------------
# Pure-JAX reference (PyTorch gate order / flip-based backward) for correctness
# ----------------------------------------------------------------------------
def _ref_lstm_dir(x_tm, w_ih, w_hh, b, hidden):
    def step(carry, x_t):
        h, c = carry
        gates = x_t @ w_ih + h @ w_hh + b
        i = jax.nn.sigmoid(gates[:, :hidden])
        f = jax.nn.sigmoid(gates[:, hidden:2 * hidden])
        g = jnp.tanh(gates[:, 2 * hidden:3 * hidden])
        o = jax.nn.sigmoid(gates[:, 3 * hidden:])
        c = f * c + i * g
        h = o * jnp.tanh(c)
        return (h, c), h

    B = x_tm.shape[1]
    init = (jnp.zeros((B, hidden), jnp.float32), jnp.zeros((B, hidden), jnp.float32))
    _, hs = jax.lax.scan(step, init, x_tm)
    return hs


def ref_forward(params, x, hidden_size):
    x_tm = jnp.transpose(x, (1, 0, 2))
    h = x_tm
    for dirs in params["lstm"]:
        out_f = _ref_lstm_dir(h, *dirs[0], hidden_size)
        out_b = jnp.flip(_ref_lstm_dir(jnp.flip(h, axis=0), *dirs[1], hidden_size), axis=0)
        h = jnp.concatenate([out_f, out_b], axis=-1)
    last = h[-1]
    z = jnp.maximum(last @ params["fc1_w"] + params["fc1_b"], 0.0)
    return jax.nn.sigmoid(z @ params["fc2_w"] + params["fc2_b"])


if __name__ == "__main__":
    B, T, INPUT_SIZE, HIDDEN = 2, 8, 16, 64

    key = jax.random.PRNGKey(0)
    kx, kp_key = jax.random.split(key)
    x = jax.random.normal(kx, (B, T, INPUT_SIZE), jnp.float32)
    params = init_params(kp_key, INPUT_SIZE, hidden_size=HIDDEN, num_layers=2)
    kparams = prepare_kernel_params(params)

    fwd = jax.jit(lstm_classifier_forward)
    out = jax.block_until_ready(fwd(kparams, x))
    ref = jax.block_until_ready(ref_forward(params, x, HIDDEN))

    assert out.shape == (B, 1), out.shape
    assert bool(jnp.all(jnp.isfinite(out)))
    assert bool(jnp.allclose(out, ref, atol=1e-5, rtol=1e-5)), (out, ref)
    print("KERNEL_OK")
</pallas_src>

<mosaic_0001>
module attributes {stable_mosaic.version = 11 : i64} {
  func.func @_lstm_classifier_kernel(%arg0: i32, %arg1: memref<8x2x512xf32, #tpu.memory_space<vmem>>, %arg2: memref<64x256xf32, #tpu.memory_space<vmem>>, %arg3: memref<64x256xf32, #tpu.memory_space<vmem>>, %arg4: memref<128x512xf32, #tpu.memory_space<vmem>>, %arg5: memref<1x512xf32, #tpu.memory_space<vmem>>, %arg6: memref<64x256xf32, #tpu.memory_space<vmem>>, %arg7: memref<128x32xf32, #tpu.memory_space<vmem>>, %arg8: memref<1x32xf32, #tpu.memory_space<vmem>>, %arg9: memref<32x1xf32, #tpu.memory_space<vmem>>, %arg10: memref<1x1xf32, #tpu.memory_space<vmem>>, %arg11: memref<2x1xf32, #tpu.memory_space<vmem>>, %arg12: memref<8x2x64xf32, #tpu.memory_space<vmem>>, %arg13: memref<8x2x64xf32, #tpu.memory_space<vmem>>, %arg14: memref<8x2x512xf32, #tpu.memory_space<vmem>>) attributes {dimension_semantics = [#tpu.dimension_semantics<arbitrary>], iteration_bounds = array<i64: 1>, scalar_prefetch = 0 : i64, scratch_operands = 3 : i64, tpu.core_type = #tpu.core_type<tc>, window_params = [{pipeline_mode = #tpu.pipeline_mode<synchronous>, transform_indices = @transform_0, window_bounds = array<i64: 8, 2, 512>}, {pipeline_mode = #tpu.pipeline_mode<synchronous>, transform_indices = @transform_1, window_bounds = array<i64: 64, 256>}, {pipeline_mode = #tpu.pipeline_mode<synchronous>, transform_indices = @transform_2, window_bounds = array<i64: 64, 256>}, {pipeline_mode = #tpu.pipeline_mode<synchronous>, transform_indices = @transform_3, window_bounds = array<i64: 128, 512>}, {pipeline_mode = #tpu.pipeline_mode<synchronous>, transform_indices = @transform_4, window_bounds = array<i64: 1, 512>}, {pipeline_mode = #tpu.pipeline_mode<synchronous>, transform_indices = @transform_5, window_bounds = array<i64: 64, 256>}, {pipeline_mode = #tpu.pipeline_mode<synchronous>, transform_indices = @transform_6, window_bounds = array<i64: 128, 32>}, {pipeline_mode = #tpu.pipeline_mode<synchronous>, transform_indices = @transform_7, window_bounds = array<i64: 1, 32>}, {pipeline_mode = #tpu.pipeline_mode<synchronous>, transform_indices = @transform_8, window_bounds = array<i64: 32, 1>}, {pipeline_mode = #tpu.pipeline_mode<synchronous>, transform_indices = @transform_9, window_bounds = array<i64: 1, 1>}, {pipeline_mode = #tpu.pipeline_mode<synchronous>, transform_indices = @transform_10, window_bounds = array<i64: 2, 1>}]} {
    %c0 = arith.constant 0 : index
    %c0_0 = arith.constant 0 : index
    %0 = vector.load %arg2[%c0, %c0_0] : memref<64x256xf32, #tpu.memory_space<vmem>>, vector<64x256xf32>
    %c0_1 = arith.constant 0 : index
    %c0_2 = arith.constant 0 : index
    %1 = vector.load %arg3[%c0_1, %c0_2] : memref<64x256xf32, #tpu.memory_space<vmem>>, vector<64x256xf32>
    %c0_3 = arith.constant 0 : index
    %c0_4 = arith.constant 0 : index
    %2 = vector.load %arg4[%c0_3, %c0_4] : memref<128x512xf32, #tpu.memory_space<vmem>>, vector<128x512xf32>
    %c0_5 = arith.constant 0 : index
    %c0_6 = arith.constant 0 : index
    %3 = vector.load %arg5[%c0_5, %c0_6] : memref<1x512xf32, #tpu.memory_space<vmem>>, vector<1x512xf32>
    %c0_7 = arith.constant 0 : index
    %c0_8 = arith.constant 0 : index
    %4 = vector.load %arg6[%c0_7, %c0_8] : memref<64x256xf32, #tpu.memory_space<vmem>>, vector<64x256xf32>
    %cst = arith.constant 0.000000e+00 : f32
    %5 = vector.broadcast %cst : f32 to vector<2x64xf32>
    %c0_9 = arith.constant 0 : index
    %c0_10 = arith.constant 0 : index
    %c0_11 = arith.constant 0 : index
    %6 = vector.load %arg1[%c0_9, %c0_10, %c0_11] : memref<8x2x512xf32, #tpu.memory_space<vmem>>, vector<1x2x256xf32>
    %7 = vector.shape_cast %6 : vector<1x2x256xf32> to vector<2x256xf32>
    %cst_12 = arith.constant dense<0.000000e+00> : vector<2x256xf32>
    %8 = tpu.matmul %5, %0, %cst_12 {dimension_numbers = #tpu.dot_dimension_numbers<[1], [0], [0], [1], [0, 0, 1, 1], [], []>} : vector<2x64xf32>, vector<64x256xf32>, vector<2x256xf32> -> vector<2x256xf32>
    %9 = arith.addf %7, %8 : vector<2x256xf32>
    %10 = vector.extract_strided_slice %9 {offsets = [0, 0], sizes = [2, 192], strides = [1, 1]} : vector<2x256xf32> to vector<2x192xf32>
    %11 = arith.negf %10 : vector<2x192xf32>
    %12 = math.exp %11 : vector<2x192xf32>
    %cst_13 = arith.constant 1.000000e+00 : f32
    %13 = vector.broadcast %cst_13 : f32 to vector<2x192xf32>
    %14 = arith.addf %13, %12 : vector<2x192xf32>
    %15 = arith.divf %13, %14 : vector<2x192xf32>
    %16 = vector.extract_strided_slice %9 {offsets = [0, 192], sizes = [2, 64], strides = [1, 1]} : vector<2x256xf32> to vector<2x64xf32>
    %17 = math.tanh %16 : vector<2x64xf32>
    %18 = vector.extract_strided_slice %15 {offsets = [0, 0], sizes = [2, 64], strides = [1, 1]} : vector<2x192xf32> to vector<2x64xf32>
    %19 = vector.extract_strided_slice %15 {offsets = [0, 64], sizes = [2, 64], strides = [1, 1]} : vector<2x192xf32> to vector<2x64xf32>
    %20 = vector.extract_strided_slice %15 {offsets = [0, 128], sizes = [2, 64], strides = [1, 1]} : vector<2x192xf32> to vector<2x64xf32>
    %21 = arith.mulf %19, %5 : vector<2x64xf32>
    %22 = arith.mulf %18, %17 : vector<2x64xf32>
    %23 = arith.addf %21, %22 : vector<2x64xf32>
    %24 = math.tanh %23 : vector<2x64xf32>
    %25 = arith.mulf %20, %24 : vector<2x64xf32>
    %c0_14 = arith.constant 0 : index
    %c0_15 = arith.constant 0 : index
    %c0_16 = arith.constant 0 : index
    %26 = vector.load %arg12[%c0_14, %c0_15, %c0_16] : memref<8x2x64xf32, #tpu.memory_space<vmem>>, vector<1x2x64xf32>
    %27 = vector.shape_cast %26 : vector<1x2x64xf32> to vector<2x64xf32>
    %28 = vector.shape_cast %25 : vector<2x64xf32> to vector<1x2x64xf32>
    tpu.vector_store %arg12[%c0_14, %c0_15, %c0_16], %28 {strides = array<i32>} : memref<8x2x64xf32, #tpu.memory_space<vmem>>, vector<1x2x64xf32>,
    %c1 = arith.constant 1 : index
    %c0_17 = arith.constant 0 : index
    %c0_18 = arith.constant 0 : index
    %29 = vector.load %arg1[%c1, %c0_17, %c0_18] : memref<8x2x512xf32, #tpu.memory_space<vmem>>, vector<1x2x256xf32>
    %30 = vector.shape_cast %29 : vector<1x2x256xf32> to vector<2x256xf32>
    %cst_19 = arith.constant dense<0.000000e+00> : vector<2x256xf32>
    %31 = tpu.matmul %25, %0, %cst_19 {dimension_numbers = #tpu.dot_dimension_numbers<[1], [0], [0], [1], [0, 0, 1, 1], [], []>} : vector<2x64xf32>, vector<64x256xf32>, vector<2x256xf32> -> vector<2x256xf32>
    %32 = arith.addf %30, %31 : vector<2x256xf32>
    %33 = vector.extract_strided_slice %32 {offsets = [0, 0], sizes = [2, 192], strides = [1, 1]} : vector<2x256xf32> to vector<2x192xf32>
    %34 = arith.negf %33 : vector<2x192xf32>
    %35 = math.exp %34 : vector<2x192xf32>
    %cst_20 = arith.constant 1.000000e+00 : f32
    %36 = vector.broadcast %cst_20 : f32 to vector<2x192xf32>
    %37 = arith.addf %36, %35 : vector<2x192xf32>
    %38 = arith.divf %36, %37 : vector<2x192xf32>
    %39 = vector.extract_strided_slice %32 {offsets = [0, 192], sizes = [2, 64], strides = [1, 1]} : vector<2x256xf32> to vector<2x64xf32>
    %40 = math.tanh %39 : vector<2x64xf32>
    %41 = vector.extract_strided_slice %38 {offsets = [0, 0], sizes = [2, 64], strides = [1, 1]} : vector<2x192xf32> to vector<2x64xf32>
    %42 = vector.extract_strided_slice %38 {offsets = [0, 64], sizes = [2, 64], strides = [1, 1]} : vector<2x192xf32> to vector<2x64xf32>
    %43 = vector.extract_strided_slice %38 {offsets = [0, 128], sizes = [2, 64], strides = [1, 1]} : vector<2x192xf32> to vector<2x64xf32>
    %44 = arith.mulf %42, %23 : vector<2x64xf32>
    %45 = arith.mulf %41, %40 : vector<2x64xf32>
    %46 = arith.addf %44, %45 : vector<2x64xf32>
    %47 = math.tanh %46 : vector<2x64xf32>
    %48 = arith.mulf %43, %47 : vector<2x64xf32>
    %c1_21 = arith.constant 1 : index
    %c0_22 = arith.constant 0 : index
    %c0_23 = arith.constant 0 : index
    %49 = vector.load %arg12[%c1_21, %c0_22, %c0_23] : memref<8x2x64xf32, #tpu.memory_space<vmem>>, vector<1x2x64xf32>
    %50 = vector.shape_cast %49 : vector<1x2x64xf32> to vector<2x64xf32>
    %51 = vector.shape_cast %48 : vector<2x64xf32> to vector<1x2x64xf32>
    tpu.vector_store %arg12[%c1_21, %c0_22, %c0_23], %51 {strides = array<i32>} : memref<8x2x64xf32, #tpu.memory_space<vmem>>, vector<1x2x64xf32>,
    %c2 = arith.constant 2 : index
    %c0_24 = arith.constant 0 : index
    %c0_25 = arith.constant 0 : index
    %52 = vector.load %arg1[%c2, %c0_24, %c0_25] : memref<8x2x512xf32, #tpu.memory_space<vmem>>, vector<1x2x256xf32>
    %53 = vector.shape_cast %52 : vector<1x2x256xf32> to vector<2x256xf32>
    %cst_26 = arith.constant dense<0.000000e+00> : vector<2x256xf32>
    %54 = tpu.matmul %48, %0, %cst_26 {dimension_numbers = #tpu.dot_dimension_numbers<[1], [0], [0], [1], [0, 0, 1, 1], [], []>} : vector<2x64xf32>, vector<64x256xf32>, vector<2x256xf32> -> vector<2x256xf32>
    %55 = arith.addf %53, %54 : vector<2x256xf32>
    %56 = vector.extract_strided_slice %55 {offsets = [0, 0], sizes = [2, 192], strides = [1, 1]} : vector<2x256xf32> to vector<2x192xf32>
    %57 = arith.negf %56 : vector<2x192xf32>
    %58 = math.exp %57 : vector<2x192xf32>
    %cst_27 = arith.constant 1.000000e+00 : f32
    %59 = vector.broadcast %cst_27 : f32 to vector<2x192xf32>
    %60 = arith.addf %59, %58 : vector<2x192xf32>
    %61 = arith.divf %59, %60 : vector<2x192xf32>
    %62 = vector.extract_strided_slice %55 {offsets = [0, 192], sizes = [2, 64], strides = [1, 1]} : vector<2x256xf32> to vector<2x64xf32>
    %63 = math.tanh %62 : vector<2x64xf32>
    %64 = vector.extract_strided_slice %61 {offsets = [0, 0], sizes = [2, 64], strides = [1, 1]} : vector<2x192xf32> to vector<2x64xf32>
    %65 = vector.extract_strided_slice %61 {offsets = [0, 64], sizes = [2, 64], strides = [1, 1]} : vector<2x192xf32> to vector<2x64xf32>
    %66 = vector.extract_strided_slice %61 {offsets = [0, 128], sizes = [2, 64], strides = [1, 1]} : vector<2x192xf32> to vector<2x64xf32>
    %67 = arith.mulf %65, %46 : vector<2x64xf32>
    %68 = arith.mulf %64, %63 : vector<2x64xf32>
    %69 = arith.addf %67, %68 : vector<2x64xf32>
    %70 = math.tanh %69 : vector<2x64xf32>
    %71 = arith.mulf %66, %70 : vector<2x64xf32>
    %c2_28 = arith.constant 2 : index
    %c0_29 = arith.constant 0 : index
    %c0_30 = arith.constant 0 : index
    %72 = vector.load %arg12[%c2_28, %c0_29, %c0_30] : memref<8x2x64xf32, #tpu.memory_space<vmem>>, vector<1x2x64xf32>
    %73 = vector.shape_cast %72 : vector<1x2x64xf32> to vector<2x64xf32>
    %74 = vector.shape_cast %71 : vector<2x64xf32> to vector<1x2x64xf32>
    tpu.vector_store %arg12[%c2_28, %c0_29, %c0_30], %74 {strides = array<i32>} : memref<8x2x64xf32, #tpu.memory_space<vmem>>, vector<1x2x64xf32>,
    %c3 = arith.constant 3 : index
    %c0_31 = arith.constant 0 : index
    %c0_32 = arith.constant 0 : index
    %75 = vector.load %arg1[%c3, %c0_31, %c0_32] : memref<8x2x512xf32, #tpu.memory_space<vmem>>, vector<1x2x256xf32>
    %76 = vector.shape_cast %75 : vector<1x2x256xf32> to vector<2x256xf32>
    %cst_33 = arith.constant dense<0.000000e+00> : vector<2x256xf32>
    %77 = tpu.matmul %71, %0, %cst_33 {dimension_numbers = #tpu.dot_dimension_numbers<[1], [0], [0], [1], [0, 0, 1, 1], [], []>} : vector<2x64xf32>, vector<64x256xf32>, vector<2x256xf32> -> vector<2x256xf32>
    %78 = arith.addf %76, %77 : vector<2x256xf32>
    %79 = vector.extract_strided_slice %78 {offsets = [0, 0], sizes = [2, 192], strides = [1, 1]} : vector<2x256xf32> to vector<2x192xf32>
    %80 = arith.negf %79 : vector<2x192xf32>
    %81 = math.exp %80 : vector<2x192xf32>
    %cst_34 = arith.constant 1.000000e+00 : f32
    %82 = vector.broadcast %cst_34 : f32 to vector<2x192xf32>
    %83 = arith.addf %82, %81 : vector<2x192xf32>
    %84 = arith.divf %82, %83 : vector<2x192xf32>
    %85 = vector.extract_strided_slice %78 {offsets = [0, 192], sizes = [2, 64], strides = [1, 1]} : vector<2x256xf32> to vector<2x64xf32>
    %86 = math.tanh %85 : vector<2x64xf32>
    %87 = vector.extract_strided_slice %84 {offsets = [0, 0], sizes = [2, 64], strides = [1, 1]} : vector<2x192xf32> to vector<2x64xf32>
    %88 = vector.extract_strided_slice %84 {offsets = [0, 64], sizes = [2, 64], strides = [1, 1]} : vector<2x192xf32> to vector<2x64xf32>
    %89 = vector.extract_strided_slice %84 {offsets = [0, 128], sizes = [2, 64], strides = [1, 1]} : vector<2x192xf32> to vector<2x64xf32>
    %90 = arith.mulf %88, %69 : vector<2x64xf32>
    %91 = arith.mulf %87, %86 : vector<2x64xf32>
    %92 = arith.addf %90, %91 : vector<2x64xf32>
    %93 = math.tanh %92 : vector<2x64xf32>
    %94 = arith.mulf %89, %93 : vector<2x64xf32>
    %c3_35 = arith.constant 3 : index
    %c0_36 = arith.constant 0 : index
    %c0_37 = arith.constant 0 : index
    %95 = vector.load %arg12[%c3_35, %c0_36, %c0_37] : memref<8x2x64xf32, #tpu.memory_space<vmem>>, vector<1x2x64xf32>
    %96 = vector.shape_cast %95 : vector<1x2x64xf32> to vector<2x64xf32>
    %97 = vector.shape_cast %94 : vector<2x64xf32> to vector<1x2x64xf32>
    tpu.vector_store %arg12[%c3_35, %c0_36, %c0_37], %97 {strides = array<i32>} : memref<8x2x64xf32, #tpu.memory_space<vmem>>, vector<1x2x64xf32>,
    %c4 = arith.constant 4 : index
    %c0_38 = arith.constant 0 : index
    %c0_39 = arith.constant 0 : index
    %98 = vector.load %arg1[%c4, %c0_38, %c0_39] : memref<8x2x512xf32, #tpu.memory_space<vmem>>, vector<1x2x256xf32>
    %99 = vector.shape_cast %98 : vector<1x2x256xf32> to vector<2x256xf32>
    %cst_40 = arith.constant dense<0.000000e+00> : vector<2x256xf32>
    %100 = tpu.matmul %94, %0, %cst_40 {dimension_numbers = #tpu.dot_dimension_numbers<[1], [0], [0], [1], [0, 0, 1, 1], [], []>} : vector<2x64xf32>, vector<64x256xf32>, vector<2x256xf32> -> vector<2x256xf32>
    %101 = arith.addf %99, %100 : vector<2x256xf32>
    %102 = vector.extract_strided_slice %101 {offsets = [0, 0], sizes = [2, 192], strides = [1, 1]} : vector<2x256xf32> to vector<2x192xf32>
    %103 = arith.negf %102 : vector<2x192xf32>
    %104 = math.exp %103 : vector<2x192xf32>
    %cst_41 = arith.constant 1.000000e+00 : f32
    %105 = vector.broadcast %cst_41 : f32 to vector<2x192xf32>
    %106 = arith.addf %105, %104 : vector<2x192xf32>
    %107 = arith.divf %105, %106 : vector<2x192xf32>
    %108 = vector.extract_strided_slice %101 {offsets = [0, 192], sizes = [2, 64], strides = [1, 1]} : vector<2x256xf32> to vector<2x64xf32>
    %109 = math.tanh %108 : vector<2x64xf32>
    %110 = vector.extract_strided_slice %107 {offsets = [0, 0], sizes = [2, 64], strides = [1, 1]} : vector<2x192xf32> to vector<2x64xf32>
    %111 = vector.extract_strided_slice %107 {offsets = [0, 64], sizes = [2, 64], strides = [1, 1]} : vector<2x192xf32> to vector<2x64xf32>
    %112 = vector.extract_strided_slice %107 {offsets = [0, 128], sizes = [2, 64], strides = [1, 1]} : vector<2x192xf32> to vector<2x64xf32>
    %113 = arith.mulf %111, %92 : vector<2x64xf32>
    %114 = arith.mulf %110, %109 : vector<2x64xf32>
    %115 = arith.addf %113, %114 : vector<2x64xf32>
    %116 = math.tanh %115 : vector<2x64xf32>
    %117 = arith.mulf %112, %116 : vector<2x64xf32>
    %c4_42 = arith.constant 4 : index
    %c0_43 = arith.constant 0 : index
    %c0_44 = arith.constant 0 : index
    %118 = vector.load %arg12[%c4_42, %c0_43, %c0_44] : memref<8x2x64xf32, #tpu.memory_space<vmem>>, vector<1x2x64xf32>
    %119 = vector.shape_cast %118 : vector<1x2x64xf32> to vector<2x64xf32>
    %120 = vector.shape_cast %117 : vector<2x64xf32> to vector<1x2x64xf32>
    tpu.vector_store %arg12[%c4_42, %c0_43, %c0_44], %120 {strides = array<i32>} : memref<8x2x64xf32, #tpu.memory_space<vmem>>, vector<1x2x64xf32>,
    %c5 = arith.constant 5 : index
    %c0_45 = arith.constant 0 : index
    %c0_46 = arith.constant 0 : index
    %121 = vector.load %arg1[%c5, %c0_45, %c0_46] : memref<8x2x512xf32, #tpu.memory_space<vmem>>, vector<1x2x256xf32>
    %122 = vector.shape_cast %121 : vector<1x2x256xf32> to vector<2x256xf32>
    %cst_47 = arith.constant dense<0.000000e+00> : vector<2x256xf32>
    %123 = tpu.matmul %117, %0, %cst_47 {dimension_numbers = #tpu.dot_dimension_numbers<[1], [0], [0], [1], [0, 0, 1, 1], [], []>} : vector<2x64xf32>, vector<64x256xf32>, vector<2x256xf32> -> vector<2x256xf32>
    %124 = arith.addf %122, %123 : vector<2x256xf32>
    %125 = vector.extract_strided_slice %124 {offsets = [0, 0], sizes = [2, 192], strides = [1, 1]} : vector<2x256xf32> to vector<2x192xf32>
    %126 = arith.negf %125 : vector<2x192xf32>
    %127 = math.exp %126 : vector<2x192xf32>
    %cst_48 = arith.constant 1.000000e+00 : f32
    %128 = vector.broadcast %cst_48 : f32 to vector<2x192xf32>
    %129 = arith.addf %128, %127 : vector<2x192xf32>
    %130 = arith.divf %128, %129 : vector<2x192xf32>
    %131 = vector.extract_strided_slice %124 {offsets = [0, 192], sizes = [2, 64], strides = [1, 1]} : vector<2x256xf32> to vector<2x64xf32>
    %132 = math.tanh %131 : vector<2x64xf32>
    %133 = vector.extract_strided_slice %130 {offsets = [0, 0], sizes = [2, 64], strides = [1, 1]} : vector<2x192xf32> to vector<2x64xf32>
    %134 = vector.extract_strided_slice %130 {offsets = [0, 64], sizes = [2, 64], strides = [1, 1]} : vector<2x192xf32> to vector<2x64xf32>
    %135 = vector.extract_strided_slice %130 {offsets = [0, 128], sizes = [2, 64], strides = [1, 1]} : vector<2x192xf32> to vector<2x64xf32>
    %136 = arith.mulf %134, %115 : vector<2x64xf32>
    %137 = arith.mulf %133, %132 : vector<2x64xf32>
    %138 = arith.addf %136, %137 : vector<2x64xf32>
    %139 = math.tanh %138 : vector<2x64xf32>
    %140 = arith.mulf %135, %139 : vector<2x64xf32>
    %c5_49 = arith.constant 5 : index
    %c0_50 = arith.constant 0 : index
    %c0_51 = arith.constant 0 : index
    %141 = vector.load %arg12[%c5_49, %c0_50, %c0_51] : memref<8x2x64xf32, #tpu.memory_space<vmem>>, vector<1x2x64xf32>
    %142 = vector.shape_cast %141 : vector<1x2x64xf32> to vector<2x64xf32>
    %143 = vector.shape_cast %140 : vector<2x64xf32> to vector<1x2x64xf32>
    tpu.vector_store %arg12[%c5_49, %c0_50, %c0_51], %143 {strides = array<i32>} : memref<8x2x64xf32, #tpu.memory_space<vmem>>, vector<1x2x64xf32>,
    %c6 = arith.constant 6 : index
    %c0_52 = arith.constant 0 : index
    %c0_53 = arith.constant 0 : index
    %144 = vector.load %arg1[%c6, %c0_52, %c0_53] : memref<8x2x512xf32, #tpu.memory_space<vmem>>, vector<1x2x256xf32>
    %145 = vector.shape_cast %144 : vector<1x2x256xf32> to vector<2x256xf32>
    %cst_54 = arith.constant dense<0.000000e+00> : vector<2x256xf32>
    %146 = tpu.matmul %140, %0, %cst_54 {dimension_numbers = #tpu.dot_dimension_numbers<[1], [0], [0], [1], [0, 0, 1, 1], [], []>} : vector<2x64xf32>, vector<64x256xf32>, vector<2x256xf32> -> vector<2x256xf32>
    %147 = arith.addf %145, %146 : vector<2x256xf32>
    %148 = vector.extract_strided_slice %147 {offsets = [0, 0], sizes = [2, 192], strides = [1, 1]} : vector<2x256xf32> to vector<2x192xf32>
    %149 = arith.negf %148 : vector<2x192xf32>
    %150 = math.exp %149 : vector<2x192xf32>
    %cst_55 = arith.constant 1.000000e+00 : f32
    %151 = vector.broadcast %cst_55 : f32 to vector<2x192xf32>
    %152 = arith.addf %151, %150 : vector<2x192xf32>
    %153 = arith.divf %151, %152 : vector<2x192xf32>
    %154 = vector.extract_strided_slice %147 {offsets = [0, 192], sizes = [2, 64], strides = [1, 1]} : vector<2x256xf32> to vector<2x64xf32>
    %155 = math.tanh %154 : vector<2x64xf32>
    %156 = vector.extract_strided_slice %153 {offsets = [0, 0], sizes = [2, 64], strides = [1, 1]} : vector<2x192xf32> to vector<2x64xf32>
    %157 = vector.extract_strided_slice %153 {offsets = [0, 64], sizes = [2, 64], strides = [1, 1]} : vector<2x192xf32> to vector<2x64xf32>
    %158 = vector.extract_strided_slice %153 {offsets = [0, 128], sizes = [2, 64], strides = [1, 1]} : vector<2x192xf32> to vector<2x64xf32>
    %159 = arith.mulf %157, %138 : vector<2x64xf32>
    %160 = arith.mulf %156, %155 : vector<2x64xf32>
    %161 = arith.addf %159, %160 : vector<2x64xf32>
    %162 = math.tanh %161 : vector<2x64xf32>
    %163 = arith.mulf %158, %162 : vector<2x64xf32>
    %c6_56 = arith.constant 6 : index
    %c0_57 = arith.constant 0 : index
    %c0_58 = arith.constant 0 : index
    %164 = vector.load %arg12[%c6_56, %c0_57, %c0_58] : memref<8x2x64xf32, #tpu.memory_space<vmem>>, vector<1x2x64xf32>
    %165 = vector.shape_cast %164 : vector<1x2x64xf32> to vector<2x64xf32>
    %166 = vector.shape_cast %163 : vector<2x64xf32> to vector<1x2x64xf32>
    tpu.vector_store %arg12[%c6_56, %c0_57, %c0_58], %166 {strides = array<i32>} : memref<8x2x64xf32, #tpu.memory_space<vmem>>, vector<1x2x64xf32>,
    %c7 = arith.constant 7 : index
    %c0_59 = arith.constant 0 : index
    %c0_60 = arith.constant 0 : index
    %167 = vector.load %arg1[%c7, %c0_59, %c0_60] : memref<8x2x512xf32, #tpu.memory_space<vmem>>, vector<1x2x256xf32>
    %168 = vector.shape_cast %167 : vector<1x2x256xf32> to vector<2x256xf32>
    %cst_61 = arith.constant dense<0.000000e+00> : vector<2x256xf32>
    %169 = tpu.matmul %163, %0, %cst_61 {dimension_numbers = #tpu.dot_dimension_numbers<[1], [0], [0], [1], [0, 0, 1, 1], [], []>} : vector<2x64xf32>, vector<64x256xf32>, vector<2x256xf32> -> vector<2x256xf32>
    %170 = arith.addf %168, %169 : vector<2x256xf32>
    %171 = vector.extract_strided_slice %170 {offsets = [0, 0], sizes = [2, 192], strides = [1, 1]} : vector<2x256xf32> to vector<2x192xf32>
    %172 = arith.negf %171 : vector<2x192xf32>
    %173 = math.exp %172 : vector<2x192xf32>
    %cst_62 = arith.constant 1.000000e+00 : f32
    %174 = vector.broadcast %cst_62 : f32 to vector<2x192xf32>
    %175 = arith.addf %174, %173 : vector<2x192xf32>
    %176 = arith.divf %174, %175 : vector<2x192xf32>
    %177 = vector.extract_strided_slice %170 {offsets = [0, 192], sizes = [2, 64], strides = [1, 1]} : vector<2x256xf32> to vector<2x64xf32>
    %178 = math.tanh %177 : vector<2x64xf32>
    %179 = vector.extract_strided_slice %176 {offsets = [0, 0], sizes = [2, 64], strides = [1, 1]} : vector<2x192xf32> to vector<2x64xf32>
    %180 = vector.extract_strided_slice %176 {offsets = [0, 64], sizes = [2, 64], strides = [1, 1]} : vector<2x192xf32> to vector<2x64xf32>
    %181 = vector.extract_strided_slice %176 {offsets = [0, 128], sizes = [2, 64], strides = [1, 1]} : vector<2x192xf32> to vector<2x64xf32>
    %182 = arith.mulf %180, %161 : vector<2x64xf32>
    %183 = arith.mulf %179, %178 : vector<2x64xf32>
    %184 = arith.addf %182, %183 : vector<2x64xf32>
    %185 = math.tanh %184 : vector<2x64xf32>
    %186 = arith.mulf %181, %185 : vector<2x64xf32>
    %c7_63 = arith.constant 7 : index
    %c0_64 = arith.constant 0 : index
    %c0_65 = arith.constant 0 : index
    %187 = vector.load %arg12[%c7_63, %c0_64, %c0_65] : memref<8x2x64xf32, #tpu.memory_space<vmem>>, vector<1x2x64xf32>
    %188 = vector.shape_cast %187 : vector<1x2x64xf32> to vector<2x64xf32>
    %189 = vector.shape_cast %186 : vector<2x64xf32> to vector<1x2x64xf32>
    tpu.vector_store %arg12[%c7_63, %c0_64, %c0_65], %189 {strides = array<i32>} : memref<8x2x64xf32, #tpu.memory_space<vmem>>, vector<1x2x64xf32>,
    %c7_66 = arith.constant 7 : index
    %c0_67 = arith.constant 0 : index
    %c256 = arith.constant 256 : index
    %190 = vector.load %arg1[%c7_66, %c0_67, %c256] : memref<8x2x512xf32, #tpu.memory_space<vmem>>, vector<1x2x256xf32>
    %191 = vector.shape_cast %190 : vector<1x2x256xf32> to vector<2x256xf32>
    %cst_68 = arith.constant dense<0.000000e+00> : vector<2x256xf32>
    %192 = tpu.matmul %5, %1, %cst_68 {dimension_numbers = #tpu.dot_dimension_numbers<[1], [0], [0], [1], [0, 0, 1, 1], [], []>} : vector<2x64xf32>, vector<64x256xf32>, vector<2x256xf32> -> vector<2x256xf32>
    %193 = arith.addf %191, %192 : vector<2x256xf32>
    %194 = vector.extract_strided_slice %193 {offsets = [0, 0], sizes = [2, 192], strides = [1, 1]} : vector<2x256xf32> to vector<2x192xf32>
    %195 = arith.negf %194 : vector<2x192xf32>
    %196 = math.exp %195 : vector<2x192xf32>
    %cst_69 = arith.constant 1.000000e+00 : f32
    %197 = vector.broadcast %cst_69 : f32 to vector<2x192xf32>
    %198 = arith.addf %197, %196 : vector<2x192xf32>
    %199 = arith.divf %197, %198 : vector<2x192xf32>
    %200 = vector.extract_strided_slice %193 {offsets = [0, 192], sizes = [2, 64], strides = [1, 1]} : vector<2x256xf32> to vector<2x64xf32>
    %201 = math.tanh %200 : vector<2x64xf32>
    %202 = vector.extract_strided_slice %199 {offsets = [0, 0], sizes = [2, 64], strides = [1, 1]} : vector<2x192xf32> to vector<2x64xf32>
    %203 = vector.extract_strided_slice %199 {offsets = [0, 64], sizes = [2, 64], strides = [1, 1]} : vector<2x192xf32> to vector<2x64xf32>
    %204 = vector.extract_strided_slice %199 {offsets = [0, 128], sizes = [2, 64], strides = [1, 1]} : vector<2x192xf32> to vector<2x64xf32>
    %205 = arith.mulf %203, %5 : vector<2x64xf32>
    %206 = arith.mulf %202, %201 : vector<2x64xf32>
    %207 = arith.addf %205, %206 : vector<2x64xf32>
    %208 = math.tanh %207 : vector<2x64xf32>
    %209 = arith.mulf %204, %208 : vector<2x64xf32>
    %c7_70 = arith.constant 7 : index
    %c0_71 = arith.constant 0 : index
    %c0_72 = arith.constant 0 : index
    %210 = vector.load %arg13[%c7_70, %c0_71, %c0_72] : memref<8x2x64xf32, #tpu.memory_space<vmem>>, vector<1x2x64xf32>
    %211 = vector.shape_cast %210 : vector<1x2x64xf32> to vector<2x64xf32>
    %212 = vector.shape_cast %209 : vector<2x64xf32> to vector<1x2x64xf32>
    tpu.vector_store %arg13[%c7_70, %c0_71, %c0_72], %212 {strides = array<i32>} : memref<8x2x64xf32, #tpu.memory_space<vmem>>, vector<1x2x64xf32>,
    %c6_73 = arith.constant 6 : index
    %c0_74 = arith.constant 0 : index
    %c256_75 = arith.constant 256 : index
    %213 = vector.load %arg1[%c6_73, %c0_74, %c256_75] : memref<8x2x512xf32, #tpu.memory_space<vmem>>, vector<1x2x256xf32>
    %214 = vector.shape_cast %213 : vector<1x2x256xf32> to vector<2x256xf32>
    %cst_76 = arith.constant dense<0.000000e+00> : vector<2x256xf32>
    %215 = tpu.matmul %209, %1, %cst_76 {dimension_numbers = #tpu.dot_dimension_numbers<[1], [0], [0], [1], [0, 0, 1, 1], [], []>} : vector<2x64xf32>, vector<64x256xf32>, vector<2x256xf32> -> vector<2x256xf32>
    %216 = arith.addf %214, %215 : vector<2x256xf32>
    %217 = vector.extract_strided_slice %216 {offsets = [0, 0], sizes = [2, 192], strides = [1, 1]} : vector<2x256xf32> to vector<2x192xf32>
    %218 = arith.negf %217 : vector<2x192xf32>
    %219 = math.exp %218 : vector<2x192xf32>
    %cst_77 = arith.constant 1.000000e+00 : f32
    %220 = vector.broadcast %cst_77 : f32 to vector<2x192xf32>
    %221 = arith.addf %220, %219 : vector<2x192xf32>
    %222 = arith.divf %220, %221 : vector<2x192xf32>
    %223 = vector.extract_strided_slice %216 {offsets = [0, 192], sizes = [2, 64], strides = [1, 1]} : vector<2x256xf32> to vector<2x64xf32>
    %224 = math.tanh %223 : vector<2x64xf32>
    %225 = vector.extract_strided_slice %222 {offsets = [0, 0], sizes = [2, 64], strides = [1, 1]} : vector<2x192xf32> to vector<2x64xf32>
    %226 = vector.extract_strided_slice %222 {offsets = [0, 64], sizes = [2, 64], strides = [1, 1]} : vector<2x192xf32> to vector<2x64xf32>
    %227 = vector.extract_strided_slice %222 {offsets = [0, 128], sizes = [2, 64], strides = [1, 1]} : vector<2x192xf32> to vector<2x64xf32>
    %228 = arith.mulf %226, %207 : vector<2x64xf32>
    %229 = arith.mulf %225, %224 : vector<2x64xf32>
    %230 = arith.addf %228, %229 : vector<2x64xf32>
    %231 = math.tanh %230 : vector<2x64xf32>
    %232 = arith.mulf %227, %231 : vector<2x64xf32>
    %c6_78 = arith.constant 6 : index
    %c0_79 = arith.constant 0 : index
    %c0_80 = arith.constant 0 : index
    %233 = vector.load %arg13[%c6_78, %c0_79, %c0_80] : memref<8x2x64xf32, #tpu.memory_space<vmem>>, vector<1x2x64xf32>
    %234 = vector.shape_cast %233 : vector<1x2x64xf32> to vector<2x64xf32>
    %235 = vector.shape_cast %232 : vector<2x64xf32> to vector<1x2x64xf32>
    tpu.vector_store %arg13[%c6_78, %c0_79, %c0_80], %235 {strides = array<i32>} : memref<8x2x64xf32, #tpu.memory_space<vmem>>, vector<1x2x64xf32>,
    %c5_81 = arith.constant 5 : index
    %c0_82 = arith.constant 0 : index
    %c256_83 = arith.constant 256 : index
    %236 = vector.load %arg1[%c5_81, %c0_82, %c256_83] : memref<8x2x512xf32, #tpu.memory_space<vmem>>, vector<1x2x256xf32>
    %237 = vector.shape_cast %236 : vector<1x2x256xf32> to vector<2x256xf32>
    %cst_84 = arith.constant dense<0.000000e+00> : vector<2x256xf32>
    %238 = tpu.matmul %232, %1, %cst_84 {dimension_numbers = #tpu.dot_dimension_numbers<[1], [0], [0], [1], [0, 0, 1, 1], [], []>} : vector<2x64xf32>, vector<64x256xf32>, vector<2x256xf32> -> vector<2x256xf32>
    %239 = arith.addf %237, %238 : vector<2x256xf32>
    %240 = vector.extract_strided_slice %239 {offsets = [0, 0], sizes = [2, 192], strides = [1, 1]} : vector<2x256xf32> to vector<2x192xf32>
    %241 = arith.negf %240 : vector<2x192xf32>
    %242 = math.exp %241 : vector<2x192xf32>
    %cst_85 = arith.constant 1.000000e+00 : f32
    %243 = vector.broadcast %cst_85 : f32 to vector<2x192xf32>
    %244 = arith.addf %243, %242 : vector<2x192xf32>
    %245 = arith.divf %243, %244 : vector<2x192xf32>
    %246 = vector.extract_strided_slice %239 {offsets = [0, 192], sizes = [2, 64], strides = [1, 1]} : vector<2x256xf32> to vector<2x64xf32>
    %247 = math.tanh %246 : vector<2x64xf32>
    %248 = vector.extract_strided_slice %245 {offsets = [0, 0], sizes = [2, 64], strides = [1, 1]} : vector<2x192xf32> to vector<2x64xf32>
    %249 = vector.extract_strided_slice %245 {offsets = [0, 64], sizes = [2, 64], strides = [1, 1]} : vector<2x192xf32> to vector<2x64xf32>
    %250 = vector.extract_strided_slice %245 {offsets = [0, 128], sizes = [2, 64], strides = [1, 1]} : vector<2x192xf32> to vector<2x64xf32>
    %251 = arith.mulf %249, %230 : vector<2x64xf32>
    %252 = arith.mulf %248, %247 : vector<2x64xf32>
    %253 = arith.addf %251, %252 : vector<2x64xf32>
    %254 = math.tanh %253 : vector<2x64xf32>
    %255 = arith.mulf %250, %254 : vector<2x64xf32>
    %c5_86 = arith.constant 5 : index
    %c0_87 = arith.constant 0 : index
    %c0_88 = arith.constant 0 : index
    %256 = vector.load %arg13[%c5_86, %c0_87, %c0_88] : memref<8x2x64xf32, #tpu.memory_space<vmem>>, vector<1x2x64xf32>
    %257 = vector.shape_cast %256 : vector<1x2x64xf32> to vector<2x64xf32>
    %258 = vector.shape_cast %255 : vector<2x64xf32> to vector<1x2x64xf32>
    tpu.vector_store %arg13[%c5_86, %c0_87, %c0_88], %258 {strides = array<i32>} : memref<8x2x64xf32, #tpu.memory_space<vmem>>, vector<1x2x64xf32>,
    %c4_89 = arith.constant 4 : index
    %c0_90 = arith.constant 0 : index
    %c256_91 = arith.constant 256 : index
    %259 = vector.load %arg1[%c4_89, %c0_90, %c256_91] : memref<8x2x512xf32, #tpu.memory_space<vmem>>, vector<1x2x256xf32>
    %260 = vector.shape_cast %259 : vector<1x2x256xf32> to vector<2x256xf32>
    %cst_92 = arith.constant dense<0.000000e+00> : vector<2x256xf32>
    %261 = tpu.matmul %255, %1, %cst_92 {dimension_numbers = #tpu.dot_dimension_numbers<[1], [0], [0], [1], [0, 0, 1, 1], [], []>} : vector<2x64xf32>, vector<64x256xf32>, vector<2x256xf32> -> vector<2x256xf32>
    %262 = arith.addf %260, %261 : vector<2x256xf32>
    %263 = vector.extract_strided_slice %262 {offsets = [0, 0], sizes = [2, 192], strides = [1, 1]} : vector<2x256xf32> to vector<2x192xf32>
    %264 = arith.negf %263 : vector<2x192xf32>
    %265 = math.exp %264 : vector<2x192xf32>
    %cst_93 = arith.constant 1.000000e+00 : f32
    %266 = vector.broadcast %cst_93 : f32 to vector<2x192xf32>
    %267 = arith.addf %266, %265 : vector<2x192xf32>
    %268 = arith.divf %266, %267 : vector<2x192xf32>
    %269 = vector.extract_strided_slice %262 {offsets = [0, 192], sizes = [2, 64], strides = [1, 1]} : vector<2x256xf32> to vector<2x64xf32>
    %270 = math.tanh %269 : vector<2x64xf32>
    %271 = vector.extract_strided_slice %268 {offsets = [0, 0], sizes = [2, 64], strides = [1, 1]} : vector<2x192xf32> to vector<2x64xf32>
    %272 = vector.extract_strided_slice %268 {offsets = [0, 64], sizes = [2, 64], strides = [1, 1]} : vector<2x192xf32> to vector<2x64xf32>
    %273 = vector.extract_strided_slice %268 {offsets = [0, 128], sizes = [2, 64], strides = [1, 1]} : vector<2x192xf32> to vector<2x64xf32>
    %274 = arith.mulf %272, %253 : vector<2x64xf32>
    %275 = arith.mulf %271, %270 : vector<2x64xf32>
    %276 = arith.addf %274, %275 : vector<2x64xf32>
    %277 = math.tanh %276 : vector<2x64xf32>
    %278 = arith.mulf %273, %277 : vector<2x64xf32>
    %c4_94 = arith.constant 4 : index
    %c0_95 = arith.constant 0 : index
    %c0_96 = arith.constant 0 : index
    %279 = vector.load %arg13[%c4_94, %c0_95, %c0_96] : memref<8x2x64xf32, #tpu.memory_space<vmem>>, vector<1x2x64xf32>
    %280 = vector.shape_cast %279 : vector<1x2x64xf32> to vector<2x64xf32>
    %281 = vector.shape_cast %278 : vector<2x64xf32> to vector<1x2x64xf32>
    tpu.vector_store %arg13[%c4_94, %c0_95, %c0_96], %281 {strides = array<i32>} : memref<8x2x64xf32, #tpu.memory_space<vmem>>, vector<1x2x64xf32>,
    %c3_97 = arith.constant 3 : index
    %c0_98 = arith.constant 0 : index
    %c256_99 = arith.constant 256 : index
    %282 = vector.load %arg1[%c3_97, %c0_98, %c256_99] : memref<8x2x512xf32, #tpu.memory_space<vmem>>, vector<1x2x256xf32>
    %283 = vector.shape_cast %282 : vector<1x2x256xf32> to vector<2x256xf32>
    %cst_100 = arith.constant dense<0.000000e+00> : vector<2x256xf32>
    %284 = tpu.matmul %278, %1, %cst_100 {dimension_numbers = #tpu.dot_dimension_numbers<[1], [0], [0], [1], [0, 0, 1, 1], [], []>} : vector<2x64xf32>, vector<64x256xf32>, vector<2x256xf32> -> vector<2x256xf32>
    %285 = arith.addf %283, %284 : vector<2x256xf32>
    %286 = vector.extract_strided_slice %285 {offsets = [0, 0], sizes = [2, 192], strides = [1, 1]} : vector<2x256xf32> to vector<2x192xf32>
    %287 = arith.negf %286 : vector<2x192xf32>
    %288 = math.exp %287 : vector<2x192xf32>
    %cst_101 = arith.constant 1.000000e+00 : f32
    %289 = vector.broadcast %cst_101 : f32 to vector<2x192xf32>
    %290 = arith.addf %289, %288 : vector<2x192xf32>
    %291 = arith.divf %289, %290 : vector<2x192xf32>
    %292 = vector.extract_strided_slice %285 {offsets = [0, 192], sizes = [2, 64], strides = [1, 1]} : vector<2x256xf32> to vector<2x64xf32>
    %293 = math.tanh %292 : vector<2x64xf32>
    %294 = vector.extract_strided_slice %291 {offsets = [0, 0], sizes = [2, 64], strides = [1, 1]} : vector<2x192xf32> to vector<2x64xf32>
    %295 = vector.extract_strided_slice %291 {offsets = [0, 64], sizes = [2, 64], strides = [1, 1]} : vector<2x192xf32> to vector<2x64xf32>
    %296 = vector.extract_strided_slice %291 {offsets = [0, 128], sizes = [2, 64], strides = [1, 1]} : vector<2x192xf32> to vector<2x64xf32>
    %297 = arith.mulf %295, %276 : vector<2x64xf32>
    %298 = arith.mulf %294, %293 : vector<2x64xf32>
    %299 = arith.addf %297, %298 : vector<2x64xf32>
    %300 = math.tanh %299 : vector<2x64xf32>
    %301 = arith.mulf %296, %300 : vector<2x64xf32>
    %c3_102 = arith.constant 3 : index
    %c0_103 = arith.constant 0 : index
    %c0_104 = arith.constant 0 : index
    %302 = vector.load %arg13[%c3_102, %c0_103, %c0_104] : memref<8x2x64xf32, #tpu.memory_space<vmem>>, vector<1x2x64xf32>
    %303 = vector.shape_cast %302 : vector<1x2x64xf32> to vector<2x64xf32>
    %304 = vector.shape_cast %301 : vector<2x64xf32> to vector<1x2x64xf32>
    tpu.vector_store %arg13[%c3_102, %c0_103, %c0_104], %304 {strides = array<i32>} : memref<8x2x64xf32, #tpu.memory_space<vmem>>, vector<1x2x64xf32>,
    %c2_105 = arith.constant 2 : index
    %c0_106 = arith.constant 0 : index
    %c256_107 = arith.constant 256 : index
    %305 = vector.load %arg1[%c2_105, %c0_106, %c256_107] : memref<8x2x512xf32, #tpu.memory_space<vmem>>, vector<1x2x256xf32>
    %306 = vector.shape_cast %305 : vector<1x2x256xf32> to vector<2x256xf32>
    %cst_108 = arith.constant dense<0.000000e+00> : vector<2x256xf32>
    %307 = tpu.matmul %301, %1, %cst_108 {dimension_numbers = #tpu.dot_dimension_numbers<[1], [0], [0], [1], [0, 0, 1, 1], [], []>} : vector<2x64xf32>, vector<64x256xf32>, vector<2x256xf32> -> vector<2x256xf32>
    %308 = arith.addf %306, %307 : vector<2x256xf32>
    %309 = vector.extract_strided_slice %308 {offsets = [0, 0], sizes = [2, 192], strides = [1, 1]} : vector<2x256xf32> to vector<2x192xf32>
    %310 = arith.negf %309 : vector<2x192xf32>
    %311 = math.exp %310 : vector<2x192xf32>
    %cst_109 = arith.constant 1.000000e+00 : f32
    %312 = vector.broadcast %cst_109 : f32 to vector<2x192xf32>
    %313 = arith.addf %312, %311 : vector<2x192xf32>
    %314 = arith.divf %312, %313 : vector<2x192xf32>
    %315 = vector.extract_strided_slice %308 {offsets = [0, 192], sizes = [2, 64], strides = [1, 1]} : vector<2x256xf32> to vector<2x64xf32>
    %316 = math.tanh %315 : vector<2x64xf32>
    %317 = vector.extract_strided_slice %314 {offsets = [0, 0], sizes = [2, 64], strides = [1, 1]} : vector<2x192xf32> to vector<2x64xf32>
    %318 = vector.extract_strided_slice %314 {offsets = [0, 64], sizes = [2, 64], strides = [1, 1]} : vector<2x192xf32> to vector<2x64xf32>
    %319 = vector.extract_strided_slice %314 {offsets = [0, 128], sizes = [2, 64], strides = [1, 1]} : vector<2x192xf32> to vector<2x64xf32>
    %320 = arith.mulf %318, %299 : vector<2x64xf32>
    %321 = arith.mulf %317, %316 : vector<2x64xf32>
    %322 = arith.addf %320, %321 : vector<2x64xf32>
    %323 = math.tanh %322 : vector<2x64xf32>
    %324 = arith.mulf %319, %323 : vector<2x64xf32>
    %c2_110 = arith.constant 2 : index
    %c0_111 = arith.constant 0 : index
    %c0_112 = arith.constant 0 : index
    %325 = vector.load %arg13[%c2_110, %c0_111, %c0_112] : memref<8x2x64xf32, #tpu.memory_space<vmem>>, vector<1x2x64xf32>
    %326 = vector.shape_cast %325 : vector<1x2x64xf32> to vector<2x64xf32>
    %327 = vector.shape_cast %324 : vector<2x64xf32> to vector<1x2x64xf32>
    tpu.vector_store %arg13[%c2_110, %c0_111, %c0_112], %327 {strides = array<i32>} : memref<8x2x64xf32, #tpu.memory_space<vmem>>, vector<1x2x64xf32>,
    %c1_113 = arith.constant 1 : index
    %c0_114 = arith.constant 0 : index
    %c256_115 = arith.constant 256 : index
    %328 = vector.load %arg1[%c1_113, %c0_114, %c256_115] : memref<8x2x512xf32, #tpu.memory_space<vmem>>, vector<1x2x256xf32>
    %329 = vector.shape_cast %328 : vector<1x2x256xf32> to vector<2x256xf32>
    %cst_116 = arith.constant dense<0.000000e+00> : vector<2x256xf32>
    %330 = tpu.matmul %324, %1, %cst_116 {dimension_numbers = #tpu.dot_dimension_numbers<[1], [0], [0], [1], [0, 0, 1, 1], [], []>} : vector<2x64xf32>, vector<64x256xf32>, vector<2x256xf32> -> vector<2x256xf32>
    %331 = arith.addf %329, %330 : vector<2x256xf32>
    %332 = vector.extract_strided_slice %331 {offsets = [0, 0], sizes = [2, 192], strides = [1, 1]} : vector<2x256xf32> to vector<2x192xf32>
    %333 = arith.negf %332 : vector<2x192xf32>
    %334 = math.exp %333 : vector<2x192xf32>
    %cst_117 = arith.constant 1.000000e+00 : f32
    %335 = vector.broadcast %cst_117 : f32 to vector<2x192xf32>
    %336 = arith.addf %335, %334 : vector<2x192xf32>
    %337 = arith.divf %335, %336 : vector<2x192xf32>
    %338 = vector.extract_strided_slice %331 {offsets = [0, 192], sizes = [2, 64], strides = [1, 1]} : vector<2x256xf32> to vector<2x64xf32>
    %339 = math.tanh %338 : vector<2x64xf32>
    %340 = vector.extract_strided_slice %337 {offsets = [0, 0], sizes = [2, 64], strides = [1, 1]} : vector<2x192xf32> to vector<2x64xf32>
    %341 = vector.extract_strided_slice %337 {offsets = [0, 64], sizes = [2, 64], strides = [1, 1]} : vector<2x192xf32> to vector<2x64xf32>
    %342 = vector.extract_strided_slice %337 {offsets = [0, 128], sizes = [2, 64], strides = [1, 1]} : vector<2x192xf32> to vector<2x64xf32>
    %343 = arith.mulf %341, %322 : vector<2x64xf32>
    %344 = arith.mulf %340, %339 : vector<2x64xf32>
    %345 = arith.addf %343, %344 : vector<2x64xf32>
    %346 = math.tanh %345 : vector<2x64xf32>
    %347 = arith.mulf %342, %346 : vector<2x64xf32>
    %c1_118 = arith.constant 1 : index
    %c0_119 = arith.constant 0 : index
    %c0_120 = arith.constant 0 : index
    %348 = vector.load %arg13[%c1_118, %c0_119, %c0_120] : memref<8x2x64xf32, #tpu.memory_space<vmem>>, vector<1x2x64xf32>
    %349 = vector.shape_cast %348 : vector<1x2x64xf32> to vector<2x64xf32>
    %350 = vector.shape_cast %347 : vector<2x64xf32> to vector<1x2x64xf32>
    tpu.vector_store %arg13[%c1_118, %c0_119, %c0_120], %350 {strides = array<i32>} : memref<8x2x64xf32, #tpu.memory_space<vmem>>, vector<1x2x64xf32>,
    %c0_121 = arith.constant 0 : index
    %c0_122 = arith.constant 0 : index
    %c256_123 = arith.constant 256 : index
    %351 = vector.load %arg1[%c0_121, %c0_122, %c256_123] : memref<8x2x512xf32, #tpu.memory_space<vmem>>, vector<1x2x256xf32>
    %352 = vector.shape_cast %351 : vector<1x2x256xf32> to vector<2x256xf32>
    %cst_124 = arith.constant dense<0.000000e+00> : vector<2x256xf32>
    %353 = tpu.matmul %347, %1, %cst_124 {dimension_numbers = #tpu.dot_dimension_numbers<[1], [0], [0], [1], [0, 0, 1, 1], [], []>} : vector<2x64xf32>, vector<64x256xf32>, vector<2x256xf32> -> vector<2x256xf32>
    %354 = arith.addf %352, %353 : vector<2x256xf32>
    %355 = vector.extract_strided_slice %354 {offsets = [0, 0], sizes = [2, 192], strides = [1, 1]} : vector<2x256xf32> to vector<2x192xf32>
    %356 = arith.negf %355 : vector<2x192xf32>
    %357 = math.exp %356 : vector<2x192xf32>
    %cst_125 = arith.constant 1.000000e+00 : f32
    %358 = vector.broadcast %cst_125 : f32 to vector<2x192xf32>
    %359 = arith.addf %358, %357 : vector<2x192xf32>
    %360 = arith.divf %358, %359 : vector<2x192xf32>
    %361 = vector.extract_strided_slice %354 {offsets = [0, 192], sizes = [2, 64], strides = [1, 1]} : vector<2x256xf32> to vector<2x64xf32>
    %362 = math.tanh %361 : vector<2x64xf32>
    %363 = vector.extract_strided_slice %360 {offsets = [0, 0], sizes = [2, 64], strides = [1, 1]} : vector<2x192xf32> to vector<2x64xf32>
    %364 = vector.extract_strided_slice %360 {offsets = [0, 64], sizes = [2, 64], strides = [1, 1]} : vector<2x192xf32> to vector<2x64xf32>
    %365 = vector.extract_strided_slice %360 {offsets = [0, 128], sizes = [2, 64], strides = [1, 1]} : vector<2x192xf32> to vector<2x64xf32>
    %366 = arith.mulf %364, %345 : vector<2x64xf32>
    %367 = arith.mulf %363, %362 : vector<2x64xf32>
    %368 = arith.addf %366, %367 : vector<2x64xf32>
    %369 = math.tanh %368 : vector<2x64xf32>
    %370 = arith.mulf %365, %369 : vector<2x64xf32>
    %c0_126 = arith.constant 0 : index
    %c0_127 = arith.constant 0 : index
    %c0_128 = arith.constant 0 : index
    %371 = vector.load %arg13[%c0_126, %c0_127, %c0_128] : memref<8x2x64xf32, #tpu.memory_space<vmem>>, vector<1x2x64xf32>
    %372 = vector.shape_cast %371 : vector<1x2x64xf32> to vector<2x64xf32>
    %373 = vector.shape_cast %370 : vector<2x64xf32> to vector<1x2x64xf32>
    tpu.vector_store %arg13[%c0_126, %c0_127, %c0_128], %373 {strides = array<i32>} : memref<8x2x64xf32, #tpu.memory_space<vmem>>, vector<1x2x64xf32>,
    %c0_129 = arith.constant 0 : index
    %c0_130 = arith.constant 0 : index
    %c0_131 = arith.constant 0 : index
    %374 = vector.load %arg12[%c0_129, %c0_130, %c0_131] : memref<8x2x64xf32, #tpu.memory_space<vmem>>, vector<1x2x64xf32>
    %375 = vector.shape_cast %374 : vector<1x2x64xf32> to vector<2x64xf32>
    %c0_132 = arith.constant 0 : index
    %c0_133 = arith.constant 0 : index
    %c0_134 = arith.constant 0 : index
    %376 = vector.load %arg13[%c0_132, %c0_133, %c0_134] : memref<8x2x64xf32, #tpu.memory_space<vmem>>, vector<1x2x64xf32>
    %377 = vector.shape_cast %376 : vector<1x2x64xf32> to vector<2x64xf32>
    %378 = tpu.concatenate %375, %377 in 1 : vector<2x64xf32>, vector<2x64xf32> -> vector<2x128xf32>
    %cst_135 = arith.constant dense<0.000000e+00> : vector<2x512xf32>
    %379 = tpu.matmul %378, %2, %cst_135 {dimension_numbers = #tpu.dot_dimension_numbers<[1], [0], [0], [1], [0, 0, 1, 1], [], []>} : vector<2x128xf32>, vector<128x512xf32>, vector<2x512xf32> -> vector<2x512xf32>
    %380 = vector.broadcast %3 : vector<1x512xf32> to vector<2x512xf32>
    %381 = arith.addf %379, %380 : vector<2x512xf32>
    %c0_136 = arith.constant 0 : index
    %c0_137 = arith.constant 0 : index
    %c0_138 = arith.constant 0 : index
    %382 = vector.load %arg14[%c0_136, %c0_137, %c0_138] : memref<8x2x512xf32, #tpu.memory_space<vmem>>, vector<1x2x512xf32>
    %383 = vector.shape_cast %382 : vector<1x2x512xf32> to vector<2x512xf32>
    %384 = vector.shape_cast %381 : vector<2x512xf32> to vector<1x2x512xf32>
    tpu.vector_store %arg14[%c0_136, %c0_137, %c0_138], %384 {strides = array<i32>} : memref<8x2x512xf32, #tpu.memory_space<vmem>>, vector<1x2x512xf32>,
    %c1_139 = arith.constant 1 : index
    %c0_140 = arith.constant 0 : index
    %c0_141 = arith.constant 0 : index
    %385 = vector.load %arg12[%c1_139, %c0_140, %c0_141] : memref<8x2x64xf32, #tpu.memory_space<vmem>>, vector<1x2x64xf32>
    %386 = vector.shape_cast %385 : vector<1x2x64xf32> to vector<2x64xf32>
    %c1_142 = arith.constant 1 : index
    %c0_143 = arith.constant 0 : index
    %c0_144 = arith.constant 0 : index
    %387 = vector.load %arg13[%c1_142, %c0_143, %c0_144] : memref<8x2x64xf32, #tpu.memory_space<vmem>>, vector<1x2x64xf32>
    %388 = vector.shape_cast %387 : vector<1x2x64xf32> to vector<2x64xf32>
    %389 = tpu.concatenate %386, %388 in 1 : vector<2x64xf32>, vector<2x64xf32> -> vector<2x128xf32>
    %cst_145 = arith.constant dense<0.000000e+00> : vector<2x512xf32>
    %390 = tpu.matmul %389, %2, %cst_145 {dimension_numbers = #tpu.dot_dimension_numbers<[1], [0], [0], [1], [0, 0, 1, 1], [], []>} : vector<2x128xf32>, vector<128x512xf32>, vector<2x512xf32> -> vector<2x512xf32>
    %391 = vector.broadcast %3 : vector<1x512xf32> to vector<2x512xf32>
    %392 = arith.addf %390, %391 : vector<2x512xf32>
    %c1_146 = arith.constant 1 : index
    %c0_147 = arith.constant 0 : index
    %c0_148 = arith.constant 0 : index
    %393 = vector.load %arg14[%c1_146, %c0_147, %c0_148] : memref<8x2x512xf32, #tpu.memory_space<vmem>>, vector<1x2x512xf32>
    %394 = vector.shape_cast %393 : vector<1x2x512xf32> to vector<2x512xf32>
    %395 = vector.shape_cast %392 : vector<2x512xf32> to vector<1x2x512xf32>
    tpu.vector_store %arg14[%c1_146, %c0_147, %c0_148], %395 {strides = array<i32>} : memref<8x2x512xf32, #tpu.memory_space<vmem>>, vector<1x2x512xf32>,
    %c2_149 = arith.constant 2 : index
    %c0_150 = arith.constant 0 : index
    %c0_151 = arith.constant 0 : index
    %396 = vector.load %arg12[%c2_149, %c0_150, %c0_151] : memref<8x2x64xf32, #tpu.memory_space<vmem>>, vector<1x2x64xf32>
    %397 = vector.shape_cast %396 : vector<1x2x64xf32> to vector<2x64xf32>
    %c2_152 = arith.constant 2 : index
    %c0_153 = arith.constant 0 : index
    %c0_154 = arith.constant 0 : index
    %398 = vector.load %arg13[%c2_152, %c0_153, %c0_154] : memref<8x2x64xf32, #tpu.memory_space<vmem>>, vector<1x2x64xf32>
    %399 = vector.shape_cast %398 : vector<1x2x64xf32> to vector<2x64xf32>
    %400 = tpu.concatenate %397, %399 in 1 : vector<2x64xf32>, vector<2x64xf32> -> vector<2x128xf32>
    %cst_155 = arith.constant dense<0.000000e+00> : vector<2x512xf32>
    %401 = tpu.matmul %400, %2, %cst_155 {dimension_numbers = #tpu.dot_dimension_numbers<[1], [0], [0], [1], [0, 0, 1, 1], [], []>} : vector<2x128xf32>, vector<128x512xf32>, vector<2x512xf32> -> vector<2x512xf32>
    %402 = vector.broadcast %3 : vector<1x512xf32> to vector<2x512xf32>
    %403 = arith.addf %401, %402 : vector<2x512xf32>
    %c2_156 = arith.constant 2 : index
    %c0_157 = arith.constant 0 : index
    %c0_158 = arith.constant 0 : index
    %404 = vector.load %arg14[%c2_156, %c0_157, %c0_158] : memref<8x2x512xf32, #tpu.memory_space<vmem>>, vector<1x2x512xf32>
    %405 = vector.shape_cast %404 : vector<1x2x512xf32> to vector<2x512xf32>
    %406 = vector.shape_cast %403 : vector<2x512xf32> to vector<1x2x512xf32>
    tpu.vector_store %arg14[%c2_156, %c0_157, %c0_158], %406 {strides = array<i32>} : memref<8x2x512xf32, #tpu.memory_space<vmem>>, vector<1x2x512xf32>,
    %c3_159 = arith.constant 3 : index
    %c0_160 = arith.constant 0 : index
    %c0_161 = arith.constant 0 : index
    %407 = vector.load %arg12[%c3_159, %c0_160, %c0_161] : memref<8x2x64xf32, #tpu.memory_space<vmem>>, vector<1x2x64xf32>
    %408 = vector.shape_cast %407 : vector<1x2x64xf32> to vector<2x64xf32>
    %c3_162 = arith.constant 3 : index
    %c0_163 = arith.constant 0 : index
    %c0_164 = arith.constant 0 : index
    %409 = vector.load %arg13[%c3_162, %c0_163, %c0_164] : memref<8x2x64xf32, #tpu.memory_space<vmem>>, vector<1x2x64xf32>
    %410 = vector.shape_cast %409 : vector<1x2x64xf32> to vector<2x64xf32>
    %411 = tpu.concatenate %408, %410 in 1 : vector<2x64xf32>, vector<2x64xf32> -> vector<2x128xf32>
    %cst_165 = arith.constant dense<0.000000e+00> : vector<2x512xf32>
    %412 = tpu.matmul %411, %2, %cst_165 {dimension_numbers = #tpu.dot_dimension_numbers<[1], [0], [0], [1], [0, 0, 1, 1], [], []>} : vector<2x128xf32>, vector<128x512xf32>, vector<2x512xf32> -> vector<2x512xf32>
    %413 = vector.broadcast %3 : vector<1x512xf32> to vector<2x512xf32>
    %414 = arith.addf %412, %413 : vector<2x512xf32>
    %c3_166 = arith.constant 3 : index
    %c0_167 = arith.constant 0 : index
    %c0_168 = arith.constant 0 : index
    %415 = vector.load %arg14[%c3_166, %c0_167, %c0_168] : memref<8x2x512xf32, #tpu.memory_space<vmem>>, vector<1x2x512xf32>
    %416 = vector.shape_cast %415 : vector<1x2x512xf32> to vector<2x512xf32>
    %417 = vector.shape_cast %414 : vector<2x512xf32> to vector<1x2x512xf32>
    tpu.vector_store %arg14[%c3_166, %c0_167, %c0_168], %417 {strides = array<i32>} : memref<8x2x512xf32, #tpu.memory_space<vmem>>, vector<1x2x512xf32>,
    %c4_169 = arith.constant 4 : index
    %c0_170 = arith.constant 0 : index
    %c0_171 = arith.constant 0 : index
    %418 = vector.load %arg12[%c4_169, %c0_170, %c0_171] : memref<8x2x64xf32, #tpu.memory_space<vmem>>, vector<1x2x64xf32>
    %419 = vector.shape_cast %418 : vector<1x2x64xf32> to vector<2x64xf32>
    %c4_172 = arith.constant 4 : index
    %c0_173 = arith.constant 0 : index
    %c0_174 = arith.constant 0 : index
    %420 = vector.load %arg13[%c4_172, %c0_173, %c0_174] : memref<8x2x64xf32, #tpu.memory_space<vmem>>, vector<1x2x64xf32>
    %421 = vector.shape_cast %420 : vector<1x2x64xf32> to vector<2x64xf32>
    %422 = tpu.concatenate %419, %421 in 1 : vector<2x64xf32>, vector<2x64xf32> -> vector<2x128xf32>
    %cst_175 = arith.constant dense<0.000000e+00> : vector<2x512xf32>
    %423 = tpu.matmul %422, %2, %cst_175 {dimension_numbers = #tpu.dot_dimension_numbers<[1], [0], [0], [1], [0, 0, 1, 1], [], []>} : vector<2x128xf32>, vector<128x512xf32>, vector<2x512xf32> -> vector<2x512xf32>
    %424 = vector.broadcast %3 : vector<1x512xf32> to vector<2x512xf32>
    %425 = arith.addf %423, %424 : vector<2x512xf32>
    %c4_176 = arith.constant 4 : index
    %c0_177 = arith.constant 0 : index
    %c0_178 = arith.constant 0 : index
    %426 = vector.load %arg14[%c4_176, %c0_177, %c0_178] : memref<8x2x512xf32, #tpu.memory_space<vmem>>, vector<1x2x512xf32>
    %427 = vector.shape_cast %426 : vector<1x2x512xf32> to vector<2x512xf32>
    %428 = vector.shape_cast %425 : vector<2x512xf32> to vector<1x2x512xf32>
    tpu.vector_store %arg14[%c4_176, %c0_177, %c0_178], %428 {strides = array<i32>} : memref<8x2x512xf32, #tpu.memory_space<vmem>>, vector<1x2x512xf32>,
    %c5_179 = arith.constant 5 : index
    %c0_180 = arith.constant 0 : index
    %c0_181 = arith.constant 0 : index
    %429 = vector.load %arg12[%c5_179, %c0_180, %c0_181] : memref<8x2x64xf32, #tpu.memory_space<vmem>>, vector<1x2x64xf32>
    %430 = vector.shape_cast %429 : vector<1x2x64xf32> to vector<2x64xf32>
    %c5_182 = arith.constant 5 : index
    %c0_183 = arith.constant 0 : index
    %c0_184 = arith.constant 0 : index
    %431 = vector.load %arg13[%c5_182, %c0_183, %c0_184] : memref<8x2x64xf32, #tpu.memory_space<vmem>>, vector<1x2x64xf32>
    %432 = vector.shape_cast %431 : vector<1x2x64xf32> to vector<2x64xf32>
    %433 = tpu.concatenate %430, %432 in 1 : vector<2x64xf32>, vector<2x64xf32> -> vector<2x128xf32>
    %cst_185 = arith.constant dense<0.000000e+00> : vector<2x512xf32>
    %434 = tpu.matmul %433, %2, %cst_185 {dimension_numbers = #tpu.dot_dimension_numbers<[1], [0], [0], [1], [0, 0, 1, 1], [], []>} : vector<2x128xf32>, vector<128x512xf32>, vector<2x512xf32> -> vector<2x512xf32>
    %435 = vector.broadcast %3 : vector<1x512xf32> to vector<2x512xf32>
    %436 = arith.addf %434, %435 : vector<2x512xf32>
    %c5_186 = arith.constant 5 : index
    %c0_187 = arith.constant 0 : index
    %c0_188 = arith.constant 0 : index
    %437 = vector.load %arg14[%c5_186, %c0_187, %c0_188] : memref<8x2x512xf32, #tpu.memory_space<vmem>>, vector<1x2x512xf32>
    %438 = vector.shape_cast %437 : vector<1x2x512xf32> to vector<2x512xf32>
    %439 = vector.shape_cast %436 : vector<2x512xf32> to vector<1x2x512xf32>
    tpu.vector_store %arg14[%c5_186, %c0_187, %c0_188], %439 {strides = array<i32>} : memref<8x2x512xf32, #tpu.memory_space<vmem>>, vector<1x2x512xf32>,
    %c6_189 = arith.constant 6 : index
    %c0_190 = arith.constant 0 : index
    %c0_191 = arith.constant 0 : index
    %440 = vector.load %arg12[%c6_189, %c0_190, %c0_191] : memref<8x2x64xf32, #tpu.memory_space<vmem>>, vector<1x2x64xf32>
    %441 = vector.shape_cast %440 : vector<1x2x64xf32> to vector<2x64xf32>
    %c6_192 = arith.constant 6 : index
    %c0_193 = arith.constant 0 : index
    %c0_194 = arith.constant 0 : index
    %442 = vector.load %arg13[%c6_192, %c0_193, %c0_194] : memref<8x2x64xf32, #tpu.memory_space<vmem>>, vector<1x2x64xf32>
    %443 = vector.shape_cast %442 : vector<1x2x64xf32> to vector<2x64xf32>
    %444 = tpu.concatenate %441, %443 in 1 : vector<2x64xf32>, vector<2x64xf32> -> vector<2x128xf32>
    %cst_195 = arith.constant dense<0.000000e+00> : vector<2x512xf32>
    %445 = tpu.matmul %444, %2, %cst_195 {dimension_numbers = #tpu.dot_dimension_numbers<[1], [0], [0], [1], [0, 0, 1, 1], [], []>} : vector<2x128xf32>, vector<128x512xf32>, vector<2x512xf32> -> vector<2x512xf32>
    %446 = vector.broadcast %3 : vector<1x512xf32> to vector<2x512xf32>
    %447 = arith.addf %445, %446 : vector<2x512xf32>
    %c6_196 = arith.constant 6 : index
    %c0_197 = arith.constant 0 : index
    %c0_198 = arith.constant 0 : index
    %448 = vector.load %arg14[%c6_196, %c0_197, %c0_198] : memref<8x2x512xf32, #tpu.memory_space<vmem>>, vector<1x2x512xf32>
    %449 = vector.shape_cast %448 : vector<1x2x512xf32> to vector<2x512xf32>
    %450 = vector.shape_cast %447 : vector<2x512xf32> to vector<1x2x512xf32>
    tpu.vector_store %arg14[%c6_196, %c0_197, %c0_198], %450 {strides = array<i32>} : memref<8x2x512xf32, #tpu.memory_space<vmem>>, vector<1x2x512xf32>,
    %c7_199 = arith.constant 7 : index
    %c0_200 = arith.constant 0 : index
    %c0_201 = arith.constant 0 : index
    %451 = vector.load %arg12[%c7_199, %c0_200, %c0_201] : memref<8x2x64xf32, #tpu.memory_space<vmem>>, vector<1x2x64xf32>
    %452 = vector.shape_cast %451 : vector<1x2x64xf32> to vector<2x64xf32>
    %c7_202 = arith.constant 7 : index
    %c0_203 = arith.constant 0 : index
    %c0_204 = arith.constant 0 : index
    %453 = vector.load %arg13[%c7_202, %c0_203, %c0_204] : memref<8x2x64xf32, #tpu.memory_space<vmem>>, vector<1x2x64xf32>
    %454 = vector.shape_cast %453 : vector<1x2x64xf32> to vector<2x64xf32>
    %455 = tpu.concatenate %452, %454 in 1 : vector<2x64xf32>, vector<2x64xf32> -> vector<2x128xf32>
    %cst_205 = arith.constant dense<0.000000e+00> : vector<2x512xf32>
    %456 = tpu.matmul %455, %2, %cst_205 {dimension_numbers = #tpu.dot_dimension_numbers<[1], [0], [0], [1], [0, 0, 1, 1], [], []>} : vector<2x128xf32>, vector<128x512xf32>, vector<2x512xf32> -> vector<2x512xf32>
    %457 = vector.broadcast %3 : vector<1x512xf32> to vector<2x512xf32>
    %458 = arith.addf %456, %457 : vector<2x512xf32>
    %c7_206 = arith.constant 7 : index
    %c0_207 = arith.constant 0 : index
    %c0_208 = arith.constant 0 : index
    %459 = vector.load %arg14[%c7_206, %c0_207, %c0_208] : memref<8x2x512xf32, #tpu.memory_space<vmem>>, vector<1x2x512xf32>
    %460 = vector.shape_cast %459 : vector<1x2x512xf32> to vector<2x512xf32>
    %461 = vector.shape_cast %458 : vector<2x512xf32> to vector<1x2x512xf32>
    tpu.vector_store %arg14[%c7_206, %c0_207, %c0_208], %461 {strides = array<i32>} : memref<8x2x512xf32, #tpu.memory_space<vmem>>, vector<1x2x512xf32>,
    %c0_209 = arith.constant 0 : index
    %c0_210 = arith.constant 0 : index
    %c0_211 = arith.constant 0 : index
    %462 = vector.load %arg14[%c0_209, %c0_210, %c0_211] : memref<8x2x512xf32, #tpu.memory_space<vmem>>, vector<1x2x256xf32>
    %463 = vector.shape_cast %462 : vector<1x2x256xf32> to vector<2x256xf32>
    %cst_212 = arith.constant dense<0.000000e+00> : vector<2x256xf32>
    %464 = tpu.matmul %5, %4, %cst_212 {dimension_numbers = #tpu.dot_dimension_numbers<[1], [0], [0], [1], [0, 0, 1, 1], [], []>} : vector<2x64xf32>, vector<64x256xf32>, vector<2x256xf32> -> vector<2x256xf32>
    %465 = arith.addf %463, %464 : vector<2x256xf32>
    %466 = vector.extract_strided_slice %465 {offsets = [0, 0], sizes = [2, 192], strides = [1, 1]} : vector<2x256xf32> to vector<2x192xf32>
    %467 = arith.negf %466 : vector<2x192xf32>
    %468 = math.exp %467 : vector<2x192xf32>
    %cst_213 = arith.constant 1.000000e+00 : f32
    %469 = vector.broadcast %cst_213 : f32 to vector<2x192xf32>
    %470 = arith.addf %469, %468 : vector<2x192xf32>
    %471 = arith.divf %469, %470 : vector<2x192xf32>
    %472 = vector.extract_strided_slice %465 {offsets = [0, 192], sizes = [2, 64], strides = [1, 1]} : vector<2x256xf32> to vector<2x64xf32>
    %473 = math.tanh %472 : vector<2x64xf32>
    %474 = vector.extract_strided_slice %471 {offsets = [0, 0], sizes = [2, 64], strides = [1, 1]} : vector<2x192xf32> to vector<2x64xf32>
    %475 = vector.extract_strided_slice %471 {offsets = [0, 64], sizes = [2, 64], strides = [1, 1]} : vector<2x192xf32> to vector<2x64xf32>
    %476 = vector.extract_strided_slice %471 {offsets = [0, 128], sizes = [2, 64], strides = [1, 1]} : vector<2x192xf32> to vector<2x64xf32>
    %477 = arith.mulf %475, %5 : vector<2x64xf32>
    %478 = arith.mulf %474, %473 : vector<2x64xf32>
    %479 = arith.addf %477, %478 : vector<2x64xf32>
    %480 = math.tanh %479 : vector<2x64xf32>
    %481 = arith.mulf %476, %480 : vector<2x64xf32>
    %c1_214 = arith.constant 1 : index
    %c0_215 = arith.constant 0 : index
    %c0_216 = arith.constant 0 : index
    %482 = vector.load %arg14[%c1_214, %c0_215, %c0_216] : memref<8x2x512xf32, #tpu.memory_space<vmem>>, vector<1x2x256xf32>
    %483 = vector.shape_cast %482 : vector<1x2x256xf32> to vector<2x256xf32>
    %cst_217 = arith.constant dense<0.000000e+00> : vector<2x256xf32>
    %484 = tpu.matmul %481, %4, %cst_217 {dimension_numbers = #tpu.dot_dimension_numbers<[1], [0], [0], [1], [0, 0, 1, 1], [], []>} : vector<2x64xf32>, vector<64x256xf32>, vector<2x256xf32> -> vector<2x256xf32>
    %485 = arith.addf %483, %484 : vector<2x256xf32>
    %486 = vector.extract_strided_slice %485 {offsets = [0, 0], sizes = [2, 192], strides = [1, 1]} : vector<2x256xf32> to vector<2x192xf32>
    %487 = arith.negf %486 : vector<2x192xf32>
    %488 = math.exp %487 : vector<2x192xf32>
    %cst_218 = arith.constant 1.000000e+00 : f32
    %489 = vector.broadcast %cst_218 : f32 to vector<2x192xf32>
    %490 = arith.addf %489, %488 : vector<2x192xf32>
    %491 = arith.divf %489, %490 : vector<2x192xf32>
    %492 = vector.extract_strided_slice %485 {offsets = [0, 192], sizes = [2, 64], strides = [1, 1]} : vector<2x256xf32> to vector<2x64xf32>
    %493 = math.tanh %492 : vector<2x64xf32>
    %494 = vector.extract_strided_slice %491 {offsets = [0, 0], sizes = [2, 64], strides = [1, 1]} : vector<2x192xf32> to vector<2x64xf32>
    %495 = vector.extract_strided_slice %491 {offsets = [0, 64], sizes = [2, 64], strides = [1, 1]} : vector<2x192xf32> to vector<2x64xf32>
    %496 = vector.extract_strided_slice %491 {offsets = [0, 128], sizes = [2, 64], strides = [1, 1]} : vector<2x192xf32> to vector<2x64xf32>
    %497 = arith.mulf %495, %479 : vector<2x64xf32>
    %498 = arith.mulf %494, %493 : vector<2x64xf32>
    %499 = arith.addf %497, %498 : vector<2x64xf32>
    %500 = math.tanh %499 : vector<2x64xf32>
    %501 = arith.mulf %496, %500 : vector<2x64xf32>
    %c2_219 = arith.constant 2 : index
    %c0_220 = arith.constant 0 : index
    %c0_221 = arith.constant 0 : index
    %502 = vector.load %arg14[%c2_219, %c0_220, %c0_221] : memref<8x2x512xf32, #tpu.memory_space<vmem>>, vector<1x2x256xf32>
    %503 = vector.shape_cast %502 : vector<1x2x256xf32> to vector<2x256xf32>
    %cst_222 = arith.constant dense<0.000000e+00> : vector<2x256xf32>
    %504 = tpu.matmul %501, %4, %cst_222 {dimension_numbers = #tpu.dot_dimension_numbers<[1], [0], [0], [1], [0, 0, 1, 1], [], []>} : vector<2x64xf32>, vector<64x256xf32>, vector<2x256xf32> -> vector<2x256xf32>
    %505 = arith.addf %503, %504 : vector<2x256xf32>
    %506 = vector.extract_strided_slice %505 {offsets = [0, 0], sizes = [2, 192], strides = [1, 1]} : vector<2x256xf32> to vector<2x192xf32>
    %507 = arith.negf %506 : vector<2x192xf32>
    %508 = math.exp %507 : vector<2x192xf32>
    %cst_223 = arith.constant 1.000000e+00 : f32
    %509 = vector.broadcast %cst_223 : f32 to vector<2x192xf32>
    %510 = arith.addf %509, %508 : vector<2x192xf32>
    %511 = arith.divf %509, %510 : vector<2x192xf32>
    %512 = vector.extract_strided_slice %505 {offsets = [0, 192], sizes = [2, 64], strides = [1, 1]} : vector<2x256xf32> to vector<2x64xf32>
    %513 = math.tanh %512 : vector<2x64xf32>
    %514 = vector.extract_strided_slice %511 {offsets = [0, 0], sizes = [2, 64], strides = [1, 1]} : vector<2x192xf32> to vector<2x64xf32>
    %515 = vector.extract_strided_slice %511 {offsets = [0, 64], sizes = [2, 64], strides = [1, 1]} : vector<2x192xf32> to vector<2x64xf32>
    %516 = vector.extract_strided_slice %511 {offsets = [0, 128], sizes = [2, 64], strides = [1, 1]} : vector<2x192xf32> to vector<2x64xf32>
    %517 = arith.mulf %515, %499 : vector<2x64xf32>
    %518 = arith.mulf %514, %513 : vector<2x64xf32>
    %519 = arith.addf %517, %518 : vector<2x64xf32>
    %520 = math.tanh %519 : vector<2x64xf32>
    %521 = arith.mulf %516, %520 : vector<2x64xf32>
    %c3_224 = arith.constant 3 : index
    %c0_225 = arith.constant 0 : index
    %c0_226 = arith.constant 0 : index
    %522 = vector.load %arg14[%c3_224, %c0_225, %c0_226] : memref<8x2x512xf32, #tpu.memory_space<vmem>>, vector<1x2x256xf32>
    %523 = vector.shape_cast %522 : vector<1x2x256xf32> to vector<2x256xf32>
    %cst_227 = arith.constant dense<0.000000e+00> : vector<2x256xf32>
    %524 = tpu.matmul %521, %4, %cst_227 {dimension_numbers = #tpu.dot_dimension_numbers<[1], [0], [0], [1], [0, 0, 1, 1], [], []>} : vector<2x64xf32>, vector<64x256xf32>, vector<2x256xf32> -> vector<2x256xf32>
    %525 = arith.addf %523, %524 : vector<2x256xf32>
    %526 = vector.extract_strided_slice %525 {offsets = [0, 0], sizes = [2, 192], strides = [1, 1]} : vector<2x256xf32> to vector<2x192xf32>
    %527 = arith.negf %526 : vector<2x192xf32>
    %528 = math.exp %527 : vector<2x192xf32>
    %cst_228 = arith.constant 1.000000e+00 : f32
    %529 = vector.broadcast %cst_228 : f32 to vector<2x192xf32>
    %530 = arith.addf %529, %528 : vector<2x192xf32>
    %531 = arith.divf %529, %530 : vector<2x192xf32>
    %532 = vector.extract_strided_slice %525 {offsets = [0, 192], sizes = [2, 64], strides = [1, 1]} : vector<2x256xf32> to vector<2x64xf32>
    %533 = math.tanh %532 : vector<2x64xf32>
    %534 = vector.extract_strided_slice %531 {offsets = [0, 0], sizes = [2, 64], strides = [1, 1]} : vector<2x192xf32> to vector<2x64xf32>
    %535 = vector.extract_strided_slice %531 {offsets = [0, 64], sizes = [2, 64], strides = [1, 1]} : vector<2x192xf32> to vector<2x64xf32>
    %536 = vector.extract_strided_slice %531 {offsets = [0, 128], sizes = [2, 64], strides = [1, 1]} : vector<2x192xf32> to vector<2x64xf32>
    %537 = arith.mulf %535, %519 : vector<2x64xf32>
    %538 = arith.mulf %534, %533 : vector<2x64xf32>
    %539 = arith.addf %537, %538 : vector<2x64xf32>
    %540 = math.tanh %539 : vector<2x64xf32>
    %541 = arith.mulf %536, %540 : vector<2x64xf32>
    %c4_229 = arith.constant 4 : index
    %c0_230 = arith.constant 0 : index
    %c0_231 = arith.constant 0 : index
    %542 = vector.load %arg14[%c4_229, %c0_230, %c0_231] : memref<8x2x512xf32, #tpu.memory_space<vmem>>, vector<1x2x256xf32>
    %543 = vector.shape_cast %542 : vector<1x2x256xf32> to vector<2x256xf32>
    %cst_232 = arith.constant dense<0.000000e+00> : vector<2x256xf32>
    %544 = tpu.matmul %541, %4, %cst_232 {dimension_numbers = #tpu.dot_dimension_numbers<[1], [0], [0], [1], [0, 0, 1, 1], [], []>} : vector<2x64xf32>, vector<64x256xf32>, vector<2x256xf32> -> vector<2x256xf32>
    %545 = arith.addf %543, %544 : vector<2x256xf32>
    %546 = vector.extract_strided_slice %545 {offsets = [0, 0], sizes = [2, 192], strides = [1, 1]} : vector<2x256xf32> to vector<2x192xf32>
    %547 = arith.negf %546 : vector<2x192xf32>
    %548 = math.exp %547 : vector<2x192xf32>
    %cst_233 = arith.constant 1.000000e+00 : f32
    %549 = vector.broadcast %cst_233 : f32 to vector<2x192xf32>
    %550 = arith.addf %549, %548 : vector<2x192xf32>
    %551 = arith.divf %549, %550 : vector<2x192xf32>
    %552 = vector.extract_strided_slice %545 {offsets = [0, 192], sizes = [2, 64], strides = [1, 1]} : vector<2x256xf32> to vector<2x64xf32>
    %553 = math.tanh %552 : vector<2x64xf32>
    %554 = vector.extract_strided_slice %551 {offsets = [0, 0], sizes = [2, 64], strides = [1, 1]} : vector<2x192xf32> to vector<2x64xf32>
    %555 = vector.extract_strided_slice %551 {offsets = [0, 64], sizes = [2, 64], strides = [1, 1]} : vector<2x192xf32> to vector<2x64xf32>
    %556 = vector.extract_strided_slice %551 {offsets = [0, 128], sizes = [2, 64], strides = [1, 1]} : vector<2x192xf32> to vector<2x64xf32>
    %557 = arith.mulf %555, %539 : vector<2x64xf32>
    %558 = arith.mulf %554, %553 : vector<2x64xf32>
    %559 = arith.addf %557, %558 : vector<2x64xf32>
    %560 = math.tanh %559 : vector<2x64xf32>
    %561 = arith.mulf %556, %560 : vector<2x64xf32>
    %c5_234 = arith.constant 5 : index
    %c0_235 = arith.constant 0 : index
    %c0_236 = arith.constant 0 : index
    %562 = vector.load %arg14[%c5_234, %c0_235, %c0_236] : memref<8x2x512xf32, #tpu.memory_space<vmem>>, vector<1x2x256xf32>
    %563 = vector.shape_cast %562 : vector<1x2x256xf32> to vector<2x256xf32>
    %cst_237 = arith.constant dense<0.000000e+00> : vector<2x256xf32>
    %564 = tpu.matmul %561, %4, %cst_237 {dimension_numbers = #tpu.dot_dimension_numbers<[1], [0], [0], [1], [0, 0, 1, 1], [], []>} : vector<2x64xf32>, vector<64x256xf32>, vector<2x256xf32> -> vector<2x256xf32>
    %565 = arith.addf %563, %564 : vector<2x256xf32>
    %566 = vector.extract_strided_slice %565 {offsets = [0, 0], sizes = [2, 192], strides = [1, 1]} : vector<2x256xf32> to vector<2x192xf32>
    %567 = arith.negf %566 : vector<2x192xf32>
    %568 = math.exp %567 : vector<2x192xf32>
    %cst_238 = arith.constant 1.000000e+00 : f32
    %569 = vector.broadcast %cst_238 : f32 to vector<2x192xf32>
    %570 = arith.addf %569, %568 : vector<2x192xf32>
    %571 = arith.divf %569, %570 : vector<2x192xf32>
    %572 = vector.extract_strided_slice %565 {offsets = [0, 192], sizes = [2, 64], strides = [1, 1]} : vector<2x256xf32> to vector<2x64xf32>
    %573 = math.tanh %572 : vector<2x64xf32>
    %574 = vector.extract_strided_slice %571 {offsets = [0, 0], sizes = [2, 64], strides = [1, 1]} : vector<2x192xf32> to vector<2x64xf32>
    %575 = vector.extract_strided_slice %571 {offsets = [0, 64], sizes = [2, 64], strides = [1, 1]} : vector<2x192xf32> to vector<2x64xf32>
    %576 = vector.extract_strided_slice %571 {offsets = [0, 128], sizes = [2, 64], strides = [1, 1]} : vector<2x192xf32> to vector<2x64xf32>
    %577 = arith.mulf %575, %559 : vector<2x64xf32>
    %578 = arith.mulf %574, %573 : vector<2x64xf32>
    %579 = arith.addf %577, %578 : vector<2x64xf32>
    %580 = math.tanh %579 : vector<2x64xf32>
    %581 = arith.mulf %576, %580 : vector<2x64xf32>
    %c6_239 = arith.constant 6 : index
    %c0_240 = arith.constant 0 : index
    %c0_241 = arith.constant 0 : index
    %582 = vector.load %arg14[%c6_239, %c0_240, %c0_241] : memref<8x2x512xf32, #tpu.memory_space<vmem>>, vector<1x2x256xf32>
    %583 = vector.shape_cast %582 : vector<1x2x256xf32> to vector<2x256xf32>
    %cst_242 = arith.constant dense<0.000000e+00> : vector<2x256xf32>
    %584 = tpu.matmul %581, %4, %cst_242 {dimension_numbers = #tpu.dot_dimension_numbers<[1], [0], [0], [1], [0, 0, 1, 1], [], []>} : vector<2x64xf32>, vector<64x256xf32>, vector<2x256xf32> -> vector<2x256xf32>
    %585 = arith.addf %583, %584 : vector<2x256xf32>
    %586 = vector.extract_strided_slice %585 {offsets = [0, 0], sizes = [2, 192], strides = [1, 1]} : vector<2x256xf32> to vector<2x192xf32>
    %587 = arith.negf %586 : vector<2x192xf32>
    %588 = math.exp %587 : vector<2x192xf32>
    %cst_243 = arith.constant 1.000000e+00 : f32
    %589 = vector.broadcast %cst_243 : f32 to vector<2x192xf32>
    %590 = arith.addf %589, %588 : vector<2x192xf32>
    %591 = arith.divf %589, %590 : vector<2x192xf32>
    %592 = vector.extract_strided_slice %585 {offsets = [0, 192], sizes = [2, 64], strides = [1, 1]} : vector<2x256xf32> to vector<2x64xf32>
    %593 = math.tanh %592 : vector<2x64xf32>
    %594 = vector.extract_strided_slice %591 {offsets = [0, 0], sizes = [2, 64], strides = [1, 1]} : vector<2x192xf32> to vector<2x64xf32>
    %595 = vector.extract_strided_slice %591 {offsets = [0, 64], sizes = [2, 64], strides = [1, 1]} : vector<2x192xf32> to vector<2x64xf32>
    %596 = vector.extract_strided_slice %591 {offsets = [0, 128], sizes = [2, 64], strides = [1, 1]} : vector<2x192xf32> to vector<2x64xf32>
    %597 = arith.mulf %595, %579 : vector<2x64xf32>
    %598 = arith.mulf %594, %593 : vector<2x64xf32>
    %599 = arith.addf %597, %598 : vector<2x64xf32>
    %600 = math.tanh %599 : vector<2x64xf32>
    %601 = arith.mulf %596, %600 : vector<2x64xf32>
    %c7_244 = arith.constant 7 : index
    %c0_245 = arith.constant 0 : index
    %c0_246 = arith.constant 0 : index
    %602 = vector.load %arg14[%c7_244, %c0_245, %c0_246] : memref<8x2x512xf32, #tpu.memory_space<vmem>>, vector<1x2x256xf32>
    %603 = vector.shape_cast %602 : vector<1x2x256xf32> to vector<2x256xf32>
    %cst_247 = arith.constant dense<0.000000e+00> : vector<2x256xf32>
    %604 = tpu.matmul %601, %4, %cst_247 {dimension_numbers = #tpu.dot_dimension_numbers<[1], [0], [0], [1], [0, 0, 1, 1], [], []>} : vector<2x64xf32>, vector<64x256xf32>, vector<2x256xf32> -> vector<2x256xf32>
    %605 = arith.addf %603, %604 : vector<2x256xf32>
    %606 = vector.extract_strided_slice %605 {offsets = [0, 0], sizes = [2, 192], strides = [1, 1]} : vector<2x256xf32> to vector<2x192xf32>
    %607 = arith.negf %606 : vector<2x192xf32>
    %608 = math.exp %607 : vector<2x192xf32>
    %cst_248 = arith.constant 1.000000e+00 : f32
    %609 = vector.broadcast %cst_248 : f32 to vector<2x192xf32>
    %610 = arith.addf %609, %608 : vector<2x192xf32>
    %611 = arith.divf %609, %610 : vector<2x192xf32>
    %612 = vector.extract_strided_slice %605 {offsets = [0, 192], sizes = [2, 64], strides = [1, 1]} : vector<2x256xf32> to vector<2x64xf32>
    %613 = math.tanh %612 : vector<2x64xf32>
    %614 = vector.extract_strided_slice %611 {offsets = [0, 0], sizes = [2, 64], strides = [1, 1]} : vector<2x192xf32> to vector<2x64xf32>
    %615 = vector.extract_strided_slice %611 {offsets = [0, 64], sizes = [2, 64], strides = [1, 1]} : vector<2x192xf32> to vector<2x64xf32>
    %616 = vector.extract_strided_slice %611 {offsets = [0, 128], sizes = [2, 64], strides = [1, 1]} : vector<2x192xf32> to vector<2x64xf32>
    %617 = arith.mulf %615, %599 : vector<2x64xf32>
    %618 = arith.mulf %614, %613 : vector<2x64xf32>
    %619 = arith.addf %617, %618 : vector<2x64xf32>
    %620 = math.tanh %619 : vector<2x64xf32>
    %621 = arith.mulf %616, %620 : vector<2x64xf32>
    %c7_249 = arith.constant 7 : index
    %c0_250 = arith.constant 0 : index
    %c256_251 = arith.constant 256 : index
    %622 = vector.load %arg14[%c7_249, %c0_250, %c256_251] : memref<8x2x512xf32, #tpu.memory_space<vmem>>, vector<1x2x256xf32>
    %623 = vector.shape_cast %622 : vector<1x2x256xf32> to vector<2x256xf32>
    %624 = vector.extract_strided_slice %623 {offsets = [0, 0], sizes = [2, 192], strides = [1, 1]} : vector<2x256xf32> to vector<2x192xf32>
    %625 = arith.negf %624 : vector<2x192xf32>
    %626 = math.exp %625 : vector<2x192xf32>
    %cst_252 = arith.constant 1.000000e+00 : f32
    %627 = vector.broadcast %cst_252 : f32 to vector<2x192xf32>
    %628 = arith.addf %627, %626 : vector<2x192xf32>
    %629 = arith.divf %627, %628 : vector<2x192xf32>
    %630 = vector.extract_strided_slice %623 {offsets = [0, 192], sizes = [2, 64], strides = [1, 1]} : vector<2x256xf32> to vector<2x64xf32>
    %631 = math.tanh %630 : vector<2x64xf32>
    %632 = vector.extract_strided_slice %629 {offsets = [0, 0], sizes = [2, 64], strides = [1, 1]} : vector<2x192xf32> to vector<2x64xf32>
    %633 = vector.extract_strided_slice %629 {offsets = [0, 64], sizes = [2, 64], strides = [1, 1]} : vector<2x192xf32> to vector<2x64xf32>
    %634 = vector.extract_strided_slice %629 {offsets = [0, 128], sizes = [2, 64], strides = [1, 1]} : vector<2x192xf32> to vector<2x64xf32>
    %635 = arith.mulf %633, %5 : vector<2x64xf32>
    %636 = arith.mulf %632, %631 : vector<2x64xf32>
    %637 = arith.addf %635, %636 : vector<2x64xf32>
    %638 = math.tanh %637 : vector<2x64xf32>
    %639 = arith.mulf %634, %638 : vector<2x64xf32>
    %640 = tpu.concatenate %621, %639 in 1 : vector<2x64xf32>, vector<2x64xf32> -> vector<2x128xf32>
    %c0_253 = arith.constant 0 : index
    %c0_254 = arith.constant 0 : index
    %641 = vector.load %arg7[%c0_253, %c0_254] : memref<128x32xf32, #tpu.memory_space<vmem>>, vector<128x32xf32>
    %cst_255 = arith.constant dense<0.000000e+00> : vector<2x32xf32>
    %642 = tpu.matmul %640, %641, %cst_255 {dimension_numbers = #tpu.dot_dimension_numbers<[1], [0], [0], [1], [0, 0, 1, 1], [], []>} : vector<2x128xf32>, vector<128x32xf32>, vector<2x32xf32> -> vector<2x32xf32>
    %c0_256 = arith.constant 0 : index
    %c0_257 = arith.constant 0 : index
    %643 = vector.load %arg8[%c0_256, %c0_257] : memref<1x32xf32, #tpu.memory_space<vmem>>, vector<1x32xf32>
    %644 = vector.broadcast %643 : vector<1x32xf32> to vector<2x32xf32>
    %645 = arith.addf %642, %644 : vector<2x32xf32>
    %cst_258 = arith.constant 0.000000e+00 : f32
    %646 = vector.broadcast %cst_258 : f32 to vector<2x32xf32>
    %647 = arith.maximumf %645, %646 : vector<2x32xf32>
    %c0_259 = arith.constant 0 : index
    %c0_260 = arith.constant 0 : index
    %648 = vector.load %arg9[%c0_259, %c0_260] : memref<32x1xf32, #tpu.memory_space<vmem>>, vector<32x1xf32>
    %cst_261 = arith.constant dense<0.000000e+00> : vector<2x1xf32>
    %649 = tpu.matmul %647, %648, %cst_261 {dimension_numbers = #tpu.dot_dimension_numbers<[1], [0], [0], [1], [0, 0, 1, 1], [], []>} : vector<2x32xf32>, vector<32x1xf32>, vector<2x1xf32> -> vector<2x1xf32>
    %c0_262 = arith.constant 0 : index
    %c0_263 = arith.constant 0 : index
    %650 = vector.load %arg10[%c0_262, %c0_263] : memref<1x1xf32, #tpu.memory_space<vmem>>, vector<1x1xf32>
    %651 = vector.broadcast %650 : vector<1x1xf32> to vector<2x1xf32>
    %652 = arith.addf %649, %651 : vector<2x1xf32>
    %653 = arith.negf %652 : vector<2x1xf32>
    %654 = math.exp %653 : vector<2x1xf32>
    %cst_264 = arith.constant 1.000000e+00 : f32
    %655 = vector.broadcast %cst_264 : f32 to vector<2x1xf32>
    %656 = arith.addf %655, %654 : vector<2x1xf32>
    %657 = arith.divf %655, %656 : vector<2x1xf32>
    %c0_265 = arith.constant 0 : index
    %c0_266 = arith.constant 0 : index
    %658 = vector.load %arg11[%c0_265, %c0_266] : memref<2x1xf32, #tpu.memory_space<vmem>>, vector<2x1xf32>
    tpu.vector_store %arg11[%c0_265, %c0_266], %657 {strides = array<i32>} : memref<2x1xf32, #tpu.memory_space<vmem>>, vector<2x1xf32>,
    return
  }
  func.func @transform_0(%arg0: i32) -> (i32, i32, i32) {
    %c0_i32 = arith.constant 0 : i32
    %c0_i32_0 = arith.constant 0 : i32
    %c0_i32_1 = arith.constant 0 : i32
    %c0_i32_2 = arith.constant 0 : i32
    return %c0_i32, %c0_i32_0, %c0_i32_1 : i32, i32, i32
  }
  func.func @transform_1(%arg0: i32) -> (i32, i32) {
    %c0_i32 = arith.constant 0 : i32
    %c0_i32_0 = arith.constant 0 : i32
    %c0_i32_1 = arith.constant 0 : i32
    return %c0_i32, %c0_i32_0 : i32, i32
  }
  func.func @transform_2(%arg0: i32) -> (i32, i32) {
    %c0_i32 = arith.constant 0 : i32
    %c0_i32_0 = arith.constant 0 : i32
    %c0_i32_1 = arith.constant 0 : i32
    return %c0_i32, %c0_i32_0 : i32, i32
  }
  func.func @transform_3(%arg0: i32) -> (i32, i32) {
    %c0_i32 = arith.constant 0 : i32
    %c0_i32_0 = arith.constant 0 : i32
    %c0_i32_1 = arith.constant 0 : i32
    return %c0_i32, %c0_i32_0 : i32, i32
  }
  func.func @transform_4(%arg0: i32) -> (i32, i32) {
    %c0_i32 = arith.constant 0 : i32
    %c0_i32_0 = arith.constant 0 : i32
    %c0_i32_1 = arith.constant 0 : i32
    return %c0_i32, %c0_i32_0 : i32, i32
  }
  func.func @transform_5(%arg0: i32) -> (i32, i32) {
    %c0_i32 = arith.constant 0 : i32
    %c0_i32_0 = arith.constant 0 : i32
    %c0_i32_1 = arith.constant 0 : i32
    return %c0_i32, %c0_i32_0 : i32, i32
  }
  func.func @transform_6(%arg0: i32) -> (i32, i32) {
    %c0_i32 = arith.constant 0 : i32
    %c0_i32_0 = arith.constant 0 : i32
    %c0_i32_1 = arith.constant 0 : i32
    return %c0_i32, %c0_i32_0 : i32, i32
  }
  func.func @transform_7(%arg0: i32) -> (i32, i32) {
    %c0_i32 = arith.constant 0 : i32
    %c0_i32_0 = arith.constant 0 : i32
    %c0_i32_1 = arith.constant 0 : i32
    return %c0_i32, %c0_i32_0 : i32, i32
  }
  func.func @transform_8(%arg0: i32) -> (i32, i32) {
    %c0_i32 = arith.constant 0 : i32
    %c0_i32_0 = arith.constant 0 : i32
    %c0_i32_1 = arith.constant 0 : i32
    return %c0_i32, %c0_i32_0 : i32, i32
  }
  func.func @transform_9(%arg0: i32) -> (i32, i32) {
    %c0_i32 = arith.constant 0 : i32
    %c0_i32_0 = arith.constant 0 : i32
    %c0_i32_1 = arith.constant 0 : i32
    return %c0_i32, %c0_i32_0 : i32, i32
  }
  func.func @transform_10(%arg0: i32) -> (i32, i32) {
    %c0_i32 = arith.constant 0 : i32
    %c0_i32_0 = arith.constant 0 : i32
    %c0_i32_1 = arith.constant 0 : i32
    return %c0_i32, %c0_i32_0 : i32, i32
  }
}

</mosaic_0001>

<llo_original>
// kernel: lstm_classifier_forward.1
$region0: #{lstm_classifier_forward.1}
  #allocation0 [shape = 'u32[]', space=smem, size = 0x4, offset = 0x4, fixed_abs, tag = 'smem constant byte address 0x4 - core index']
  #allocation1 [shape = 'u32[144,128]{1,0:T(1,128)}', space=vmem, size = 0x12000, scoped, tag = 'internal scratch']
  #allocation2 [shape = 'f32[8,2,64]{2,1,0:T(2,128)}', space=vmem, size = 0x2000, scoped, tag = 'scratch operand']
  #allocation3 [shape = 'f32[8,2,64]{2,1,0:T(2,128)}', space=vmem, size = 0x2000, scoped, tag = 'scratch operand']
  #allocation4 [shape = 'f32[8,2,512]{2,1,0:T(2,128)}', space=vmem, size = 0x8000, scoped, tag = 'scratch operand']
  #allocation5 [shape = 'f32[1,1]{1,0:T(1,128)S(1)}', space=vmem, size = 0x200, scoped, tag = 'scoped memory for lstm_classifier_forward.1']
  %s0 = inlined_call_operand.vmem [shape: f32[8,2,512], index: 0, kind: input, shape index: {}]
  %s1 = inlined_call_operand.vmem [shape: f32[64,256], index: 1, kind: input, shape index: {}]
  %s2 = inlined_call_operand.vmem [shape: f32[64,256], index: 2, kind: input, shape index: {}]
  %s3 = inlined_call_operand.hbm [shape: f32[128,512], index: 3, kind: input, shape index: {}]
  %s4 = inlined_call_operand.vmem [shape: f32[1,512], index: 4, kind: input, shape index: {}]
  %s5 = inlined_call_operand.vmem [shape: f32[64,256], index: 5, kind: input, shape index: {}]
  %s6 = inlined_call_operand.vmem [shape: f32[128,32], index: 6, kind: input, shape index: {}]
  %s7 = inlined_call_operand.vmem [shape: f32[1,32], index: 7, kind: input, shape index: {}]
  %s8 = inlined_call_operand.vmem [shape: f32[32,1], index: 8, kind: input, shape index: {}]
  %s9 = inlined_call_operand.<no memory space> [shape: f32[1,1], index: 9, kind: input, shape index: {}]
  %s10 = inlined_call_operand.vmem [shape: f32[2,1], index: 10, kind: output, shape index: {}]
  %s11 = sld [smem:[#allocation0]]
  $region54: #{lstm_classifier_forward.1} parent=0
    _
  %s13 = ssub.s32 1, %s11
  %s14 = scalar_select 0, %s13, %s11
  %v15 = vstv %s9
  %16 = vst [vmem:[#allocation5] sm:$0x1] %v15
  $region1: #{lstm_classifier_forward.1} parent=0
    #allocation6 [shape = 'u8[262144]{0}', space=vmem, size = 0x40000, scoped, tag = 'input window, operand 3, single buffered']
    #allocation7 [shape = 's32[1]{0}', space=sflag, size = 0x4, scoped, tag = 'scoped memory for lstm_classifier_forward.1']
    %17 = vsyncpa [#allocation7], 0
    // Predicated region
    $region2: #{lstm_classifier_forward.1} parent=1 // pred_check
      _
    $region3: #{lstm_classifier_forward.1} parent=1 // pred_check_branch
      %19 = sbr.rel (0) target = $region5
    $region4: #{lstm_classifier_forward.1} parent=1 // pred_region
      _
    $region5: #{lstm_classifier_forward.1} parent=1 // pred_fallthru
      _
    // Predicated region
    $region6: #{lstm_classifier_forward.1} parent=1 // pred_check
      _
    $region7: #{lstm_classifier_forward.1} parent=1 // pred_check_branch
      %21 = sbr.rel (0) target = $region9
    $region8: #{lstm_classifier_forward.1} parent=1 // pred_region
      _
    $region9: #{lstm_classifier_forward.1} parent=1 // pred_fallthru
      _
    // Predicated region
    $region10: #{lstm_classifier_forward.1} parent=1 // pred_check
      _
    $region11: #{lstm_classifier_forward.1} parent=1 // pred_check_branch
      %23 = sbr.rel (0) target = $region13
    $region12: #{lstm_classifier_forward.1} parent=1 // pred_region
      _
    $region13: #{lstm_classifier_forward.1} parent=1 // pred_fallthru
      _
    // Predicated region
    $region14: #{lstm_classifier_forward.1} parent=1 // pred_check
      _
    $region15: #{lstm_classifier_forward.1} parent=1 // pred_check_branch
      %25 = sbr.rel (0) target = $region17
    $region16: #{lstm_classifier_forward.1} parent=1 // pred_region
      %s27 = ssub.s32 8192, 8192
      %28 = vsyncadd [#allocation7], %s27
      %s29 = sshll.u32 [#allocation6], 4
      %s30 = int_to_ptr.vmem [resolvable:$true] %s29
      %35 = dma.hbm_to_vmem [thread:$0]  %s3, 8192, %s30, [#allocation7], 512, 512, 32
    $region17: #{lstm_classifier_forward.1} parent=1 // pred_fallthru
      _
    // Predicated region
    $region18: #{lstm_classifier_forward.1} parent=1 // pred_check
      _
    $region19: #{lstm_classifier_forward.1} parent=1 // pred_check_branch
      %37 = sbr.rel (0) target = $region21
    $region20: #{lstm_classifier_forward.1} parent=1 // pred_region
      _
    $region21: #{lstm_classifier_forward.1} parent=1 // pred_fallthru
      _
    // Predicated region
    $region22: #{lstm_classifier_forward.1} parent=1 // pred_check
      _
    $region23: #{lstm_classifier_forward.1} parent=1 // pred_check_branch
      %39 = sbr.rel (0) target = $region25
    $region24: #{lstm_classifier_forward.1} parent=1 // pred_region
      _
    $region25: #{lstm_classifier_forward.1} parent=1 // pred_fallthru
      _
    // Predicated region
    $region26: #{lstm_classifier_forward.1} parent=1 // pred_check
      _
    $region27: #{lstm_classifier_forward.1} parent=1 // pred_check_branch
      %41 = sbr.rel (0) target = $region29
    $region28: #{lstm_classifier_forward.1} parent=1 // pred_region
      _
    $region29: #{lstm_classifier_forward.1} parent=1 // pred_fallthru
      _
    // Predicated region
    $region30: #{lstm_classifier_forward.1} parent=1 // pred_check
      _
    $region31: #{lstm_classifier_forward.1} parent=1 // pred_check_branch
      %43 = sbr.rel (0) target = $region33
    $region32: #{lstm_classifier_forward.1} parent=1 // pred_region
      _
    $region33: #{lstm_classifier_forward.1} parent=1 // pred_fallthru
      _
    // Predicated region
    $region34: #{lstm_classifier_forward.1} parent=1 // pred_check
      _
    $region35: #{lstm_classifier_forward.1} parent=1 // pred_check_branch
      %45 = sbr.rel (0) target = $region37
    $region36: #{lstm_classifier_forward.1} parent=1 // pred_region
      _
    $region37: #{lstm_classifier_forward.1} parent=1 // pred_fallthru
      _
    // Predicated region
    $region38: #{lstm_classifier_forward.1} parent=1 // pred_check
      _
    $region39: #{lstm_classifier_forward.1} parent=1 // pred_check_branch
      %47 = sbr.rel (0) target = $region41
    $region40: #{lstm_classifier_forward.1} parent=1 // pred_region
      _
    $region41: #{lstm_classifier_forward.1} parent=1 // pred_fallthru
      _
    // Predicated region
    $region42: #{lstm_classifier_forward.1} parent=1 // pred_check
      _
    $region43: #{lstm_classifier_forward.1} parent=1 // pred_check_branch
      %49 = sbr.rel (0) target = $region45
    $region44: #{lstm_classifier_forward.1} parent=1 // pred_region
      %50 = dma.done [#allocation7], 8192
    $region45: #{lstm_classifier_forward.1} parent=1 // pred_fallthru
      _
    %v51 = vld [vmem:[%s1] sm:$0xff]
    %v52 = vld [vmem:[%s1 + $0x8] sm:$0xff]
    %v53 = vld [vmem:[%s1 + $0x10] sm:$0xff]
    %v54 = vld [vmem:[%s1 + $0x18] sm:$0xff]
    %v55 = vld [vmem:[%s1 + $0x20] sm:$0xff]
    %v56 = vld [vmem:[%s1 + $0x28] sm:$0xff]
    %v57 = vld [vmem:[%s1 + $0x30] sm:$0xff]
    %v58 = vld [vmem:[%s1 + $0x38] sm:$0xff]
    %v59 = vld [vmem:[%s1 + $0x40] sm:$0xff]
    %v60 = vld [vmem:[%s1 + $0x48] sm:$0xff]
    %v61 = vld [vmem:[%s1 + $0x50] sm:$0xff]
    %v62 = vld [vmem:[%s1 + $0x58] sm:$0xff]
    %v63 = vld [vmem:[%s1 + $0x60] sm:$0xff]
    %v64 = vld [vmem:[%s1 + $0x68] sm:$0xff]
    %v65 = vld [vmem:[%s1 + $0x70] sm:$0xff]
    %v66 = vld [vmem:[%s1 + $0x78] sm:$0xff]
    %v67 = vld [vmem:[%s2] sm:$0xff]
    %v68 = vld [vmem:[%s2 + $0x8] sm:$0xff]
    %v69 = vld [vmem:[%s2 + $0x10] sm:$0xff]
    %v70 = vld [vmem:[%s2 + $0x18] sm:$0xff]
    %v71 = vld [vmem:[%s2 + $0x20] sm:$0xff]
    %v72 = vld [vmem:[%s2 + $0x28] sm:$0xff]
    %v73 = vld [vmem:[%s2 + $0x30] sm:$0xff]
    %v74 = vld [vmem:[%s2 + $0x38] sm:$0xff]
    %v75 = vld [vmem:[%s2 + $0x40] sm:$0xff]
    %v76 = vld [vmem:[%s2 + $0x48] sm:$0xff]
    %v77 = vld [vmem:[%s2 + $0x50] sm:$0xff]
    %v78 = vld [vmem:[%s2 + $0x58] sm:$0xff]
    %v79 = vld [vmem:[%s2 + $0x60] sm:$0xff]
    %v80 = vld [vmem:[%s2 + $0x68] sm:$0xff]
    %v81 = vld [vmem:[%s2 + $0x70] sm:$0xff]
    %v82 = vld [vmem:[%s2 + $0x78] sm:$0xff]
    %v83 = vld [vmem:[#allocation6] sm:$0xff]
    %v84 = vld [vmem:[#allocation6 + $0x8] sm:$0xff]
    %v85 = vld [vmem:[#allocation6 + $0x10] sm:$0xff]
    %v86 = vld [vmem:[#allocation6 + $0x18] sm:$0xff]
    %v87 = vld [vmem:[#allocation6 + $0x20] sm:$0xff]
    %v88 = vld [vmem:[#allocation6 + $0x28] sm:$0xff]
    %v89 = vld [vmem:[#allocation6 + $0x30] sm:$0xff]
    %v90 = vld [vmem:[#allocation6 + $0x38] sm:$0xff]
    %v91 = vld [vmem:[#allocation6 + $0x40] sm:$0xff]
    %v92 = vld [vmem:[#allocation6 + $0x48] sm:$0xff]
    %v93 = vld [vmem:[#allocation6 + $0x50] sm:$0xff]
    %v94 = vld [vmem:[#allocation6 + $0x58] sm:$0xff]
    %v95 = vld [vmem:[#allocation6 + $0x60] sm:$0xff]
    %v96 = vld [vmem:[#allocation6 + $0x68] sm:$0xff]
    %v97 = vld [vmem:[#allocation6 + $0x70] sm:$0xff]
    %v98 = vld [vmem:[#allocation6 + $0x78] sm:$0xff]
    %v99 = vld [vmem:[#allocation6 + $0x80] sm:$0xff]
    %v100 = vld [vmem:[#allocation6 + $0x88] sm:$0xff]
    %v101 = vld [vmem:[#allocation6 + $0x90] sm:$0xff]
    %v102 = vld [vmem:[#allocation6 + $0x98] sm:$0xff]
    %v103 = vld [vmem:[#allocation6 + $0xa0] sm:$0xff]
    %v104 = vld [vmem:[#allocation6 + $0xa8] sm:$0xff]
    %v105 = vld [vmem:[#allocation6 + $0xb0] sm:$0xff]
    %v106 = vld [vmem:[#allocation6 + $0xb8] sm:$0xff]
    %v107 = vld [vmem:[#allocation6 + $0xc0] sm:$0xff]
    %v108 = vld [vmem:[#allocation6 + $0xc8] sm:$0xff]
    %v109 = vld [vmem:[#allocation6 + $0xd0] sm:$0xff]
    %v110 = vld [vmem:[#allocation6 + $0xd8] sm:$0xff]
    %v111 = vld [vmem:[#allocation6 + $0xe0] sm:$0xff]
    %v112 = vld [vmem:[#allocation6 + $0xe8] sm:$0xff]
    %v113 = vld [vmem:[#allocation6 + $0xf0] sm:$0xff]
    %v114 = vld [vmem:[#allocation6 + $0xf8] sm:$0xff]
    %v115 = vld [vmem:[#allocation6 + $0x100] sm:$0xff]
    %v116 = vld [vmem:[#allocation6 + $0x108] sm:$0xff]
    %v117 = vld [vmem:[#allocation6 + $0x110] sm:$0xff]
    %v118 = vld [vmem:[#allocation6 + $0x118] sm:$0xff]
    %v119 = vld [vmem:[#allocation6 + $0x120] sm:$0xff]
    %v120 = vld [vmem:[#allocation6 + $0x128] sm:$0xff]
    %v121 = vld [vmem:[#allocation6 + $0x130] sm:$0xff]
    %v122 = vld [vmem:[#allocation6 + $0x138] sm:$0xff]
    %v123 = vld [vmem:[#allocation6 + $0x140] sm:$0xff]
    %v124 = vld [vmem:[#allocation6 + $0x148] sm:$0xff]
    %v125 = vld [vmem:[#allocation6 + $0x150] sm:$0xff]
    %v126 = vld [vmem:[#allocation6 + $0x158] sm:$0xff]
    %v127 = vld [vmem:[#allocation6 + $0x160] sm:$0xff]
    %v128 = vld [vmem:[#allocation6 + $0x168] sm:$0xff]
    %v129 = vld [vmem:[#allocation6 + $0x170] sm:$0xff]
    %v130 = vld [vmem:[#allocation6 + $0x178] sm:$0xff]
    %v131 = vld [vmem:[#allocation6 + $0x180] sm:$0xff]
    %v132 = vld [vmem:[#allocation6 + $0x188] sm:$0xff]
    %v133 = vld [vmem:[#allocation6 + $0x190] sm:$0xff]
    %v134 = vld [vmem:[#allocation6 + $0x198] sm:$0xff]
    %v135 = vld [vmem:[#allocation6 + $0x1a0] sm:$0xff]
    %v136 = vld [vmem:[#allocation6 + $0x1a8] sm:$0xff]
    %v137 = vld [vmem:[#allocation6 + $0x1b0] sm:$0xff]
    %v138 = vld [vmem:[#allocation6 + $0x1b8] sm:$0xff]
    %v139 = vld [vmem:[#allocation6 + $0x1c0] sm:$0xff]
    %v140 = vld [vmem:[#allocation6 + $0x1c8] sm:$0xff]
    %v141 = vld [vmem:[#allocation6 + $0x1d0] sm:$0xff]
    %v142 = vld [vmem:[#allocation6 + $0x1d8] sm:$0xff]
    %v143 = vld [vmem:[#allocation6 + $0x1e0] sm:$0xff]
    %v144 = vld [vmem:[#allocation6 + $0x1e8] sm:$0xff]
    %v145 = vld [vmem:[#allocation6 + $0x1f0] sm:$0xff]
    %v146 = vld [vmem:[#allocation6 + $0x1f8] sm:$0xff]
    %v147 = vld [vmem:[%s4] sm:$0xf]
    %v148 = vld [vmem:[%s5] sm:$0xff]
    %v149 = vld [vmem:[%s5 + $0x8] sm:$0xff]
    %v150 = vld [vmem:[%s5 + $0x10] sm:$0xff]
    %v151 = vld [vmem:[%s5 + $0x18] sm:$0xff]
    %v152 = vld [vmem:[%s5 + $0x20] sm:$0xff]
    %v153 = vld [vmem:[%s5 + $0x28] sm:$0xff]
    %v154 = vld [vmem:[%s5 + $0x30] sm:$0xff]
    %v155 = vld [vmem:[%s5 + $0x38] sm:$0xff]
    %v156 = vld [vmem:[%s5 + $0x40] sm:$0xff]
    %v157 = vld [vmem:[%s5 + $0x48] sm:$0xff]
    %v158 = vld [vmem:[%s5 + $0x50] sm:$0xff]
    %v159 = vld [vmem:[%s5 + $0x58] sm:$0xff]
    %v160 = vld [vmem:[%s5 + $0x60] sm:$0xff]
    %v161 = vld [vmem:[%s5 + $0x68] sm:$0xff]
    %v162 = vld [vmem:[%s5 + $0x70] sm:$0xff]
    %v163 = vld [vmem:[%s5 + $0x78] sm:$0xff]
    %v164 = vld [vmem:[%s0] sm:$0xf]
    %vm165 = vcmask 523264
    %v167 = vsel %vm165, 0.0, 0
    %169 = vmatprep.subr.mxu0 %v52
    %170 = vmatpush1.msra.mxu0 %v51
    %171 = vmatprep.subr.mxu0 %v54
    %172 = vmatpush1.msra.mxu0 %v53
    %173 = vmatprep.subr.mxu0 %v56
    %174 = vmatpush1.msra.mxu0 %v55
    %175 = vmatprep.subr.mxu0 %v58
    %176 = vmatpush1.msra.mxu0 %v57
    %177 = vmatprep.subr.mxu0 %v60
    %178 = vmatpush1.msra.mxu0 %v59
    %179 = vmatprep.subr.mxu0 %v62
    %180 = vmatpush1.msra.mxu0 %v61
    %181 = vmatprep.subr.mxu0 %v64
    %182 = vmatpush1.msra.mxu0 %v63
    %183 = vmatprep.subr.mxu0 %v66
    %184 = vmatpush1.msra.mxu0 %v65
    %185 = vmatprep.subr.mxu0 0.0
    %186 = vmatpush1.msra.mxu0 0.0
    %187 = vmatprep.subr.mxu0 0.0
    %188 = vmatpush1.msra.mxu0 0.0
    %189 = vmatprep.subr.mxu0 0.0
    %190 = vmatpush1.msra.mxu0 0.0
    %191 = vmatprep.subr.mxu0 0.0
    %192 = vmatpush1.msra.mxu0 0.0
    %193 = vmatprep.subr.mxu0 0.0
    %194 = vmatpush1.msra.mxu0 0.0
    %195 = vmatprep.subr.mxu0 0.0
    %196 = vmatpush1.msra.mxu0 0.0
    %197 = vmatprep.subr.mxu0 0.0
    %198 = vmatpush1.msra.mxu0 0.0
    %199 = vmatprep.subr.mxu0 0.0
    %200 = vmatpush1.msra.mxu0 0.0
    %201 = vmatprep.subr.mxu0 0.0
    %202 = vmatpush1.msra.mxu0 0.0
    %203 = vmatprep.subr.mxu0 0.0
    %204 = vmatpush1.msra.mxu0 0.0
    %205 = vmatprep.subr.mxu0 0.0
    %206 = vmatpush1.msra.mxu0 0.0
    %207 = vmatprep.subr.mxu0 0.0
    %208 = vmatpush1.msra.mxu0 0.0
    %209 = vmatprep.subr.mxu0 0.0
    %210 = vmatpush1.msra.mxu0 0.0
    %211 = vmatprep.subr.mxu0 0.0
    %212 = vmatpush1.msra.mxu0 0.0
    %213 = vmatprep.subr.mxu0 0.0
    %214 = vmatpush1.msra.mxu0 0.0
    %215 = vmatprep.subr.mxu0 0.0
    %216 = vmatpush1.msra.mxu0 0.0
    %217 = vmatprep.subr.mxu0 0.0
    %218 = vmatpush1.msra.mxu0 0.0
    %219 = vmatprep.subr.mxu0 0.0
    %220 = vmatpush1.msra.mxu0 0.0
    %221 = vmatprep.subr.mxu0 0.0
    %222 = vmatpush1.msra.mxu0 0.0
    %223 = vmatprep.subr.mxu0 0.0
    %224 = vmatpush1.msra.mxu0 0.0
    %225 = vmatprep.subr.mxu0 0.0
    %226 = vmatpush1.msra.mxu0 0.0
    %227 = vmatprep.subr.mxu0 0.0
    %228 = vmatpush1.msra.mxu0 0.0
    %229 = vmatprep.subr.mxu0 0.0
    %230 = vmatpush1.msra.mxu0 0.0
    %231 = vmatprep.subr.mxu0 0.0
    %232 = vmatpush1.msra.mxu0 0.0
    %233 = vmatprep.mubr.f32.mxu0 0.0
    %234 = vmatmul.mubr.f32.gmra.mrb[0].mxu0 %v167
    %v235 = vpop.f32.mrb[0].mxu0
    %v236 = vadd.f32 0.0, %v235
    %v237 = vpop.f32.mrb[0].mxu0
    %v238 = vadd.f32 0.0, %v237
    %239 = vdwg.mxu0
    %v242 = vcombine.low %v236, %v238
    %v244 = vunpack.c.l.s4 1983009808
    %v245 = vunpack.c.0.s8 %v244
    %v246 = vlaneseq
    %v247 = vshrl.u32 %v246, 7
    %v248 = vsub.s32 %v245, %v247
    %v249 = vrot.slane %v242, %v248
    %v251 = vadd.f32 %v164, %v249
    %v252 = vxor.u32 %v251, 2147483648
    %v253 = vmul.f32 %v252, 1.442695
    %v254 = vpow.pop %v253
    %v255 = vadd.f32 %v254, 1.0
    %v256 = vrcp.pop %v255
    %v257 = vmul.f32 1.0, %v256
    %259 = vrot.lane.b32.xlu0 %v251, 64
    %v260 = vpop.permute.xlu0 %259
    %v261 = vrot.slane %v260, 2
    %v263 = vtanh.pop %v261
    %v264 = vmul.f32 %v257, 0.0
    %v265 = vmul.f32 %v257, %v263
    %267 = vrot.lane.b32.xlu0 %v265, 64
    %v268 = vpop.permute.xlu0 %267
    %v270 = vadd.f32 %v264, %v268
    %v271 = vtanh.pop %v270
    %v273 = vrot.slane %v257, 2
    %276 = vrot.lane.b32.xlu0 %v271, 64
    %v277 = vpop.permute.xlu0 %276
    %v279 = vmul.f32 %v273, %v277
    %vm280 = vcmask 517120
    %281 = vst.msk [vmem:[#allocation2] sm:$0x3] %vm280, %v279
    %s282 = scalar_lea.vmem %s0, 8
    %v283 = vld [vmem:[%s282] sm:$0xf]
    %v285 = vsel %vm165, %v279, 0
    %287 = vmatprep.subr.mxu0 %v52
    %288 = vmatpush1.msra.mxu0 %v51
    %289 = vmatprep.subr.mxu0 %v54
    %290 = vmatpush1.msra.mxu0 %v53
    %291 = vmatprep.subr.mxu0 %v56
    %292 = vmatpush1.msra.mxu0 %v55
    %293 = vmatprep.subr.mxu0 %v58
    %294 = vmatpush1.msra.mxu0 %v57
    %295 = vmatprep.subr.mxu0 %v60
    %296 = vmatpush1.msra.mxu0 %v59
    %297 = vmatprep.subr.mxu0 %v62
    %298 = vmatpush1.msra.mxu0 %v61
    %299 = vmatprep.subr.mxu0 %v64
    %300 = vmatpush1.msra.mxu0 %v63
    %301 = vmatprep.subr.mxu0 %v66
    %302 = vmatpush1.msra.mxu0 %v65
    %303 = vmatprep.subr.mxu0 0.0
    %304 = vmatpush1.msra.mxu0 0.0
    %305 = vmatprep.subr.mxu0 0.0
    %306 = vmatpush1.msra.mxu0 0.0
    %307 = vmatprep.subr.mxu0 0.0
    %308 = vmatpush1.msra.mxu0 0.0
    %309 = vmatprep.subr.mxu0 0.0
    %310 = vmatpush1.msra.mxu0 0.0
    %311 = vmatprep.subr.mxu0 0.0
    %312 = vmatpush1.msra.mxu0 0.0
    %313 = vmatprep.subr.mxu0 0.0
    %314 = vmatpush1.msra.mxu0 0.0
    %315 = vmatprep.subr.mxu0 0.0
    %316 = vmatpush1.msra.mxu0 0.0
    %317 = vmatprep.subr.mxu0 0.0
    %318 = vmatpush1.msra.mxu0 0.0
    %319 = vmatprep.subr.mxu0 0.0
    %320 = vmatpush1.msra.mxu0 0.0
    %321 = vmatprep.subr.mxu0 0.0
    %322 = vmatpush1.msra.mxu0 0.0
    %323 = vmatprep.subr.mxu0 0.0
    %324 = vmatpush1.msra.mxu0 0.0
    %325 = vmatprep.subr.mxu0 0.0
    %326 = vmatpush1.msra.mxu0 0.0
    %327 = vmatprep.subr.mxu0 0.0
    %328 = vmatpush1.msra.mxu0 0.0
    %329 = vmatprep.subr.mxu0 0.0
    %330 = vmatpush1.msra.mxu0 0.0
    %331 = vmatprep.subr.mxu0 0.0
    %332 = vmatpush1.msra.mxu0 0.0
    %333 = vmatprep.subr.mxu0 0.0
    %334 = vmatpush1.msra.mxu0 0.0
    %335 = vmatprep.subr.mxu0 0.0
    %336 = vmatpush1.msra.mxu0 0.0
    %337 = vmatprep.subr.mxu0 0.0
    %338 = vmatpush1.msra.mxu0 0.0
    %339 = vmatprep.subr.mxu0 0.0
    %340 = vmatpush1.msra.mxu0 0.0
    %341 = vmatprep.subr.mxu0 0.0
    %342 = vmatpush1.msra.mxu0 0.0
    %343 = vmatprep.subr.mxu0 0.0
    %344 = vmatpush1.msra.mxu0 0.0
    %345 = vmatprep.subr.mxu0 0.0
    %346 = vmatpush1.msra.mxu0 0.0
    %347 = vmatprep.subr.mxu0 0.0
    %348 = vmatpush1.msra.mxu0 0.0
    %349 = vmatprep.subr.mxu0 0.0
    %350 = vmatpush1.msra.mxu0 0.0
    %351 = vmatprep.mubr.f32.mxu0 0.0
    %352 = vmatmul.mubr.f32.gmra.mrb[0].mxu0 %v285
    %v353 = vpop.f32.mrb[0].mxu0
    %v354 = vadd.f32 0.0, %v353
    %v355 = vpop.f32.mrb[0].mxu0
    %v356 = vadd.f32 0.0, %v355
    %357 = vdwg.mxu0
    %v360 = vcombine.low %v354, %v356
    %v362 = vunpack.c.l.s4 1983009808
    %v363 = vunpack.c.0.s8 %v362
    %v364 = vlaneseq
    %v365 = vshrl.u32 %v364, 7
    %v366 = vsub.s32 %v363, %v365
    %v367 = vrot.slane %v360, %v366
    %v369 = vadd.f32 %v283, %v367
    %v370 = vxor.u32 %v369, 2147483648
    %v371 = vmul.f32 %v370, 1.442695
    %v372 = vpow.pop %v371
    %v373 = vadd.f32 %v372, 1.0
    %v374 = vrcp.pop %v373
    %v375 = vmul.f32 1.0, %v374
    %377 = vrot.lane.b32.xlu0 %v369, 64
    %v378 = vpop.permute.xlu0 %377
    %v379 = vrot.slane %v378, 2
    %v381 = vtanh.pop %v379
    %v382 = vmul.f32 %v375, %v270
    %v383 = vmul.f32 %v375, %v381
    %385 = vrot.lane.b32.xlu0 %v383, 64
    %v386 = vpop.permute.xlu0 %385
    %v388 = vadd.f32 %v382, %v386
    %v389 = vtanh.pop %v388
    %v391 = vrot.slane %v375, 2
    %394 = vrot.lane.b32.xlu0 %v389, 64
    %v395 = vpop.permute.xlu0 %394
    %v397 = vmul.f32 %v391, %v395
    %s398 = scalar_lea.vmem [#allocation2], 2
    %399 = vst.msk [vmem:[%s398] sm:$0x3] %vm280, %v397
    %s400 = scalar_lea.vmem %s0, 16
    %v401 = vld [vmem:[%s400] sm:$0xf]
    %v403 = vsel %vm165, %v397, 0
    %405 = vmatprep.subr.mxu0 %v52
    %406 = vmatpush1.msra.mxu0 %v51
    %407 = vmatprep.subr.mxu0 %v54
    %408 = vmatpush1.msra.mxu0 %v53
    %409 = vmatprep.subr.mxu0 %v56
    %410 = vmatpush1.msra.mxu0 %v55
    %411 = vmatprep.subr.mxu0 %v58
    %412 = vmatpush1.msra.mxu0 %v57
    %413 = vmatprep.subr.mxu0 %v60
    %414 = vmatpush1.msra.mxu0 %v59
    %415 = vmatprep.subr.mxu0 %v62
    %416 = vmatpush1.msra.mxu0 %v61
    %417 = vmatprep.subr.mxu0 %v64
    %418 = vmatpush1.msra.mxu0 %v63
    %419 = vmatprep.subr.mxu0 %v66
    %420 = vmatpush1.msra.mxu0 %v65
    %421 = vmatprep.subr.mxu0 0.0
    %422 = vmatpush1.msra.mxu0 0.0
    %423 = vmatprep.subr.mxu0 0.0
    %424 = vmatpush1.msra.mxu0 0.0
    %425 = vmatprep.subr.mxu0 0.0
    %426 = vmatpush1.msra.mxu0 0.0
    %427 = vmatprep.subr.mxu0 0.0
    %428 = vmatpush1.msra.mxu0 0.0
    %429 = vmatprep.subr.mxu0 0.0
    %430 = vmatpush1.msra.mxu0 0.0
    %431 = vmatprep.subr.mxu0 0.0
    %432 = vmatpush1.msra.mxu0 0.0
    %433 = vmatprep.subr.mxu0 0.0
    %434 = vmatpush1.msra.mxu0 0.0
    %435 = vmatprep.subr.mxu0 0.0
    %436 = vmatpush1.msra.mxu0 0.0
    %437 = vmatprep.subr.mxu0 0.0
    %438 = vmatpush1.msra.mxu0 0.0
    %439 = vmatprep.subr.mxu0 0.0
    %440 = vmatpush1.msra.mxu0 0.0
    %441 = vmatprep.subr.mxu0 0.0
    %442 = vmatpush1.msra.mxu0 0.0
    %443 = vmatprep.subr.mxu0 0.0
    %444 = vmatpush1.msra.mxu0 0.0
    %445 = vmatprep.subr.mxu0 0.0
    %446 = vmatpush1.msra.mxu0 0.0
    %447 = vmatprep.subr.mxu0 0.0
    %448 = vmatpush1.msra.mxu0 0.0
    %449 = vmatprep.subr.mxu0 0.0
    %450 = vmatpush1.msra.mxu0 0.0
    %451 = vmatprep.subr.mxu0 0.0
    %452 = vmatpush1.msra.mxu0 0.0
    %453 = vmatprep.subr.mxu0 0.0
    %454 = vmatpush1.msra.mxu0 0.0
    %455 = vmatprep.subr.mxu0 0.0
    %456 = vmatpush1.msra.mxu0 0.0
    %457 = vmatprep.subr.mxu0 0.0
    %458 = vmatpush1.msra.mxu0 0.0
    %459 = vmatprep.subr.mxu0 0.0
    %460 = vmatpush1.msra.mxu0 0.0
    %461 = vmatprep.subr.mxu0 0.0
    %462 = vmatpush1.msra.mxu0 0.0
    %463 = vmatprep.subr.mxu0 0.0
    %464 = vmatpush1.msra.mxu0 0.0
    %465 = vmatprep.subr.mxu0 0.0
    %466 = vmatpush1.msra.mxu0 0.0
    %467 = vmatprep.subr.mxu0 0.0
    %468 = vmatpush1.msra.mxu0 0.0
    %469 = vmatprep.mubr.f32.mxu0 0.0
    %470 = vmatmul.mubr.f32.gmra.mrb[0].mxu0 %v403
    %v471 = vpop.f32.mrb[0].mxu0
    %v472 = vadd.f32 0.0, %v471
    %v473 = vpop.f32.mrb[0].mxu0
    %v474 = vadd.f32 0.0, %v473
    %475 = vdwg.mxu0
    %v478 = vcombine.low %v472, %v474
    %v480 = vunpack.c.l.s4 1983009808
    %v481 = vunpack.c.0.s8 %v480
    %v482 = vlaneseq
    %v483 = vshrl.u32 %v482, 7
    %v484 = vsub.s32 %v481, %v483
    %v485 = vrot.slane %v478, %v484
    %v487 = vadd.f32 %v401, %v485
    %v488 = vxor.u32 %v487, 2147483648
    %v489 = vmul.f32 %v488, 1.442695
    %v490 = vpow.pop %v489
    %v491 = vadd.f32 %v490, 1.0
    %v492 = vrcp.pop %v491
    %v493 = vmul.f32 1.0, %v492
    %495 = vrot.lane.b32.xlu0 %v487, 64
    %v496 = vpop.permute.xlu0 %495
    %v497 = vrot.slane %v496, 2
    %v499 = vtanh.pop %v497
    %v500 = vmul.f32 %v493, %v388
    %v501 = vmul.f32 %v493, %v499
    %503 = vrot.lane.b32.xlu0 %v501, 64
    %v504 = vpop.permute.xlu0 %503
    %v506 = vadd.f32 %v500, %v504
    %v507 = vtanh.pop %v506
    %v509 = vrot.slane %v493, 2
    %512 = vrot.lane.b32.xlu0 %v507, 64
    %v513 = vpop.permute.xlu0 %512
    %v515 = vmul.f32 %v509, %v513
    %s516 = scalar_lea.vmem [#allocation2], 4
    %517 = vst.msk [vmem:[%s516] sm:$0x3] %vm280, %v515
    %s518 = scalar_lea.vmem %s0, 24
    %v519 = vld [vmem:[%s518] sm:$0xf]
    %v521 = vsel %vm165, %v515, 0
    %523 = vmatprep.subr.mxu0 %v52
    %524 = vmatpush1.msra.mxu0 %v51
    %525 = vmatprep.subr.mxu0 %v54
    %526 = vmatpush1.msra.mxu0 %v53
    %527 = vmatprep.subr.mxu0 %v56
    %528 = vmatpush1.msra.mxu0 %v55
    %529 = vmatprep.subr.mxu0 %v58
    %530 = vmatpush1.msra.mxu0 %v57
    %531 = vmatprep.subr.mxu0 %v60
    %532 = vmatpush1.msra.mxu0 %v59
    %533 = vmatprep.subr.mxu0 %v62
    %534 = vmatpush1.msra.mxu0 %v61
    %535 = vmatprep.subr.mxu0 %v64
    %536 = vmatpush1.msra.mxu0 %v63
    %537 = vmatprep.subr.mxu0 %v66
    %538 = vmatpush1.msra.mxu0 %v65
    %539 = vmatprep.subr.mxu0 0.0
    %540 = vmatpush1.msra.mxu0 0.0
    %541 = vmatprep.subr.mxu0 0.0
    %542 = vmatpush1.msra.mxu0 0.0
    %543 = vmatprep.subr.mxu0 0.0
    %544 = vmatpush1.msra.mxu0 0.0
    %545 = vmatprep.subr.mxu0 0.0
    %546 = vmatpush1.msra.mxu0 0.0
    %547 = vmatprep.subr.mxu0 0.0
    %548 = vmatpush1.msra.mxu0 0.0
    %549 = vmatprep.subr.mxu0 0.0
    %550 = vmatpush1.msra.mxu0 0.0
    %551 = vmatprep.subr.mxu0 0.0
    %552 = vmatpush1.msra.mxu0 0.0
    %553 = vmatprep.subr.mxu0 0.0
    %554 = vmatpush1.msra.mxu0 0.0
    %555 = vmatprep.subr.mxu0 0.0
    %556 = vmatpush1.msra.mxu0 0.0
    %557 = vmatprep.subr.mxu0 0.0
    %558 = vmatpush1.msra.mxu0 0.0
    %559 = vmatprep.subr.mxu0 0.0
    %560 = vmatpush1.msra.mxu0 0.0
    %561 = vmatprep.subr.mxu0 0.0
    %562 = vmatpush1.msra.mxu0 0.0
    %563 = vmatprep.subr.mxu0 0.0
    %564 = vmatpush1.msra.mxu0 0.0
    %565 = vmatprep.subr.mxu0 0.0
    %566 = vmatpush1.msra.mxu0 0.0
    %567 = vmatprep.subr.mxu0 0.0
    %568 = vmatpush1.msra.mxu0 0.0
    %569 = vmatprep.subr.mxu0 0.0
    %570 = vmatpush1.msra.mxu0 0.0
    %571 = vmatprep.subr.mxu0 0.0
    %572 = vmatpush1.msra.mxu0 0.0
    %573 = vmatprep.subr.mxu0 0.0
    %574 = vmatpush1.msra.mxu0 0.0
    %575 = vmatprep.subr.mxu0 0.0
    %576 = vmatpush1.msra.mxu0 0.0
    %577 = vmatprep.subr.mxu0 0.0
    %578 = vmatpush1.msra.mxu0 0.0
    %579 = vmatprep.subr.mxu0 0.0
    %580 = vmatpush1.msra.mxu0 0.0
    %581 = vmatprep.subr.mxu0 0.0
    %582 = vmatpush1.msra.mxu0 0.0
    %583 = vmatprep.subr.mxu0 0.0
    %584 = vmatpush1.msra.mxu0 0.0
    %585 = vmatprep.subr.mxu0 0.0
    %586 = vmatpush1.msra.mxu0 0.0
    %587 = vmatprep.mubr.f32.mxu0 0.0
    %588 = vmatmul.mubr.f32.gmra.mrb[0].mxu0 %v521
    %v589 = vpop.f32.mrb[0].mxu0
    %v590 = vadd.f32 0.0, %v589
    %v591 = vpop.f32.mrb[0].mxu0
    %v592 = vadd.f32 0.0, %v591
    %593 = vdwg.mxu0
    %v596 = vcombine.low %v590, %v592
    %v598 = vunpack.c.l.s4 1983009808
    %v599 = vunpack.c.0.s8 %v598
    %v600 = vlaneseq
    %v601 = vshrl.u32 %v600, 7
    %v602 = vsub.s32 %v599, %v601
    %v603 = vrot.slane %v596, %v602
    %v605 = vadd.f32 %v519, %v603
    %v606 = vxor.u32 %v605, 2147483648
    %v607 = vmul.f32 %v606, 1.442695
    %v608 = vpow.pop %v607
    %v609 = vadd.f32 %v608, 1.0
    %v610 = vrcp.pop %v609
    %v611 = vmul.f32 1.0, %v610
    %613 = vrot.lane.b32.xlu0 %v605, 64
    %v614 = vpop.permute.xlu0 %613
    %v615 = vrot.slane %v614, 2
    %v617 = vtanh.pop %v615
    %v618 = vmul.f32 %v611, %v506
    %v619 = vmul.f32 %v611, %v617
    %621 = vrot.lane.b32.xlu0 %v619, 64
    %v622 = vpop.permute.xlu0 %621
    %v624 = vadd.f32 %v618, %v622
    %v625 = vtanh.pop %v624
    %v627 = vrot.slane %v611, 2
    %630 = vrot.lane.b32.xlu0 %v625, 64
    %v631 = vpop.permute.xlu0 %630
    %v633 = vmul.f32 %v627, %v631
    %s634 = scalar_lea.vmem [#allocation2], 6
    %635 = vst.msk [vmem:[%s634] sm:$0x3] %vm280, %v633
    %s636 = scalar_lea.vmem %s0, 32
    %v637 = vld [vmem:[%s636] sm:$0xf]
    %v639 = vsel %vm165, %v633, 0
    %641 = vmatprep.subr.mxu0 %v52
    %642 = vmatpush1.msra.mxu0 %v51
    %643 = vmatprep.subr.mxu0 %v54
    %644 = vmatpush1.msra.mxu0 %v53
    %645 = vmatprep.subr.mxu0 %v56
    %646 = vmatpush1.msra.mxu0 %v55
    %647 = vmatprep.subr.mxu0 %v58
    %648 = vmatpush1.msra.mxu0 %v57
    %649 = vmatprep.subr.mxu0 %v60
    %650 = vmatpush1.msra.mxu0 %v59
    %651 = vmatprep.subr.mxu0 %v62
    %652 = vmatpush1.msra.mxu0 %v61
    %653 = vmatprep.subr.mxu0 %v64
    %654 = vmatpush1.msra.mxu0 %v63
    %655 = vmatprep.subr.mxu0 %v66
    %656 = vmatpush1.msra.mxu0 %v65
    %657 = vmatprep.subr.mxu0 0.0
    %658 = vmatpush1.msra.mxu0 0.0
    %659 = vmatprep.subr.mxu0 0.0
    %660 = vmatpush1.msra.mxu0 0.0
    %661 = vmatprep.subr.mxu0 0.0
    %662 = vmatpush1.msra.mxu0 0.0
    %663 = vmatprep.subr.mxu0 0.0
    %664 = vmatpush1.msra.mxu0 0.0
    %665 = vmatprep.subr.mxu0 0.0
    %666 = vmatpush1.msra.mxu0 0.0
    %667 = vmatprep.subr.mxu0 0.0
    %668 = vmatpush1.msra.mxu0 0.0
    %669 = vmatprep.subr.mxu0 0.0
    %670 = vmatpush1.msra.mxu0 0.0
    %671 = vmatprep.subr.mxu0 0.0
    %672 = vmatpush1.msra.mxu0 0.0
    %673 = vmatprep.subr.mxu0 0.0
    %674 = vmatpush1.msra.mxu0 0.0
    %675 = vmatprep.subr.mxu0 0.0
    %676 = vmatpush1.msra.mxu0 0.0
    %677 = vmatprep.subr.mxu0 0.0
    %678 = vmatpush1.msra.mxu0 0.0
    %679 = vmatprep.subr.mxu0 0.0
    %680 = vmatpush1.msra.mxu0 0.0
    %681 = vmatprep.subr.mxu0 0.0
    %682 = vmatpush1.msra.mxu0 0.0
    %683 = vmatprep.subr.mxu0 0.0
    %684 = vmatpush1.msra.mxu0 0.0
    %685 = vmatprep.subr.mxu0 0.0
    %686 = vmatpush1.msra.mxu0 0.0
    %687 = vmatprep.subr.mxu0 0.0
    %688 = vmatpush1.msra.mxu0 0.0
    %689 = vmatprep.subr.mxu0 0.0
    %690 = vmatpush1.msra.mxu0 0.0
    %691 = vmatprep.subr.mxu0 0.0
    %692 = vmatpush1.msra.mxu0 0.0
    %693 = vmatprep.subr.mxu0 0.0
    %694 = vmatpush1.msra.mxu0 0.0
    %695 = vmatprep.subr.mxu0 0.0
    %696 = vmatpush1.msra.mxu0 0.0
    %697 = vmatprep.subr.mxu0 0.0
    %698 = vmatpush1.msra.mxu0 0.0
    %699 = vmatprep.subr.mxu0 0.0
    %700 = vmatpush1.msra.mxu0 0.0
    %701 = vmatprep.subr.mxu0 0.0
    %702 = vmatpush1.msra.mxu0 0.0
    %703 = vmatprep.subr.mxu0 0.0
    %704 = vmatpush1.msra.mxu0 0.0
    %705 = vmatprep.mubr.f32.mxu0 0.0
    %706 = vmatmul.mubr.f32.gmra.mrb[0].mxu0 %v639
    %v707 = vpop.f32.mrb[0].mxu0
    %v708 = vadd.f32 0.0, %v707
    %v709 = vpop.f32.mrb[0].mxu0
    %v710 = vadd.f32 0.0, %v709
    %711 = vdwg.mxu0
    %v714 = vcombine.low %v708, %v710
    %v716 = vunpack.c.l.s4 1983009808
    %v717 = vunpack.c.0.s8 %v716
    %v718 = vlaneseq
    %v719 = vshrl.u32 %v718, 7
    %v720 = vsub.s32 %v717, %v719
    %v721 = vrot.slane %v714, %v720
    %v723 = vadd.f32 %v637, %v721
    %v724 = vxor.u32 %v723, 2147483648
    %v725 = vmul.f32 %v724, 1.442695
    %v726 = vpow.pop %v725
    %v727 = vadd.f32 %v726, 1.0
    %v728 = vrcp.pop %v727
    %v729 = vmul.f32 1.0, %v728
    %731 = vrot.lane.b32.xlu0 %v723, 64
    %v732 = vpop.permute.xlu0 %731
    %v733 = vrot.slane %v732, 2
    %v735 = vtanh.pop %v733
    %v736 = vmul.f32 %v729, %v624
    %v737 = vmul.f32 %v729, %v735
    %739 = vrot.lane.b32.xlu0 %v737, 64
    %v740 = vpop.permute.xlu0 %739
    %v742 = vadd.f32 %v736, %v740
    %v743 = vtanh.pop %v742
    %v745 = vrot.slane %v729, 2
    %748 = vrot.lane.b32.xlu0 %v743, 64
    %v749 = vpop.permute.xlu0 %748
    %v751 = vmul.f32 %v745, %v749
    %s752 = scalar_lea.vmem [#allocation2], 8
    %753 = vst.msk [vmem:[%s752] sm:$0x3] %vm280, %v751
    %s754 = scalar_lea.vmem %s0, 40
    %v755 = vld [vmem:[%s754] sm:$0xf]
    %v757 = vsel %vm165, %v751, 0
    %759 = vmatprep.subr.mxu0 %v52
    %760 = vmatpush1.msra.mxu0 %v51
    %761 = vmatprep.subr.mxu0 %v54
    %762 = vmatpush1.msra.mxu0 %v53
    %763 = vmatprep.subr.mxu0 %v56
    %764 = vmatpush1.msra.mxu0 %v55
    %765 = vmatprep.subr.mxu0 %v58
    %766 = vmatpush1.msra.mxu0 %v57
    %767 = vmatprep.subr.mxu0 %v60
    %768 = vmatpush1.msra.mxu0 %v59
    %769 = vmatprep.subr.mxu0 %v62
    %770 = vmatpush1.msra.mxu0 %v61
    %771 = vmatprep.subr.mxu0 %v64
    %772 = vmatpush1.msra.mxu0 %v63
    %773 = vmatprep.subr.mxu0 %v66
    %774 = vmatpush1.msra.mxu0 %v65
    %775 = vmatprep.subr.mxu0 0.0
    %776 = vmatpush1.msra.mxu0 0.0
    %777 = vmatprep.subr.mxu0 0.0
    %778 = vmatpush1.msra.mxu0 0.0
    %779 = vmatprep.subr.mxu0 0.0
    %780 = vmatpush1.msra.mxu0 0.0
    %781 = vmatprep.subr.mxu0 0.0
    %782 = vmatpush1.msra.mxu0 0.0
    %783 = vmatprep.subr.mxu0 0.0
    %784 = vmatpush1.msra.mxu0 0.0
    %785 = vmatprep.subr.mxu0 0.0
    %786 = vmatpush1.msra.mxu0 0.0
    %787 = vmatprep.subr.mxu0 0.0
    %788 = vmatpush1.msra.mxu0 0.0
    %789 = vmatprep.subr.mxu0 0.0
    %790 = vmatpush1.msra.mxu0 0.0
    %791 = vmatprep.subr.mxu0 0.0
    %792 = vmatpush1.msra.mxu0 0.0
    %793 = vmatprep.subr.mxu0 0.0
    %794 = vmatpush1.msra.mxu0 0.0
    %795 = vmatprep.subr.mxu0 0.0
    %796 = vmatpush1.msra.mxu0 0.0
    %797 = vmatprep.subr.mxu0 0.0
    %798 = vmatpush1.msra.mxu0 0.0
    %799 = vmatprep.subr.mxu0 0.0
    %800 = vmatpush1.msra.mxu0 0.0
    %801 = vmatprep.subr.mxu0 0.0
    %802 = vmatpush1.msra.mxu0 0.0
    %803 = vmatprep.subr.mxu0 0.0
    %804 = vmatpush1.msra.mxu0 0.0
    %805 = vmatprep.subr.mxu0 0.0
    %806 = vmatpush1.msra.mxu0 0.0
    %807 = vmatprep.subr.mxu0 0.0
    %808 = vmatpush1.msra.mxu0 0.0
    %809 = vmatprep.subr.mxu0 0.0
    %810 = vmatpush1.msra.mxu0 0.0
    %811 = vmatprep.subr.mxu0 0.0
    %812 = vmatpush1.msra.mxu0 0.0
    %813 = vmatprep.subr.mxu0 0.0
    %814 = vmatpush1.msra.mxu0 0.0
    %815 = vmatprep.subr.mxu0 0.0
    %816 = vmatpush1.msra.mxu0 0.0
    %817 = vmatprep.subr.mxu0 0.0
    %818 = vmatpush1.msra.mxu0 0.0
    %819 = vmatprep.subr.mxu0 0.0
    %820 = vmatpush1.msra.mxu0 0.0
    %821 = vmatprep.subr.mxu0 0.0
    %822 = vmatpush1.msra.mxu0 0.0
    %823 = vmatprep.mubr.f32.mxu0 0.0
    %824 = vmatmul.mubr.f32.gmra.mrb[0].mxu0 %v757
    %v825 = vpop.f32.mrb[0].mxu0
    %v826 = vadd.f32 0.0, %v825
    %v827 = vpop.f32.mrb[0].mxu0
    %v828 = vadd.f32 0.0, %v827
    %829 = vdwg.mxu0
    %v832 = vcombine.low %v826, %v828
    %v834 = vunpack.c.l.s4 1983009808
    %v835 = vunpack.c.0.s8 %v834
    %v836 = vlaneseq
    %v837 = vshrl.u32 %v836, 7
    %v838 = vsub.s32 %v835, %v837
    %v839 = vrot.slane %v832, %v838
    %v841 = vadd.f32 %v755, %v839
    %v842 = vxor.u32 %v841, 2147483648
    %v843 = vmul.f32 %v842, 1.442695
    %v844 = vpow.pop %v843
    %v845 = vadd.f32 %v844, 1.0
    %v846 = vrcp.pop %v845
    %v847 = vmul.f32 1.0, %v846
    %849 = vrot.lane.b32.xlu0 %v841, 64
    %v850 = vpop.permute.xlu0 %849
    %v851 = vrot.slane %v850, 2
    %v853 = vtanh.pop %v851
    %v854 = vmul.f32 %v847, %v742
    %v855 = vmul.f32 %v847, %v853
    %857 = vrot.lane.b32.xlu0 %v855, 64
    %v858 = vpop.permute.xlu0 %857
    %v860 = vadd.f32 %v854, %v858
    %v861 = vtanh.pop %v860
    %v863 = vrot.slane %v847, 2
    %866 = vrot.lane.b32.xlu0 %v861, 64
    %v867 = vpop.permute.xlu0 %866
    %v869 = vmul.f32 %v863, %v867
    %s870 = scalar_lea.vmem [#allocation2], 10
    %871 = vst.msk [vmem:[%s870] sm:$0x3] %vm280, %v869
    %s872 = scalar_lea.vmem %s0, 48
    %v873 = vld [vmem:[%s872] sm:$0xf]
    %v875 = vsel %vm165, %v869, 0
    %877 = vmatprep.subr.mxu0 %v52
    %878 = vmatpush1.msra.mxu0 %v51
    %879 = vmatprep.subr.mxu0 %v54
    %880 = vmatpush1.msra.mxu0 %v53
    %881 = vmatprep.subr.mxu0 %v56
    %882 = vmatpush1.msra.mxu0 %v55
    %883 = vmatprep.subr.mxu0 %v58
    %884 = vmatpush1.msra.mxu0 %v57
    %885 = vmatprep.subr.mxu0 %v60
    %886 = vmatpush1.msra.mxu0 %v59
    %887 = vmatprep.subr.mxu0 %v62
    %888 = vmatpush1.msra.mxu0 %v61
    %889 = vmatprep.subr.mxu0 %v64
    %890 = vmatpush1.msra.mxu0 %v63
    %891 = vmatprep.subr.mxu0 %v66
    %892 = vmatpush1.msra.mxu0 %v65
    %893 = vmatprep.subr.mxu0 0.0
    %894 = vmatpush1.msra.mxu0 0.0
    %895 = vmatprep.subr.mxu0 0.0
    %896 = vmatpush1.msra.mxu0 0.0
    %897 = vmatprep.subr.mxu0 0.0
    %898 = vmatpush1.msra.mxu0 0.0
    %899 = vmatprep.subr.mxu0 0.0
    %900 = vmatpush1.msra.mxu0 0.0
    %901 = vmatprep.subr.mxu0 0.0
    %902 = vmatpush1.msra.mxu0 0.0
    %903 = vmatprep.subr.mxu0 0.0
    %904 = vmatpush1.msra.mxu0 0.0
    %905 = vmatprep.subr.mxu0 0.0
    %906 = vmatpush1.msra.mxu0 0.0
    %907 = vmatprep.subr.mxu0 0.0
    %908 = vmatpush1.msra.mxu0 0.0
    %909 = vmatprep.subr.mxu0 0.0
    %910 = vmatpush1.msra.mxu0 0.0
    %911 = vmatprep.subr.mxu0 0.0
    %912 = vmatpush1.msra.mxu0 0.0
    %913 = vmatprep.subr.mxu0 0.0
    %914 = vmatpush1.msra.mxu0 0.0
    %915 = vmatprep.subr.mxu0 0.0
    %916 = vmatpush1.msra.mxu0 0.0
    %917 = vmatprep.subr.mxu0 0.0
    %918 = vmatpush1.msra.mxu0 0.0
    %919 = vmatprep.subr.mxu0 0.0
    %920 = vmatpush1.msra.mxu0 0.0
    %921 = vmatprep.subr.mxu0 0.0
    %922 = vmatpush1.msra.mxu0 0.0
    %923 = vmatprep.subr.mxu0 0.0
    %924 = vmatpush1.msra.mxu0 0.0
    %925 = vmatprep.subr.mxu0 0.0
    %926 = vmatpush1.msra.mxu0 0.0
    %927 = vmatprep.subr.mxu0 0.0
    %928 = vmatpush1.msra.mxu0 0.0
    %929 = vmatprep.subr.mxu0 0.0
    %930 = vmatpush1.msra.mxu0 0.0
    %931 = vmatprep.subr.mxu0 0.0
    %932 = vmatpush1.msra.mxu0 0.0
    %933 = vmatprep.subr.mxu0 0.0
    %934 = vmatpush1.msra.mxu0 0.0
    %935 = vmatprep.subr.mxu0 0.0
    %936 = vmatpush1.msra.mxu0 0.0
    %937 = vmatprep.subr.mxu0 0.0
    %938 = vmatpush1.msra.mxu0 0.0
    %939 = vmatprep.subr.mxu0 0.0
    %940 = vmatpush1.msra.mxu0 0.0
    %941 = vmatprep.mubr.f32.mxu0 0.0
    %942 = vmatmul.mubr.f32.gmra.mrb[0].mxu0 %v875
    %v943 = vpop.f32.mrb[0].mxu0
    %v944 = vadd.f32 0.0, %v943
    %v945 = vpop.f32.mrb[0].mxu0
    %v946 = vadd.f32 0.0, %v945
    %947 = vdwg.mxu0
    %v950 = vcombine.low %v944, %v946
    %v952 = vunpack.c.l.s4 1983009808
    %v953 = vunpack.c.0.s8 %v952
    %v954 = vlaneseq
    %v955 = vshrl.u32 %v954, 7
    %v956 = vsub.s32 %v953, %v955
    %v957 = vrot.slane %v950, %v956
    %v959 = vadd.f32 %v873, %v957
    %v960 = vxor.u32 %v959, 2147483648
    %v961 = vmul.f32 %v960, 1.442695
    %v962 = vpow.pop %v961
    %v963 = vadd.f32 %v962, 1.0
    %v964 = vrcp.pop %v963
    %v965 = vmul.f32 1.0, %v964
    %967 = vrot.lane.b32.xlu0 %v959, 64
    %v968 = vpop.permute.xlu0 %967
    %v969 = vrot.slane %v968, 2
    %v971 = vtanh.pop %v969
    %v972 = vmul.f32 %v965, %v860
    %v973 = vmul.f32 %v965, %v971
    %975 = vrot.lane.b32.xlu0 %v973, 64
    %v976 = vpop.permute.xlu0 %975
    %v978 = vadd.f32 %v972, %v976
    %v979 = vtanh.pop %v978
    %v981 = vrot.slane %v965, 2
    %984 = vrot.lane.b32.xlu0 %v979, 64
    %v985 = vpop.permute.xlu0 %984
    %v987 = vmul.f32 %v981, %v985
    %s988 = scalar_lea.vmem [#allocation2], 12
    %989 = vst.msk [vmem:[%s988] sm:$0x3] %vm280, %v987
    %s990 = scalar_lea.vmem %s0, 56
    %v991 = vld [vmem:[%s990] sm:$0xf]
    %v993 = vsel %vm165, %v987, 0
    %995 = vmatprep.subr.mxu0 %v52
    %996 = vmatpush1.msra.mxu0 %v51
    %997 = vmatprep.subr.mxu0 %v54
    %998 = vmatpush1.msra.mxu0 %v53
    %999 = vmatprep.subr.mxu0 %v56
    %1000 = vmatpush1.msra.mxu0 %v55
    %1001 = vmatprep.subr.mxu0 %v58
    %1002 = vmatpush1.msra.mxu0 %v57
    %1003 = vmatprep.subr.mxu0 %v60
    %1004 = vmatpush1.msra.mxu0 %v59
    %1005 = vmatprep.subr.mxu0 %v62
    %1006 = vmatpush1.msra.mxu0 %v61
    %1007 = vmatprep.subr.mxu0 %v64
    %1008 = vmatpush1.msra.mxu0 %v63
    %1009 = vmatprep.subr.mxu0 %v66
    %1010 = vmatpush1.msra.mxu0 %v65
    %1011 = vmatprep.subr.mxu0 0.0
    %1012 = vmatpush1.msra.mxu0 0.0
    %1013 = vmatprep.subr.mxu0 0.0
    %1014 = vmatpush1.msra.mxu0 0.0
    %1015 = vmatprep.subr.mxu0 0.0
    %1016 = vmatpush1.msra.mxu0 0.0
    %1017 = vmatprep.subr.mxu0 0.0
    %1018 = vmatpush1.msra.mxu0 0.0
    %1019 = vmatprep.subr.mxu0 0.0
    %1020 = vmatpush1.msra.mxu0 0.0
    %1021 = vmatprep.subr.mxu0 0.0
    %1022 = vmatpush1.msra.mxu0 0.0
    %1023 = vmatprep.subr.mxu0 0.0
    %1024 = vmatpush1.msra.mxu0 0.0
    %1025 = vmatprep.subr.mxu0 0.0
    %1026 = vmatpush1.msra.mxu0 0.0
    %1027 = vmatprep.subr.mxu0 0.0
    %1028 = vmatpush1.msra.mxu0 0.0
    %1029 = vmatprep.subr.mxu0 0.0
    %1030 = vmatpush1.msra.mxu0 0.0
    %1031 = vmatprep.subr.mxu0 0.0
    %1032 = vmatpush1.msra.mxu0 0.0
    %1033 = vmatprep.subr.mxu0 0.0
    %1034 = vmatpush1.msra.mxu0 0.0
    %1035 = vmatprep.subr.mxu0 0.0
    %1036 = vmatpush1.msra.mxu0 0.0
    %1037 = vmatprep.subr.mxu0 0.0
    %1038 = vmatpush1.msra.mxu0 0.0
    %1039 = vmatprep.subr.mxu0 0.0
    %1040 = vmatpush1.msra.mxu0 0.0
    %1041 = vmatprep.subr.mxu0 0.0
    %1042 = vmatpush1.msra.mxu0 0.0
    %1043 = vmatprep.subr.mxu0 0.0
    %1044 = vmatpush1.msra.mxu0 0.0
    %1045 = vmatprep.subr.mxu0 0.0
    %1046 = vmatpush1.msra.mxu0 0.0
    %1047 = vmatprep.subr.mxu0 0.0
    %1048 = vmatpush1.msra.mxu0 0.0
    %1049 = vmatprep.subr.mxu0 0.0
    %1050 = vmatpush1.msra.mxu0 0.0
    %1051 = vmatprep.subr.mxu0 0.0
    %1052 = vmatpush1.msra.mxu0 0.0
    %1053 = vmatprep.subr.mxu0 0.0
    %1054 = vmatpush1.msra.mxu0 0.0
    %1055 = vmatprep.subr.mxu0 0.0
    %1056 = vmatpush1.msra.mxu0 0.0
    %1057 = vmatprep.subr.mxu0 0.0
    %1058 = vmatpush1.msra.mxu0 0.0
    %1059 = vmatprep.mubr.f32.mxu0 0.0
    %1060 = vmatmul.mubr.f32.gmra.mrb[0].mxu0 %v993
    %v1061 = vpop.f32.mrb[0].mxu0
    %v1062 = vadd.f32 0.0, %v1061
    %v1063 = vpop.f32.mrb[0].mxu0
    %v1064 = vadd.f32 0.0, %v1063
    %1065 = vdwg.mxu0
    %v1068 = vcombine.low %v1062, %v1064
    %v1070 = vunpack.c.l.s4 1983009808
    %v1071 = vunpack.c.0.s8 %v1070
    %v1072 = vlaneseq
    %v1073 = vshrl.u32 %v1072, 7
    %v1074 = vsub.s32 %v1071, %v1073
    %v1075 = vrot.slane %v1068, %v1074
    %v1077 = vadd.f32 %v991, %v1075
    %v1078 = vxor.u32 %v1077, 2147483648
    %v1079 = vmul.f32 %v1078, 1.442695
    %v1080 = vpow.pop %v1079
    %v1081 = vadd.f32 %v1080, 1.0
    %v1082 = vrcp.pop %v1081
    %v1083 = vmul.f32 1.0, %v1082
    %1085 = vrot.lane.b32.xlu0 %v1077, 64
    %v1086 = vpop.permute.xlu0 %1085
    %v1087 = vrot.slane %v1086, 2
    %v1089 = vtanh.pop %v1087
    %v1090 = vmul.f32 %v1083, %v978
    %v1091 = vmul.f32 %v1083, %v1089
    %1093 = vrot.lane.b32.xlu0 %v1091, 64
    %v1094 = vpop.permute.xlu0 %1093
    %v1096 = vadd.f32 %v1090, %v1094
    %v1097 = vtanh.pop %v1096
    %v1099 = vrot.slane %v1083, 2
    %1102 = vrot.lane.b32.xlu0 %v1097, 64
    %v1103 = vpop.permute.xlu0 %1102
    %v1105 = vmul.f32 %v1099, %v1103
    %s1106 = scalar_lea.vmem [#allocation2], 14
    %1107 = vst.msk [vmem:[%s1106] sm:$0x3] %vm280, %v1105
    %v1108 = vld [vmem:[%s990 + $0x4] sm:$0xf]
    %1109 = vmatprep.subr.mxu0 %v68
    %1110 = vmatpush1.msra.mxu0 %v67
    %1111 = vmatprep.subr.mxu0 %v70
    %1112 = vmatpush1.msra.mxu0 %v69
    %1113 = vmatprep.subr.mxu0 %v72
    %1114 = vmatpush1.msra.mxu0 %v71
    %1115 = vmatprep.subr.mxu0 %v74
    %1116 = vmatpush1.msra.mxu0 %v73
    %1117 = vmatprep.subr.mxu0 %v76
    %1118 = vmatpush1.msra.mxu0 %v75
    %1119 = vmatprep.subr.mxu0 %v78
    %1120 = vmatpush1.msra.mxu0 %v77
    %1121 = vmatprep.subr.mxu0 %v80
    %1122 = vmatpush1.msra.mxu0 %v79
    %1123 = vmatprep.subr.mxu0 %v82
    %1124 = vmatpush1.msra.mxu0 %v81
    %1125 = vmatprep.subr.mxu0 0.0
    %1126 = vmatpush1.msra.mxu0 0.0
    %1127 = vmatprep.subr.mxu0 0.0
    %1128 = vmatpush1.msra.mxu0 0.0
    %1129 = vmatprep.subr.mxu0 0.0
    %1130 = vmatpush1.msra.mxu0 0.0
    %1131 = vmatprep.subr.mxu0 0.0
    %1132 = vmatpush1.msra.mxu0 0.0
    %1133 = vmatprep.subr.mxu0 0.0
    %1134 = vmatpush1.msra.mxu0 0.0
    %1135 = vmatprep.subr.mxu0 0.0
    %1136 = vmatpush1.msra.mxu0 0.0
    %1137 = vmatprep.subr.mxu0 0.0
    %1138 = vmatpush1.msra.mxu0 0.0
    %1139 = vmatprep.subr.mxu0 0.0
    %1140 = vmatpush1.msra.mxu0 0.0
    %1141 = vmatprep.subr.mxu0 0.0
    %1142 = vmatpush1.msra.mxu0 0.0
    %1143 = vmatprep.subr.mxu0 0.0
    %1144 = vmatpush1.msra.mxu0 0.0
    %1145 = vmatprep.subr.mxu0 0.0
    %1146 = vmatpush1.msra.mxu0 0.0
    %1147 = vmatprep.subr.mxu0 0.0
    %1148 = vmatpush1.msra.mxu0 0.0
    %1149 = vmatprep.subr.mxu0 0.0
    %1150 = vmatpush1.msra.mxu0 0.0
    %1151 = vmatprep.subr.mxu0 0.0
    %1152 = vmatpush1.msra.mxu0 0.0
    %1153 = vmatprep.subr.mxu0 0.0
    %1154 = vmatpush1.msra.mxu0 0.0
    %1155 = vmatprep.subr.mxu0 0.0
    %1156 = vmatpush1.msra.mxu0 0.0
    %1157 = vmatprep.subr.mxu0 0.0
    %1158 = vmatpush1.msra.mxu0 0.0
    %1159 = vmatprep.subr.mxu0 0.0
    %1160 = vmatpush1.msra.mxu0 0.0
    %1161 = vmatprep.subr.mxu0 0.0
    %1162 = vmatpush1.msra.mxu0 0.0
    %1163 = vmatprep.subr.mxu0 0.0
    %1164 = vmatpush1.msra.mxu0 0.0
    %1165 = vmatprep.subr.mxu0 0.0
    %1166 = vmatpush1.msra.mxu0 0.0
    %1167 = vmatprep.subr.mxu0 0.0
    %1168 = vmatpush1.msra.mxu0 0.0
    %1169 = vmatprep.subr.mxu0 0.0
    %1170 = vmatpush1.msra.mxu0 0.0
    %1171 = vmatprep.subr.mxu0 0.0
    %1172 = vmatpush1.msra.mxu0 0.0
    %1173 = vmatprep.mubr.f32.mxu0 0.0
    %1174 = vmatmul.mubr.f32.gmra.mrb[0].mxu0 %v167
    %v1175 = vpop.f32.mrb[0].mxu0
    %v1176 = vadd.f32 0.0, %v1175
    %v1177 = vpop.f32.mrb[0].mxu0
    %v1178 = vadd.f32 0.0, %v1177
    %1179 = vdwg.mxu0
    %v1182 = vcombine.low %v1176, %v1178
    %v1184 = vunpack.c.l.s4 1983009808
    %v1185 = vunpack.c.0.s8 %v1184
    %v1186 = vlaneseq
    %v1187 = vshrl.u32 %v1186, 7
    %v1188 = vsub.s32 %v1185, %v1187
    %v1189 = vrot.slane %v1182, %v1188
    %v1191 = vadd.f32 %v1108, %v1189
    %v1192 = vxor.u32 %v1191, 2147483648
    %v1193 = vmul.f32 %v1192, 1.442695
    %v1194 = vpow.pop %v1193
    %v1195 = vadd.f32 %v1194, 1.0
    %v1196 = vrcp.pop %v1195
    %v1197 = vmul.f32 1.0, %v1196
    %1199 = vrot.lane.b32.xlu0 %v1191, 64
    %v1200 = vpop.permute.xlu0 %1199
    %v1201 = vrot.slane %v1200, 2
    %v1203 = vtanh.pop %v1201
    %v1204 = vmul.f32 %v1197, 0.0
    %v1205 = vmul.f32 %v1197, %v1203
    %1207 = vrot.lane.b32.xlu0 %v1205, 64
    %v1208 = vpop.permute.xlu0 %1207
    %v1210 = vadd.f32 %v1204, %v1208
    %v1211 = vtanh.pop %v1210
    %v1213 = vrot.slane %v1197, 2
    %1216 = vrot.lane.b32.xlu0 %v1211, 64
    %v1217 = vpop.permute.xlu0 %1216
    %v1219 = vmul.f32 %v1213, %v1217
    %s1220 = scalar_lea.vmem [#allocation3], 14
    %1221 = vst.msk [vmem:[%s1220] sm:$0x3] %vm280, %v1219
    %v1222 = vld [vmem:[%s872 + $0x4] sm:$0xf]
    %v1224 = vsel %vm165, %v1219, 0
    %1226 = vmatprep.subr.mxu0 %v68
    %1227 = vmatpush1.msra.mxu0 %v67
    %1228 = vmatprep.subr.mxu0 %v70
    %1229 = vmatpush1.msra.mxu0 %v69
    %1230 = vmatprep.subr.mxu0 %v72
    %1231 = vmatpush1.msra.mxu0 %v71
    %1232 = vmatprep.subr.mxu0 %v74
    %1233 = vmatpush1.msra.mxu0 %v73
    %1234 = vmatprep.subr.mxu0 %v76
    %1235 = vmatpush1.msra.mxu0 %v75
    %1236 = vmatprep.subr.mxu0 %v78
    %1237 = vmatpush1.msra.mxu0 %v77
    %1238 = vmatprep.subr.mxu0 %v80
    %1239 = vmatpush1.msra.mxu0 %v79
    %1240 = vmatprep.subr.mxu0 %v82
    %1241 = vmatpush1.msra.mxu0 %v81
    %1242 = vmatprep.subr.mxu0 0.0
    %1243 = vmatpush1.msra.mxu0 0.0
    %1244 = vmatprep.subr.mxu0 0.0
    %1245 = vmatpush1.msra.mxu0 0.0
    %1246 = vmatprep.subr.mxu0 0.0
    %1247 = vmatpush1.msra.mxu0 0.0
    %1248 = vmatprep.subr.mxu0 0.0
    %1249 = vmatpush1.msra.mxu0 0.0
    %1250 = vmatprep.subr.mxu0 0.0
    %1251 = vmatpush1.msra.mxu0 0.0
    %1252 = vmatprep.subr.mxu0 0.0
    %1253 = vmatpush1.msra.mxu0 0.0
    %1254 = vmatprep.subr.mxu0 0.0
    %1255 = vmatpush1.msra.mxu0 0.0
    %1256 = vmatprep.subr.mxu0 0.0
    %1257 = vmatpush1.msra.mxu0 0.0
    %1258 = vmatprep.subr.mxu0 0.0
    %1259 = vmatpush1.msra.mxu0 0.0
    %1260 = vmatprep.subr.mxu0 0.0
    %1261 = vmatpush1.msra.mxu0 0.0
    %1262 = vmatprep.subr.mxu0 0.0
    %1263 = vmatpush1.msra.mxu0 0.0
    %1264 = vmatprep.subr.mxu0 0.0
    %1265 = vmatpush1.msra.mxu0 0.0
    %1266 = vmatprep.subr.mxu0 0.0
    %1267 = vmatpush1.msra.mxu0 0.0
    %1268 = vmatprep.subr.mxu0 0.0
    %1269 = vmatpush1.msra.mxu0 0.0
    %1270 = vmatprep.subr.mxu0 0.0
    %1271 = vmatpush1.msra.mxu0 0.0
    %1272 = vmatprep.subr.mxu0 0.0
    %1273 = vmatpush1.msra.mxu0 0.0
    %1274 = vmatprep.subr.mxu0 0.0
    %1275 = vmatpush1.msra.mxu0 0.0
    %1276 = vmatprep.subr.mxu0 0.0
    %1277 = vmatpush1.msra.mxu0 0.0
    %1278 = vmatprep.subr.mxu0 0.0
    %1279 = vmatpush1.msra.mxu0 0.0
    %1280 = vmatprep.subr.mxu0 0.0
    %1281 = vmatpush1.msra.mxu0 0.0
    %1282 = vmatprep.subr.mxu0 0.0
    %1283 = vmatpush1.msra.mxu0 0.0
    %1284 = vmatprep.subr.mxu0 0.0
    %1285 = vmatpush1.msra.mxu0 0.0
    %1286 = vmatprep.subr.mxu0 0.0
    %1287 = vmatpush1.msra.mxu0 0.0
    %1288 = vmatprep.subr.mxu0 0.0
    %1289 = vmatpush1.msra.mxu0 0.0
    %1290 = vmatprep.mubr.f32.mxu0 0.0
    %1291 = vmatmul.mubr.f32.gmra.mrb[0].mxu0 %v1224
    %v1292 = vpop.f32.mrb[0].mxu0
    %v1293 = vadd.f32 0.0, %v1292
    %v1294 = vpop.f32.mrb[0].mxu0
    %v1295 = vadd.f32 0.0, %v1294
    %1296 = vdwg.mxu0
    %v1299 = vcombine.low %v1293, %v1295
    %v1301 = vunpack.c.l.s4 1983009808
    %v1302 = vunpack.c.0.s8 %v1301
    %v1303 = vlaneseq
    %v1304 = vshrl.u32 %v1303, 7
    %v1305 = vsub.s32 %v1302, %v1304
    %v1306 = vrot.slane %v1299, %v1305
    %v1308 = vadd.f32 %v1222, %v1306
    %v1309 = vxor.u32 %v1308, 2147483648
    %v1310 = vmul.f32 %v1309, 1.442695
    %v1311 = vpow.pop %v1310
    %v1312 = vadd.f32 %v1311, 1.0
    %v1313 = vrcp.pop %v1312
    %v1314 = vmul.f32 1.0, %v1313
    %1316 = vrot.lane.b32.xlu0 %v1308, 64
    %v1317 = vpop.permute.xlu0 %1316
    %v1318 = vrot.slane %v1317, 2
    %v1320 = vtanh.pop %v1318
    %v1321 = vmul.f32 %v1314, %v1210
    %v1322 = vmul.f32 %v1314, %v1320
    %1324 = vrot.lane.b32.xlu0 %v1322, 64
    %v1325 = vpop.permute.xlu0 %1324
    %v1327 = vadd.f32 %v1321, %v1325
    %v1328 = vtanh.pop %v1327
    %v1330 = vrot.slane %v1314, 2
    %1333 = vrot.lane.b32.xlu0 %v1328, 64
    %v1334 = vpop.permute.xlu0 %1333
    %v1336 = vmul.f32 %v1330, %v1334
    %s1337 = scalar_lea.vmem [#allocation3], 12
    %1338 = vst.msk [vmem:[%s1337] sm:$0x3] %vm280, %v1336
    %v1339 = vld [vmem:[%s754 + $0x4] sm:$0xf]
    %v1341 = vsel %vm165, %v1336, 0
    %1343 = vmatprep.subr.mxu0 %v68
    %1344 = vmatpush1.msra.mxu0 %v67
    %1345 = vmatprep.subr.mxu0 %v70
    %1346 = vmatpush1.msra.mxu0 %v69
    %1347 = vmatprep.subr.mxu0 %v72
    %1348 = vmatpush1.msra.mxu0 %v71
    %1349 = vmatprep.subr.mxu0 %v74
    %1350 = vmatpush1.msra.mxu0 %v73
    %1351 = vmatprep.subr.mxu0 %v76
    %1352 = vmatpush1.msra.mxu0 %v75
    %1353 = vmatprep.subr.mxu0 %v78
    %1354 = vmatpush1.msra.mxu0 %v77
    %1355 = vmatprep.subr.mxu0 %v80
    %1356 = vmatpush1.msra.mxu0 %v79
    %1357 = vmatprep.subr.mxu0 %v82
    %1358 = vmatpush1.msra.mxu0 %v81
    %1359 = vmatprep.subr.mxu0 0.0
    %1360 = vmatpush1.msra.mxu0 0.0
    %1361 = vmatprep.subr.mxu0 0.0
    %1362 = vmatpush1.msra.mxu0 0.0
    %1363 = vmatprep.subr.mxu0 0.0
    %1364 = vmatpush1.msra.mxu0 0.0
    %1365 = vmatprep.subr.mxu0 0.0
    %1366 = vmatpush1.msra.mxu0 0.0
    %1367 = vmatprep.subr.mxu0 0.0
    %1368 = vmatpush1.msra.mxu0 0.0
    %1369 = vmatprep.subr.mxu0 0.0
    %1370 = vmatpush1.msra.mxu0 0.0
    %1371 = vmatprep.subr.mxu0 0.0
    %1372 = vmatpush1.msra.mxu0 0.0
    %1373 = vmatprep.subr.mxu0 0.0
    %1374 = vmatpush1.msra.mxu0 0.0
    %1375 = vmatprep.subr.mxu0 0.0
    %1376 = vmatpush1.msra.mxu0 0.0
    %1377 = vmatprep.subr.mxu0 0.0
    %1378 = vmatpush1.msra.mxu0 0.0
    %1379 = vmatprep.subr.mxu0 0.0
    %1380 = vmatpush1.msra.mxu0 0.0
    %1381 = vmatprep.subr.mxu0 0.0
    %1382 = vmatpush1.msra.mxu0 0.0
    %1383 = vmatprep.subr.mxu0 0.0
    %1384 = vmatpush1.msra.mxu0 0.0
    %1385 = vmatprep.subr.mxu0 0.0
    %1386 = vmatpush1.msra.mxu0 0.0
    %1387 = vmatprep.subr.mxu0 0.0
    %1388 = vmatpush1.msra.mxu0 0.0
    %1389 = vmatprep.subr.mxu0 0.0
    %1390 = vmatpush1.msra.mxu0 0.0
    %1391 = vmatprep.subr.mxu0 0.0
    %1392 = vmatpush1.msra.mxu0 0.0
    %1393 = vmatprep.subr.mxu0 0.0
    %1394 = vmatpush1.msra.mxu0 0.0
    %1395 = vmatprep.subr.mxu0 0.0
    %1396 = vmatpush1.msra.mxu0 0.0
    %1397 = vmatprep.subr.mxu0 0.0
    %1398 = vmatpush1.msra.mxu0 0.0
    %1399 = vmatprep.subr.mxu0 0.0
    %1400 = vmatpush1.msra.mxu0 0.0
    %1401 = vmatprep.subr.mxu0 0.0
    %1402 = vmatpush1.msra.mxu0 0.0
    %1403 = vmatprep.subr.mxu0 0.0
    %1404 = vmatpush1.msra.mxu0 0.0
    %1405 = vmatprep.subr.mxu0 0.0
    %1406 = vmatpush1.msra.mxu0 0.0
    %1407 = vmatprep.mubr.f32.mxu0 0.0
    %1408 = vmatmul.mubr.f32.gmra.mrb[0].mxu0 %v1341
    %v1409 = vpop.f32.mrb[0].mxu0
    %v1410 = vadd.f32 0.0, %v1409
    %v1411 = vpop.f32.mrb[0].mxu0
    %v1412 = vadd.f32 0.0, %v1411
    %1413 = vdwg.mxu0
    %v1416 = vcombine.low %v1410, %v1412
    %v1418 = vunpack.c.l.s4 1983009808
    %v1419 = vunpack.c.0.s8 %v1418
    %v1420 = vlaneseq
    %v1421 = vshrl.u32 %v1420, 7
    %v1422 = vsub.s32 %v1419, %v1421
    %v1423 = vrot.slane %v1416, %v1422
    %v1425 = vadd.f32 %v1339, %v1423
    %v1426 = vxor.u32 %v1425, 2147483648
    %v1427 = vmul.f32 %v1426, 1.442695
    %v1428 = vpow.pop %v1427
    %v1429 = vadd.f32 %v1428, 1.0
    %v1430 = vrcp.pop %v1429
    %v1431 = vmul.f32 1.0, %v1430
    %1433 = vrot.lane.b32.xlu0 %v1425, 64
    %v1434 = vpop.permute.xlu0 %1433
    %v1435 = vrot.slane %v1434, 2
    %v1437 = vtanh.pop %v1435
    %v1438 = vmul.f32 %v1431, %v1327
    %v1439 = vmul.f32 %v1431, %v1437
    %1441 = vrot.lane.b32.xlu0 %v1439, 64
    %v1442 = vpop.permute.xlu0 %1441
    %v1444 = vadd.f32 %v1438, %v1442
    %v1445 = vtanh.pop %v1444
    %v1447 = vrot.slane %v1431, 2
    %1450 = vrot.lane.b32.xlu0 %v1445, 64
    %v1451 = vpop.permute.xlu0 %1450
    %v1453 = vmul.f32 %v1447, %v1451
    %s1454 = scalar_lea.vmem [#allocation3], 10
    %1455 = vst.msk [vmem:[%s1454] sm:$0x3] %vm280, %v1453
    %v1456 = vld [vmem:[%s636 + $0x4] sm:$0xf]
    %v1458 = vsel %vm165, %v1453, 0
    %1460 = vmatprep.subr.mxu0 %v68
    %1461 = vmatpush1.msra.mxu0 %v67
    %1462 = vmatprep.subr.mxu0 %v70
    %1463 = vmatpush1.msra.mxu0 %v69
    %1464 = vmatprep.subr.mxu0 %v72
    %1465 = vmatpush1.msra.mxu0 %v71
    %1466 = vmatprep.subr.mxu0 %v74
    %1467 = vmatpush1.msra.mxu0 %v73
    %1468 = vmatprep.subr.mxu0 %v76
    %1469 = vmatpush1.msra.mxu0 %v75
    %1470 = vmatprep.subr.mxu0 %v78
    %1471 = vmatpush1.msra.mxu0 %v77
    %1472 = vmatprep.subr.mxu0 %v80
    %1473 = vmatpush1.msra.mxu0 %v79
    %1474 = vmatprep.subr.mxu0 %v82
    %1475 = vmatpush1.msra.mxu0 %v81
    %1476 = vmatprep.subr.mxu0 0.0
    %1477 = vmatpush1.msra.mxu0 0.0
    %1478 = vmatprep.subr.mxu0 0.0
    %1479 = vmatpush1.msra.mxu0 0.0
    %1480 = vmatprep.subr.mxu0 0.0
    %1481 = vmatpush1.msra.mxu0 0.0
    %1482 = vmatprep.subr.mxu0 0.0
    %1483 = vmatpush1.msra.mxu0 0.0
    %1484 = vmatprep.subr.mxu0 0.0
    %1485 = vmatpush1.msra.mxu0 0.0
    %1486 = vmatprep.subr.mxu0 0.0
    %1487 = vmatpush1.msra.mxu0 0.0
    %1488 = vmatprep.subr.mxu0 0.0
    %1489 = vmatpush1.msra.mxu0 0.0
    %1490 = vmatprep.subr.mxu0 0.0
    %1491 = vmatpush1.msra.mxu0 0.0
    %1492 = vmatprep.subr.mxu0 0.0
    %1493 = vmatpush1.msra.mxu0 0.0
    %1494 = vmatprep.subr.mxu0 0.0
    %1495 = vmatpush1.msra.mxu0 0.0
    %1496 = vmatprep.subr.mxu0 0.0
    %1497 = vmatpush1.msra.mxu0 0.0
    %1498 = vmatprep.subr.mxu0 0.0
    %1499 = vmatpush1.msra.mxu0 0.0
    %1500 = vmatprep.subr.mxu0 0.0
    %1501 = vmatpush1.msra.mxu0 0.0
    %1502 = vmatprep.subr.mxu0 0.0
    %1503 = vmatpush1.msra.mxu0 0.0
    %1504 = vmatprep.subr.mxu0 0.0
    %1505 = vmatpush1.msra.mxu0 0.0
    %1506 = vmatprep.subr.mxu0 0.0
    %1507 = vmatpush1.msra.mxu0 0.0
    %1508 = vmatprep.subr.mxu0 0.0
    %1509 = vmatpush1.msra.mxu0 0.0
    %1510 = vmatprep.subr.mxu0 0.0
    %1511 = vmatpush1.msra.mxu0 0.0
    %1512 = vmatprep.subr.mxu0 0.0
    %1513 = vmatpush1.msra.mxu0 0.0
    %1514 = vmatprep.subr.mxu0 0.0
    %1515 = vmatpush1.msra.mxu0 0.0
    %1516 = vmatprep.subr.mxu0 0.0
    %1517 = vmatpush1.msra.mxu0 0.0
    %1518 = vmatprep.subr.mxu0 0.0
    %1519 = vmatpush1.msra.mxu0 0.0
    %1520 = vmatprep.subr.mxu0 0.0
    %1521 = vmatpush1.msra.mxu0 0.0
    %1522 = vmatprep.subr.mxu0 0.0
    %1523 = vmatpush1.msra.mxu0 0.0
    %1524 = vmatprep.mubr.f32.mxu0 0.0
    %1525 = vmatmul.mubr.f32.gmra.mrb[0].mxu0 %v1458
    %v1526 = vpop.f32.mrb[0].mxu0
    %v1527 = vadd.f32 0.0, %v1526
    %v1528 = vpop.f32.mrb[0].mxu0
    %v1529 = vadd.f32 0.0, %v1528
    %1530 = vdwg.mxu0
    %v1533 = vcombine.low %v1527, %v1529
    %v1535 = vunpack.c.l.s4 1983009808
    %v1536 = vunpack.c.0.s8 %v1535
    %v1537 = vlaneseq
    %v1538 = vshrl.u32 %v1537, 7
    %v1539 = vsub.s32 %v1536, %v1538
    %v1540 = vrot.slane %v1533, %v1539
    %v1542 = vadd.f32 %v1456, %v1540
    %v1543 = vxor.u32 %v1542, 2147483648
    %v1544 = vmul.f32 %v1543, 1.442695
    %v1545 = vpow.pop %v1544
    %v1546 = vadd.f32 %v1545, 1.0
    %v1547 = vrcp.pop %v1546
    %v1548 = vmul.f32 1.0, %v1547
    %1550 = vrot.lane.b32.xlu0 %v1542, 64
    %v1551 = vpop.permute.xlu0 %1550
    %v1552 = vrot.slane %v1551, 2
    %v1554 = vtanh.pop %v1552
    %v1555 = vmul.f32 %v1548, %v1444
    %v1556 = vmul.f32 %v1548, %v1554
    %1558 = vrot.lane.b32.xlu0 %v1556, 64
    %v1559 = vpop.permute.xlu0 %1558
    %v1561 = vadd.f32 %v1555, %v1559
    %v1562 = vtanh.pop %v1561
    %v1564 = vrot.slane %v1548, 2
    %1567 = vrot.lane.b32.xlu0 %v1562, 64
    %v1568 = vpop.permute.xlu0 %1567
    %v1570 = vmul.f32 %v1564, %v1568
    %s1571 = scalar_lea.vmem [#allocation3], 8
    %1572 = vst.msk [vmem:[%s1571] sm:$0x3] %vm280, %v1570
    %v1573 = vld [vmem:[%s518 + $0x4] sm:$0xf]
    %v1575 = vsel %vm165, %v1570, 0
    %1577 = vmatprep.subr.mxu0 %v68
    %1578 = vmatpush1.msra.mxu0 %v67
    %1579 = vmatprep.subr.mxu0 %v70
    %1580 = vmatpush1.msra.mxu0 %v69
    %1581 = vmatprep.subr.mxu0 %v72
    %1582 = vmatpush1.msra.mxu0 %v71
    %1583 = vmatprep.subr.mxu0 %v74
    %1584 = vmatpush1.msra.mxu0 %v73
    %1585 = vmatprep.subr.mxu0 %v76
    %1586 = vmatpush1.msra.mxu0 %v75
    %1587 = vmatprep.subr.mxu0 %v78
    %1588 = vmatpush1.msra.mxu0 %v77
    %1589 = vmatprep.subr.mxu0 %v80
    %1590 = vmatpush1.msra.mxu0 %v79
    %1591 = vmatprep.subr.mxu0 %v82
    %1592 = vmatpush1.msra.mxu0 %v81
    %1593 = vmatprep.subr.mxu0 0.0
    %1594 = vmatpush1.msra.mxu0 0.0
    %1595 = vmatprep.subr.mxu0 0.0
    %1596 = vmatpush1.msra.mxu0 0.0
    %1597 = vmatprep.subr.mxu0 0.0
    %1598 = vmatpush1.msra.mxu0 0.0
    %1599 = vmatprep.subr.mxu0 0.0
    %1600 = vmatpush1.msra.mxu0 0.0
    %1601 = vmatprep.subr.mxu0 0.0
    %1602 = vmatpush1.msra.mxu0 0.0
    %1603 = vmatprep.subr.mxu0 0.0
    %1604 = vmatpush1.msra.mxu0 0.0
    %1605 = vmatprep.subr.mxu0 0.0
    %1606 = vmatpush1.msra.mxu0 0.0
    %1607 = vmatprep.subr.mxu0 0.0
    %1608 = vmatpush1.msra.mxu0 0.0
    %1609 = vmatprep.subr.mxu0 0.0
    %1610 = vmatpush1.msra.mxu0 0.0
    %1611 = vmatprep.subr.mxu0 0.0
    %1612 = vmatpush1.msra.mxu0 0.0
    %1613 = vmatprep.subr.mxu0 0.0
    %1614 = vmatpush1.msra.mxu0 0.0
    %1615 = vmatprep.subr.mxu0 0.0
    %1616 = vmatpush1.msra.mxu0 0.0
    %1617 = vmatprep.subr.mxu0 0.0
    %1618 = vmatpush1.msra.mxu0 0.0
    %1619 = vmatprep.subr.mxu0 0.0
    %1620 = vmatpush1.msra.mxu0 0.0
    %1621 = vmatprep.subr.mxu0 0.0
    %1622 = vmatpush1.msra.mxu0 0.0
    %1623 = vmatprep.subr.mxu0 0.0
    %1624 = vmatpush1.msra.mxu0 0.0
    %1625 = vmatprep.subr.mxu0 0.0
    %1626 = vmatpush1.msra.mxu0 0.0
    %1627 = vmatprep.subr.mxu0 0.0
    %1628 = vmatpush1.msra.mxu0 0.0
    %1629 = vmatprep.subr.mxu0 0.0
    %1630 = vmatpush1.msra.mxu0 0.0
    %1631 = vmatprep.subr.mxu0 0.0
    %1632 = vmatpush1.msra.mxu0 0.0
    %1633 = vmatprep.subr.mxu0 0.0
    %1634 = vmatpush1.msra.mxu0 0.0
    %1635 = vmatprep.subr.mxu0 0.0
    %1636 = vmatpush1.msra.mxu0 0.0
    %1637 = vmatprep.subr.mxu0 0.0
    %1638 = vmatpush1.msra.mxu0 0.0
    %1639 = vmatprep.subr.mxu0 0.0
    %1640 = vmatpush1.msra.mxu0 0.0
    %1641 = vmatprep.mubr.f32.mxu0 0.0
    %1642 = vmatmul.mubr.f32.gmra.mrb[0].mxu0 %v1575
    %v1643 = vpop.f32.mrb[0].mxu0
    %v1644 = vadd.f32 0.0, %v1643
    %v1645 = vpop.f32.mrb[0].mxu0
    %v1646 = vadd.f32 0.0, %v1645
    %1647 = vdwg.mxu0
    %v1650 = vcombine.low %v1644, %v1646
    %v1652 = vunpack.c.l.s4 1983009808
    %v1653 = vunpack.c.0.s8 %v1652
    %v1654 = vlaneseq
    %v1655 = vshrl.u32 %v1654, 7
    %v1656 = vsub.s32 %v1653, %v1655
    %v1657 = vrot.slane %v1650, %v1656
    %v1659 = vadd.f32 %v1573, %v1657
    %v1660 = vxor.u32 %v1659, 2147483648
    %v1661 = vmul.f32 %v1660, 1.442695
    %v1662 = vpow.pop %v1661
    %v1663 = vadd.f32 %v1662, 1.0
    %v1664 = vrcp.pop %v1663
    %v1665 = vmul.f32 1.0, %v1664
    %1667 = vrot.lane.b32.xlu0 %v1659, 64
    %v1668 = vpop.permute.xlu0 %1667
    %v1669 = vrot.slane %v1668, 2
    %v1671 = vtanh.pop %v1669
    %v1672 = vmul.f32 %v1665, %v1561
    %v1673 = vmul.f32 %v1665, %v1671
    %1675 = vrot.lane.b32.xlu0 %v1673, 64
    %v1676 = vpop.permute.xlu0 %1675
    %v1678 = vadd.f32 %v1672, %v1676
    %v1679 = vtanh.pop %v1678
    %v1681 = vrot.slane %v1665, 2
    %1684 = vrot.lane.b32.xlu0 %v1679, 64
    %v1685 = vpop.permute.xlu0 %1684
    %v1687 = vmul.f32 %v1681, %v1685
    %s1688 = scalar_lea.vmem [#allocation3], 6
    %1689 = vst.msk [vmem:[%s1688] sm:$0x3] %vm280, %v1687
    %v1690 = vld [vmem:[%s400 + $0x4] sm:$0xf]
    %v1692 = vsel %vm165, %v1687, 0
    %1694 = vmatprep.subr.mxu0 %v68
    %1695 = vmatpush1.msra.mxu0 %v67
    %1696 = vmatprep.subr.mxu0 %v70
    %1697 = vmatpush1.msra.mxu0 %v69
    %1698 = vmatprep.subr.mxu0 %v72
    %1699 = vmatpush1.msra.mxu0 %v71
    %1700 = vmatprep.subr.mxu0 %v74
    %1701 = vmatpush1.msra.mxu0 %v73
    %1702 = vmatprep.subr.mxu0 %v76
    %1703 = vmatpush1.msra.mxu0 %v75
    %1704 = vmatprep.subr.mxu0 %v78
    %1705 = vmatpush1.msra.mxu0 %v77
    %1706 = vmatprep.subr.mxu0 %v80
    %1707 = vmatpush1.msra.mxu0 %v79
    %1708 = vmatprep.subr.mxu0 %v82
    %1709 = vmatpush1.msra.mxu0 %v81
    %1710 = vmatprep.subr.mxu0 0.0
    %1711 = vmatpush1.msra.mxu0 0.0
    %1712 = vmatprep.subr.mxu0 0.0
    %1713 = vmatpush1.msra.mxu0 0.0
    %1714 = vmatprep.subr.mxu0 0.0
    %1715 = vmatpush1.msra.mxu0 0.0
    %1716 = vmatprep.subr.mxu0 0.0
    %1717 = vmatpush1.msra.mxu0 0.0
    %1718 = vmatprep.subr.mxu0 0.0
    %1719 = vmatpush1.msra.mxu0 0.0
    %1720 = vmatprep.subr.mxu0 0.0
    %1721 = vmatpush1.msra.mxu0 0.0
    %1722 = vmatprep.subr.mxu0 0.0
    %1723 = vmatpush1.msra.mxu0 0.0
    %1724 = vmatprep.subr.mxu0 0.0
    %1725 = vmatpush1.msra.mxu0 0.0
    %1726 = vmatprep.subr.mxu0 0.0
    %1727 = vmatpush1.msra.mxu0 0.0
    %1728 = vmatprep.subr.mxu0 0.0
    %1729 = vmatpush1.msra.mxu0 0.0
    %1730 = vmatprep.subr.mxu0 0.0
    %1731 = vmatpush1.msra.mxu0 0.0
    %1732 = vmatprep.subr.mxu0 0.0
    %1733 = vmatpush1.msra.mxu0 0.0
    %1734 = vmatprep.subr.mxu0 0.0
    %1735 = vmatpush1.msra.mxu0 0.0
    %1736 = vmatprep.subr.mxu0 0.0
    %1737 = vmatpush1.msra.mxu0 0.0
    %1738 = vmatprep.subr.mxu0 0.0
    %1739 = vmatpush1.msra.mxu0 0.0
    %1740 = vmatprep.subr.mxu0 0.0
    %1741 = vmatpush1.msra.mxu0 0.0
    %1742 = vmatprep.subr.mxu0 0.0
    %1743 = vmatpush1.msra.mxu0 0.0
    %1744 = vmatprep.subr.mxu0 0.0
    %1745 = vmatpush1.msra.mxu0 0.0
    %1746 = vmatprep.subr.mxu0 0.0
    %1747 = vmatpush1.msra.mxu0 0.0
    %1748 = vmatprep.subr.mxu0 0.0
    %1749 = vmatpush1.msra.mxu0 0.0
    %1750 = vmatprep.subr.mxu0 0.0
    %1751 = vmatpush1.msra.mxu0 0.0
    %1752 = vmatprep.subr.mxu0 0.0
    %1753 = vmatpush1.msra.mxu0 0.0
    %1754 = vmatprep.subr.mxu0 0.0
    %1755 = vmatpush1.msra.mxu0 0.0
    %1756 = vmatprep.subr.mxu0 0.0
    %1757 = vmatpush1.msra.mxu0 0.0
    %1758 = vmatprep.mubr.f32.mxu0 0.0
    %1759 = vmatmul.mubr.f32.gmra.mrb[0].mxu0 %v1692
    %v1760 = vpop.f32.mrb[0].mxu0
    %v1761 = vadd.f32 0.0, %v1760
    %v1762 = vpop.f32.mrb[0].mxu0
    %v1763 = vadd.f32 0.0, %v1762
    %1764 = vdwg.mxu0
    %v1767 = vcombine.low %v1761, %v1763
    %v1769 = vunpack.c.l.s4 1983009808
    %v1770 = vunpack.c.0.s8 %v1769
    %v1771 = vlaneseq
    %v1772 = vshrl.u32 %v1771, 7
    %v1773 = vsub.s32 %v1770, %v1772
    %v1774 = vrot.slane %v1767, %v1773
    %v1776 = vadd.f32 %v1690, %v1774
    %v1777 = vxor.u32 %v1776, 2147483648
    %v1778 = vmul.f32 %v1777, 1.442695
    %v1779 = vpow.pop %v1778
    %v1780 = vadd.f32 %v1779, 1.0
    %v1781 = vrcp.pop %v1780
    %v1782 = vmul.f32 1.0, %v1781
    %1784 = vrot.lane.b32.xlu0 %v1776, 64
    %v1785 = vpop.permute.xlu0 %1784
    %v1786 = vrot.slane %v1785, 2
    %v1788 = vtanh.pop %v1786
    %v1789 = vmul.f32 %v1782, %v1678
    %v1790 = vmul.f32 %v1782, %v1788
    %1792 = vrot.lane.b32.xlu0 %v1790, 64
    %v1793 = vpop.permute.xlu0 %1792
    %v1795 = vadd.f32 %v1789, %v1793
    %v1796 = vtanh.pop %v1795
    %v1798 = vrot.slane %v1782, 2
    %1801 = vrot.lane.b32.xlu0 %v1796, 64
    %v1802 = vpop.permute.xlu0 %1801
    %v1804 = vmul.f32 %v1798, %v1802
    %s1805 = scalar_lea.vmem [#allocation3], 4
    %1806 = vst.msk [vmem:[%s1805] sm:$0x3] %vm280, %v1804
    %v1807 = vld [vmem:[%s282 + $0x4] sm:$0xf]
    %v1809 = vsel %vm165, %v1804, 0
    %1811 = vmatprep.subr.mxu0 %v68
    %1812 = vmatpush1.msra.mxu0 %v67
    %1813 = vmatprep.subr.mxu0 %v70
    %1814 = vmatpush1.msra.mxu0 %v69
    %1815 = vmatprep.subr.mxu0 %v72
    %1816 = vmatpush1.msra.mxu0 %v71
    %1817 = vmatprep.subr.mxu0 %v74
    %1818 = vmatpush1.msra.mxu0 %v73
    %1819 = vmatprep.subr.mxu0 %v76
    %1820 = vmatpush1.msra.mxu0 %v75
    %1821 = vmatprep.subr.mxu0 %v78
    %1822 = vmatpush1.msra.mxu0 %v77
    %1823 = vmatprep.subr.mxu0 %v80
    %1824 = vmatpush1.msra.mxu0 %v79
    %1825 = vmatprep.subr.mxu0 %v82
    %1826 = vmatpush1.msra.mxu0 %v81
    %1827 = vmatprep.subr.mxu0 0.0
    %1828 = vmatpush1.msra.mxu0 0.0
    %1829 = vmatprep.subr.mxu0 0.0
    %1830 = vmatpush1.msra.mxu0 0.0
    %1831 = vmatprep.subr.mxu0 0.0
    %1832 = vmatpush1.msra.mxu0 0.0
    %1833 = vmatprep.subr.mxu0 0.0
    %1834 = vmatpush1.msra.mxu0 0.0
    %1835 = vmatprep.subr.mxu0 0.0
    %1836 = vmatpush1.msra.mxu0 0.0
    %1837 = vmatprep.subr.mxu0 0.0
    %1838 = vmatpush1.msra.mxu0 0.0
    %1839 = vmatprep.subr.mxu0 0.0
    %1840 = vmatpush1.msra.mxu0 0.0
    %1841 = vmatprep.subr.mxu0 0.0
    %1842 = vmatpush1.msra.mxu0 0.0
    %1843 = vmatprep.subr.mxu0 0.0
    %1844 = vmatpush1.msra.mxu0 0.0
    %1845 = vmatprep.subr.mxu0 0.0
    %1846 = vmatpush1.msra.mxu0 0.0
    %1847 = vmatprep.subr.mxu0 0.0
    %1848 = vmatpush1.msra.mxu0 0.0
    %1849 = vmatprep.subr.mxu0 0.0
    %1850 = vmatpush1.msra.mxu0 0.0
    %1851 = vmatprep.subr.mxu0 0.0
    %1852 = vmatpush1.msra.mxu0 0.0
    %1853 = vmatprep.subr.mxu0 0.0
    %1854 = vmatpush1.msra.mxu0 0.0
    %1855 = vmatprep.subr.mxu0 0.0
    %1856 = vmatpush1.msra.mxu0 0.0
    %1857 = vmatprep.subr.mxu0 0.0
    %1858 = vmatpush1.msra.mxu0 0.0
    %1859 = vmatprep.subr.mxu0 0.0
    %1860 = vmatpush1.msra.mxu0 0.0
    %1861 = vmatprep.subr.mxu0 0.0
    %1862 = vmatpush1.msra.mxu0 0.0
    %1863 = vmatprep.subr.mxu0 0.0
    %1864 = vmatpush1.msra.mxu0 0.0
    %1865 = vmatprep.subr.mxu0 0.0
    %1866 = vmatpush1.msra.mxu0 0.0
    %1867 = vmatprep.subr.mxu0 0.0
    %1868 = vmatpush1.msra.mxu0 0.0
    %1869 = vmatprep.subr.mxu0 0.0
    %1870 = vmatpush1.msra.mxu0 0.0
    %1871 = vmatprep.subr.mxu0 0.0
    %1872 = vmatpush1.msra.mxu0 0.0
    %1873 = vmatprep.subr.mxu0 0.0
    %1874 = vmatpush1.msra.mxu0 0.0
    %1875 = vmatprep.mubr.f32.mxu0 0.0
    %1876 = vmatmul.mubr.f32.gmra.mrb[0].mxu0 %v1809
    %v1877 = vpop.f32.mrb[0].mxu0
    %v1878 = vadd.f32 0.0, %v1877
    %v1879 = vpop.f32.mrb[0].mxu0
    %v1880 = vadd.f32 0.0, %v1879
    %1881 = vdwg.mxu0
    %v1884 = vcombine.low %v1878, %v1880
    %v1886 = vunpack.c.l.s4 1983009808
    %v1887 = vunpack.c.0.s8 %v1886
    %v1888 = vlaneseq
    %v1889 = vshrl.u32 %v1888, 7
    %v1890 = vsub.s32 %v1887, %v1889
    %v1891 = vrot.slane %v1884, %v1890
    %v1893 = vadd.f32 %v1807, %v1891
    %v1894 = vxor.u32 %v1893, 2147483648
    %v1895 = vmul.f32 %v1894, 1.442695
    %v1896 = vpow.pop %v1895
    %v1897 = vadd.f32 %v1896, 1.0
    %v1898 = vrcp.pop %v1897
    %v1899 = vmul.f32 1.0, %v1898
    %1901 = vrot.lane.b32.xlu0 %v1893, 64
    %v1902 = vpop.permute.xlu0 %1901
    %v1903 = vrot.slane %v1902, 2
    %v1905 = vtanh.pop %v1903
    %v1906 = vmul.f32 %v1899, %v1795
    %v1907 = vmul.f32 %v1899, %v1905
    %1909 = vrot.lane.b32.xlu0 %v1907, 64
    %v1910 = vpop.permute.xlu0 %1909
    %v1912 = vadd.f32 %v1906, %v1910
    %v1913 = vtanh.pop %v1912
    %v1915 = vrot.slane %v1899, 2
    %1918 = vrot.lane.b32.xlu0 %v1913, 64
    %v1919 = vpop.permute.xlu0 %1918
    %v1921 = vmul.f32 %v1915, %v1919
    %s1922 = scalar_lea.vmem [#allocation3], 2
    %1923 = vst.msk [vmem:[%s1922] sm:$0x3] %vm280, %v1921
    %v1924 = vld [vmem:[%s0 + $0x4] sm:$0xf]
    %v1926 = vsel %vm165, %v1921, 0
    %1928 = vmatprep.subr.mxu0 %v68
    %1929 = vmatpush1.msra.mxu0 %v67
    %1930 = vmatprep.subr.mxu0 %v70
    %1931 = vmatpush1.msra.mxu0 %v69
    %1932 = vmatprep.subr.mxu0 %v72
    %1933 = vmatpush1.msra.mxu0 %v71
    %1934 = vmatprep.subr.mxu0 %v74
    %1935 = vmatpush1.msra.mxu0 %v73
    %1936 = vmatprep.subr.mxu0 %v76
    %1937 = vmatpush1.msra.mxu0 %v75
    %1938 = vmatprep.subr.mxu0 %v78
    %1939 = vmatpush1.msra.mxu0 %v77
    %1940 = vmatprep.subr.mxu0 %v80
    %1941 = vmatpush1.msra.mxu0 %v79
    %1942 = vmatprep.subr.mxu0 %v82
    %1943 = vmatpush1.msra.mxu0 %v81
    %1944 = vmatprep.subr.mxu0 0.0
    %1945 = vmatpush1.msra.mxu0 0.0
    %1946 = vmatprep.subr.mxu0 0.0
    %1947 = vmatpush1.msra.mxu0 0.0
    %1948 = vmatprep.subr.mxu0 0.0
    %1949 = vmatpush1.msra.mxu0 0.0
    %1950 = vmatprep.subr.mxu0 0.0
    %1951 = vmatpush1.msra.mxu0 0.0
    %1952 = vmatprep.subr.mxu0 0.0
    %1953 = vmatpush1.msra.mxu0 0.0
    %1954 = vmatprep.subr.mxu0 0.0
    %1955 = vmatpush1.msra.mxu0 0.0
    %1956 = vmatprep.subr.mxu0 0.0
    %1957 = vmatpush1.msra.mxu0 0.0
    %1958 = vmatprep.subr.mxu0 0.0
    %1959 = vmatpush1.msra.mxu0 0.0
    %1960 = vmatprep.subr.mxu0 0.0
    %1961 = vmatpush1.msra.mxu0 0.0
    %1962 = vmatprep.subr.mxu0 0.0
    %1963 = vmatpush1.msra.mxu0 0.0
    %1964 = vmatprep.subr.mxu0 0.0
    %1965 = vmatpush1.msra.mxu0 0.0
    %1966 = vmatprep.subr.mxu0 0.0
    %1967 = vmatpush1.msra.mxu0 0.0
    %1968 = vmatprep.subr.mxu0 0.0
    %1969 = vmatpush1.msra.mxu0 0.0
    %1970 = vmatprep.subr.mxu0 0.0
    %1971 = vmatpush1.msra.mxu0 0.0
    %1972 = vmatprep.subr.mxu0 0.0
    %1973 = vmatpush1.msra.mxu0 0.0
    %1974 = vmatprep.subr.mxu0 0.0
    %1975 = vmatpush1.msra.mxu0 0.0
    %1976 = vmatprep.subr.mxu0 0.0
    %1977 = vmatpush1.msra.mxu0 0.0
    %1978 = vmatprep.subr.mxu0 0.0
    %1979 = vmatpush1.msra.mxu0 0.0
    %1980 = vmatprep.subr.mxu0 0.0
    %1981 = vmatpush1.msra.mxu0 0.0
    %1982 = vmatprep.subr.mxu0 0.0
    %1983 = vmatpush1.msra.mxu0 0.0
    %1984 = vmatprep.subr.mxu0 0.0
    %1985 = vmatpush1.msra.mxu0 0.0
    %1986 = vmatprep.subr.mxu0 0.0
    %1987 = vmatpush1.msra.mxu0 0.0
    %1988 = vmatprep.subr.mxu0 0.0
    %1989 = vmatpush1.msra.mxu0 0.0
    %1990 = vmatprep.subr.mxu0 0.0
    %1991 = vmatpush1.msra.mxu0 0.0
    %1992 = vmatprep.mubr.f32.mxu0 0.0
    %1993 = vmatmul.mubr.f32.gmra.mrb[0].mxu0 %v1926
    %v1994 = vpop.f32.mrb[0].mxu0
    %v1995 = vadd.f32 0.0, %v1994
    %v1996 = vpop.f32.mrb[0].mxu0
    %v1997 = vadd.f32 0.0, %v1996
    %1998 = vdwg.mxu0
    %v2001 = vcombine.low %v1995, %v1997
    %v2003 = vunpack.c.l.s4 1983009808
    %v2004 = vunpack.c.0.s8 %v2003
    %v2005 = vlaneseq
    %v2006 = vshrl.u32 %v2005, 7
    %v2007 = vsub.s32 %v2004, %v2006
    %v2008 = vrot.slane %v2001, %v2007
    %v2010 = vadd.f32 %v1924, %v2008
    %v2011 = vxor.u32 %v2010, 2147483648
    %v2012 = vmul.f32 %v2011, 1.442695
    %v2013 = vpow.pop %v2012
    %v2014 = vadd.f32 %v2013, 1.0
    %v2015 = vrcp.pop %v2014
    %v2016 = vmul.f32 1.0, %v2015
    %2018 = vrot.lane.b32.xlu0 %v2010, 64
    %v2019 = vpop.permute.xlu0 %2018
    %v2020 = vrot.slane %v2019, 2
    %v2022 = vtanh.pop %v2020
    %v2023 = vmul.f32 %v2016, %v1912
    %v2024 = vmul.f32 %v2016, %v2022
    %2026 = vrot.lane.b32.xlu0 %v2024, 64
    %v2027 = vpop.permute.xlu0 %2026
    %v2029 = vadd.f32 %v2023, %v2027
    %v2030 = vtanh.pop %v2029
    %v2032 = vrot.slane %v2016, 2
    %2035 = vrot.lane.b32.xlu0 %v2030, 64
    %v2036 = vpop.permute.xlu0 %2035
    %v2038 = vmul.f32 %v2032, %v2036
    %2039 = vst.msk [vmem:[#allocation3] sm:$0x3] %vm280, %v2038
    %v2040 = vld [vmem:[#allocation2] sm:$0x3]
    %v2041 = vld [vmem:[#allocation3] sm:$0x3]
    %2043 = vrot.lane.b32.xlu0 %v2041, 64
    %v2044 = vpop.permute.xlu0 %2043
    %v2046 = vsel %vm165, %v2040, %v2044
    %v2048 = vlaneseq
    %v2049 = vshrl.u32 %v2048, 7
    %v2050 = vsub.s32 0, %v2049
    %v2051 = vrot.slane %v147, %v2050
    %v2052 = vlaneseq
    %v2053 = vshrl.u32 %v2052, 7
    %v2054 = vsub.s32 1, %v2053
    %v2055 = vrot.slane %v147, %v2054
    %v2056 = vlaneseq
    %v2057 = vshrl.u32 %v2056, 7
    %v2058 = vsub.s32 2, %v2057
    %v2059 = vrot.slane %v147, %v2058
    %v2060 = vlaneseq
    %v2061 = vshrl.u32 %v2060, 7
    %v2062 = vsub.s32 3, %v2061
    %v2063 = vrot.slane %v147, %v2062
    %2068 = vmatprep.subr.mxu0 %v84
    %2069 = vmatpush1.msra.mxu0 %v83
    %2070 = vmatprep.subr.mxu0 %v88
    %2071 = vmatpush1.msra.mxu0 %v87
    %2072 = vmatprep.subr.mxu0 %v92
    %2073 = vmatpush1.msra.mxu0 %v91
    %2074 = vmatprep.subr.mxu0 %v96
    %2075 = vmatpush1.msra.mxu0 %v95
    %2076 = vmatprep.subr.mxu0 %v100
    %2077 = vmatpush1.msra.mxu0 %v99
    %2078 = vmatprep.subr.mxu0 %v104
    %2079 = vmatpush1.msra.mxu0 %v103
    %2080 = vmatprep.subr.mxu0 %v108
    %2081 = vmatpush1.msra.mxu0 %v107
    %2082 = vmatprep.subr.mxu0 %v112
    %2083 = vmatpush1.msra.mxu0 %v111
    %2084 = vmatprep.subr.mxu0 %v116
    %2085 = vmatpush1.msra.mxu0 %v115
    %2086 = vmatprep.subr.mxu0 %v120
    %2087 = vmatpush1.msra.mxu0 %v119
    %2088 = vmatprep.subr.mxu0 %v124
    %2089 = vmatpush1.msra.mxu0 %v123
    %2090 = vmatprep.subr.mxu0 %v128
    %2091 = vmatpush1.msra.mxu0 %v127
    %2092 = vmatprep.subr.mxu0 %v132
    %2093 = vmatpush1.msra.mxu0 %v131
    %2094 = vmatprep.subr.mxu0 %v136
    %2095 = vmatpush1.msra.mxu0 %v135
    %2096 = vmatprep.subr.mxu0 %v140
    %2097 = vmatpush1.msra.mxu0 %v139
    %2098 = vmatprep.subr.mxu0 %v144
    %2099 = vmatpush1.msra.mxu0 %v143
    %2100 = vmatprep.subr.mxu0 0.0
    %2101 = vmatpush1.msra.mxu0 0.0
    %2102 = vmatprep.subr.mxu0 0.0
    %2103 = vmatpush1.msra.mxu0 0.0
    %2104 = vmatprep.subr.mxu0 0.0
    %2105 = vmatpush1.msra.mxu0 0.0
    %2106 = vmatprep.subr.mxu0 0.0
    %2107 = vmatpush1.msra.mxu0 0.0
    %2108 = vmatprep.subr.mxu0 0.0
    %2109 = vmatpush1.msra.mxu0 0.0
    %2110 = vmatprep.subr.mxu0 0.0
    %2111 = vmatpush1.msra.mxu0 0.0
    %2112 = vmatprep.subr.mxu0 0.0
    %2113 = vmatpush1.msra.mxu0 0.0
    %2114 = vmatprep.subr.mxu0 0.0
    %2115 = vmatpush1.msra.mxu0 0.0
    %2116 = vmatprep.subr.mxu0 0.0
    %2117 = vmatpush1.msra.mxu0 0.0
    %2118 = vmatprep.subr.mxu0 0.0
    %2119 = vmatpush1.msra.mxu0 0.0
    %2120 = vmatprep.subr.mxu0 0.0
    %2121 = vmatpush1.msra.mxu0 0.0
    %2122 = vmatprep.subr.mxu0 0.0
    %2123 = vmatpush1.msra.mxu0 0.0
    %2124 = vmatprep.subr.mxu0 0.0
    %2125 = vmatpush1.msra.mxu0 0.0
    %2126 = vmatprep.subr.mxu0 0.0
    %2127 = vmatpush1.msra.mxu0 0.0
    %2128 = vmatprep.subr.mxu0 0.0
    %2129 = vmatpush1.msra.mxu0 0.0
    %2130 = vmatprep.subr.mxu0 0.0
    %2131 = vmatpush1.msra.mxu0 0.0
    %2132 = vmatprep.mubr.f32.mxu0 0.0
    %2133 = vmatmul.mubr.f32.gmra.mrb[0].mxu0 %v2046
    %v2134 = vpop.f32.mrb[0].mxu0
    %v2135 = vadd.f32 %v2051, %v2134
    %v2136 = vpop.f32.mrb[0].mxu0
    %v2137 = vadd.f32 %v2055, %v2136
    %2138 = vdwg.mxu0
    %2139 = vmatprep.subr.mxu0 %v86
    %2140 = vmatpush1.msra.mxu0 %v85
    %2141 = vmatprep.subr.mxu0 %v90
    %2142 = vmatpush1.msra.mxu0 %v89
    %2143 = vmatprep.subr.mxu0 %v94
    %2144 = vmatpush1.msra.mxu0 %v93
    %2145 = vmatprep.subr.mxu0 %v98
    %2146 = vmatpush1.msra.mxu0 %v97
    %2147 = vmatprep.subr.mxu0 %v102
    %2148 = vmatpush1.msra.mxu0 %v101
    %2149 = vmatprep.subr.mxu0 %v106
    %2150 = vmatpush1.msra.mxu0 %v105
    %2151 = vmatprep.subr.mxu0 %v110
    %2152 = vmatpush1.msra.mxu0 %v109
    %2153 = vmatprep.subr.mxu0 %v114
    %2154 = vmatpush1.msra.mxu0 %v113
    %2155 = vmatprep.subr.mxu0 %v118
    %2156 = vmatpush1.msra.mxu0 %v117
    %2157 = vmatprep.subr.mxu0 %v122
    %2158 = vmatpush1.msra.mxu0 %v121
    %2159 = vmatprep.subr.mxu0 %v126
    %2160 = vmatpush1.msra.mxu0 %v125
    %2161 = vmatprep.subr.mxu0 %v130
    %2162 = vmatpush1.msra.mxu0 %v129
    %2163 = vmatprep.subr.mxu0 %v134
    %2164 = vmatpush1.msra.mxu0 %v133
    %2165 = vmatprep.subr.mxu0 %v138
    %2166 = vmatpush1.msra.mxu0 %v137
    %2167 = vmatprep.subr.mxu0 %v142
    %2168 = vmatpush1.msra.mxu0 %v141
    %2169 = vmatprep.subr.mxu0 %v146
    %2170 = vmatpush1.msra.mxu0 %v145
    %2171 = vmatprep.subr.mxu0 0.0
    %2172 = vmatpush1.msra.mxu0 0.0
    %2173 = vmatprep.subr.mxu0 0.0
    %2174 = vmatpush1.msra.mxu0 0.0
    %2175 = vmatprep.subr.mxu0 0.0
    %2176 = vmatpush1.msra.mxu0 0.0
    %2177 = vmatprep.subr.mxu0 0.0
    %2178 = vmatpush1.msra.mxu0 0.0
    %2179 = vmatprep.subr.mxu0 0.0
    %2180 = vmatpush1.msra.mxu0 0.0
    %2181 = vmatprep.subr.mxu0 0.0
    %2182 = vmatpush1.msra.mxu0 0.0
    %2183 = vmatprep.subr.mxu0 0.0
    %2184 = vmatpush1.msra.mxu0 0.0
    %2185 = vmatprep.subr.mxu0 0.0
    %2186 = vmatpush1.msra.mxu0 0.0
    %2187 = vmatprep.subr.mxu0 0.0
    %2188 = vmatpush1.msra.mxu0 0.0
    %2189 = vmatprep.subr.mxu0 0.0
    %2190 = vmatpush1.msra.mxu0 0.0
    %2191 = vmatprep.subr.mxu0 0.0
    %2192 = vmatpush1.msra.mxu0 0.0
    %2193 = vmatprep.subr.mxu0 0.0
    %2194 = vmatpush1.msra.mxu0 0.0
    %2195 = vmatprep.subr.mxu0 0.0
    %2196 = vmatpush1.msra.mxu0 0.0
    %2197 = vmatprep.subr.mxu0 0.0
    %2198 = vmatpush1.msra.mxu0 0.0
    %2199 = vmatprep.subr.mxu0 0.0
    %2200 = vmatpush1.msra.mxu0 0.0
    %2201 = vmatprep.subr.mxu0 0.0
    %2202 = vmatpush1.msra.mxu0 0.0
    %2203 = vmatprep.mubr.f32.mxu0 0.0
    %2204 = vmatmul.mubr.f32.gmra.mrb[0].mxu0 %v2046
    %v2205 = vpop.f32.mrb[0].mxu0
    %v2206 = vadd.f32 %v2059, %v2205
    %v2207 = vpop.f32.mrb[0].mxu0
    %v2208 = vadd.f32 %v2063, %v2207
    %2209 = vdwg.mxu0
    %v2214 = vcombine.low %v2135, %v2137
    %v2215 = vcombine.low %v2206, %v2208
    %v2217 = vunpack.c.l.s4 1983009808
    %v2218 = vunpack.c.0.s8 %v2217
    %v2219 = vlaneseq
    %v2220 = vshrl.u32 %v2219, 7
    %v2221 = vsub.s32 %v2218, %v2220
    %v2222 = vrot.slane %v2214, %v2221
    %v2224 = vunpack.c.l.s4 1983009808
    %v2225 = vunpack.c.0.s8 %v2224
    %v2226 = vlaneseq
    %v2227 = vshrl.u32 %v2226, 7
    %v2228 = vsub.s32 %v2225, %v2227
    %v2229 = vrot.slane %v2215, %v2228
    %v2230 = vcombine.low %v2222, %v2229
    %2232 = vst [vmem:[#allocation4] sm:$0xff] %v2230
    %v2233 = vld [vmem:[%s398] sm:$0x3]
    %v2234 = vld [vmem:[%s1922] sm:$0x3]
    %2236 = vrot.lane.b32.xlu0 %v2234, 64
    %v2237 = vpop.permute.xlu0 %2236
    %v2239 = vsel %vm165, %v2233, %v2237
    %2240 = vmatprep.subr.mxu0 %v84
    %2241 = vmatpush1.msra.mxu0 %v83
    %2242 = vmatprep.subr.mxu0 %v88
    %2243 = vmatpush1.msra.mxu0 %v87
    %2244 = vmatprep.subr.mxu0 %v92
    %2245 = vmatpush1.msra.mxu0 %v91
    %2246 = vmatprep.subr.mxu0 %v96
    %2247 = vmatpush1.msra.mxu0 %v95
    %2248 = vmatprep.subr.mxu0 %v100
    %2249 = vmatpush1.msra.mxu0 %v99
    %2250 = vmatprep.subr.mxu0 %v104
    %2251 = vmatpush1.msra.mxu0 %v103
    %2252 = vmatprep.subr.mxu0 %v108
    %2253 = vmatpush1.msra.mxu0 %v107
    %2254 = vmatprep.subr.mxu0 %v112
    %2255 = vmatpush1.msra.mxu0 %v111
    %2256 = vmatprep.subr.mxu0 %v116
    %2257 = vmatpush1.msra.mxu0 %v115
    %2258 = vmatprep.subr.mxu0 %v120
    %2259 = vmatpush1.msra.mxu0 %v119
    %2260 = vmatprep.subr.mxu0 %v124
    %2261 = vmatpush1.msra.mxu0 %v123
    %2262 = vmatprep.subr.mxu0 %v128
    %2263 = vmatpush1.msra.mxu0 %v127
    %2264 = vmatprep.subr.mxu0 %v132
    %2265 = vmatpush1.msra.mxu0 %v131
    %2266 = vmatprep.subr.mxu0 %v136
    %2267 = vmatpush1.msra.mxu0 %v135
    %2268 = vmatprep.subr.mxu0 %v140
    %2269 = vmatpush1.msra.mxu0 %v139
    %2270 = vmatprep.subr.mxu0 %v144
    %2271 = vmatpush1.msra.mxu0 %v143
    %2272 = vmatprep.subr.mxu0 0.0
    %2273 = vmatpush1.msra.mxu0 0.0
    %2274 = vmatprep.subr.mxu0 0.0
    %2275 = vmatpush1.msra.mxu0 0.0
    %2276 = vmatprep.subr.mxu0 0.0
    %2277 = vmatpush1.msra.mxu0 0.0
    %2278 = vmatprep.subr.mxu0 0.0
    %2279 = vmatpush1.msra.mxu0 0.0
    %2280 = vmatprep.subr.mxu0 0.0
    %2281 = vmatpush1.msra.mxu0 0.0
    %2282 = vmatprep.subr.mxu0 0.0
    %2283 = vmatpush1.msra.mxu0 0.0
    %2284 = vmatprep.subr.mxu0 0.0
    %2285 = vmatpush1.msra.mxu0 0.0
    %2286 = vmatprep.subr.mxu0 0.0
    %2287 = vmatpush1.msra.mxu0 0.0
    %2288 = vmatprep.subr.mxu0 0.0
    %2289 = vmatpush1.msra.mxu0 0.0
    %2290 = vmatprep.subr.mxu0 0.0
    %2291 = vmatpush1.msra.mxu0 0.0
    %2292 = vmatprep.subr.mxu0 0.0
    %2293 = vmatpush1.msra.mxu0 0.0
    %2294 = vmatprep.subr.mxu0 0.0
    %2295 = vmatpush1.msra.mxu0 0.0
    %2296 = vmatprep.subr.mxu0 0.0
    %2297 = vmatpush1.msra.mxu0 0.0
    %2298 = vmatprep.subr.mxu0 0.0
    %2299 = vmatpush1.msra.mxu0 0.0
    %2300 = vmatprep.subr.mxu0 0.0
    %2301 = vmatpush1.msra.mxu0 0.0
    %2302 = vmatprep.subr.mxu0 0.0
    %2303 = vmatpush1.msra.mxu0 0.0
    %2304 = vmatprep.mubr.f32.mxu0 0.0
    %2305 = vmatmul.mubr.f32.gmra.mrb[0].mxu0 %v2239
    %v2306 = vpop.f32.mrb[0].mxu0
    %v2307 = vadd.f32 %v2051, %v2306
    %v2308 = vpop.f32.mrb[0].mxu0
    %v2309 = vadd.f32 %v2055, %v2308
    %2310 = vdwg.mxu0
    %2311 = vmatprep.subr.mxu0 %v86
    %2312 = vmatpush1.msra.mxu0 %v85
    %2313 = vmatprep.subr.mxu0 %v90
    %2314 = vmatpush1.msra.mxu0 %v89
    %2315 = vmatprep.subr.mxu0 %v94
    %2316 = vmatpush1.msra.mxu0 %v93
    %2317 = vmatprep.subr.mxu0 %v98
    %2318 = vmatpush1.msra.mxu0 %v97
    %2319 = vmatprep.subr.mxu0 %v102
    %2320 = vmatpush1.msra.mxu0 %v101
    %2321 = vmatprep.subr.mxu0 %v106
    %2322 = vmatpush1.msra.mxu0 %v105
    %2323 = vmatprep.subr.mxu0 %v110
    %2324 = vmatpush1.msra.mxu0 %v109
    %2325 = vmatprep.subr.mxu0 %v114
    %2326 = vmatpush1.msra.mxu0 %v113
    %2327 = vmatprep.subr.mxu0 %v118
    %2328 = vmatpush1.msra.mxu0 %v117
    %2329 = vmatprep.subr.mxu0 %v122
    %2330 = vmatpush1.msra.mxu0 %v121
    %2331 = vmatprep.subr.mxu0 %v126
    %2332 = vmatpush1.msra.mxu0 %v125
    %2333 = vmatprep.subr.mxu0 %v130
    %2334 = vmatpush1.msra.mxu0 %v129
    %2335 = vmatprep.subr.mxu0 %v134
    %2336 = vmatpush1.msra.mxu0 %v133
    %2337 = vmatprep.subr.mxu0 %v138
    %2338 = vmatpush1.msra.mxu0 %v137
    %2339 = vmatprep.subr.mxu0 %v142
    %2340 = vmatpush1.msra.mxu0 %v141
    %2341 = vmatprep.subr.mxu0 %v146
    %2342 = vmatpush1.msra.mxu0 %v145
    %2343 = vmatprep.subr.mxu0 0.0
    %2344 = vmatpush1.msra.mxu0 0.0
    %2345 = vmatprep.subr.mxu0 0.0
    %2346 = vmatpush1.msra.mxu0 0.0
    %2347 = vmatprep.subr.mxu0 0.0
    %2348 = vmatpush1.msra.mxu0 0.0
    %2349 = vmatprep.subr.mxu0 0.0
    %2350 = vmatpush1.msra.mxu0 0.0
    %2351 = vmatprep.subr.mxu0 0.0
    %2352 = vmatpush1.msra.mxu0 0.0
    %2353 = vmatprep.subr.mxu0 0.0
    %2354 = vmatpush1.msra.mxu0 0.0
    %2355 = vmatprep.subr.mxu0 0.0
    %2356 = vmatpush1.msra.mxu0 0.0
    %2357 = vmatprep.subr.mxu0 0.0
    %2358 = vmatpush1.msra.mxu0 0.0
    %2359 = vmatprep.subr.mxu0 0.0
    %2360 = vmatpush1.msra.mxu0 0.0
    %2361 = vmatprep.subr.mxu0 0.0
    %2362 = vmatpush1.msra.mxu0 0.0
    %2363 = vmatprep.subr.mxu0 0.0
    %2364 = vmatpush1.msra.mxu0 0.0
    %2365 = vmatprep.subr.mxu0 0.0
    %2366 = vmatpush1.msra.mxu0 0.0
    %2367 = vmatprep.subr.mxu0 0.0
    %2368 = vmatpush1.msra.mxu0 0.0
    %2369 = vmatprep.subr.mxu0 0.0
    %2370 = vmatpush1.msra.mxu0 0.0
    %2371 = vmatprep.subr.mxu0 0.0
    %2372 = vmatpush1.msra.mxu0 0.0
    %2373 = vmatprep.subr.mxu0 0.0
    %2374 = vmatpush1.msra.mxu0 0.0
    %2375 = vmatprep.mubr.f32.mxu0 0.0
    %2376 = vmatmul.mubr.f32.gmra.mrb[0].mxu0 %v2239
    %v2377 = vpop.f32.mrb[0].mxu0
    %v2378 = vadd.f32 %v2059, %v2377
    %v2379 = vpop.f32.mrb[0].mxu0
    %v2380 = vadd.f32 %v2063, %v2379
    %2381 = vdwg.mxu0
    %v2386 = vcombine.low %v2307, %v2309
    %v2387 = vcombine.low %v2378, %v2380
    %v2389 = vunpack.c.l.s4 1983009808
    %v2390 = vunpack.c.0.s8 %v2389
    %v2391 = vlaneseq
    %v2392 = vshrl.u32 %v2391, 7
    %v2393 = vsub.s32 %v2390, %v2392
    %v2394 = vrot.slane %v2386, %v2393
    %v2396 = vunpack.c.l.s4 1983009808
    %v2397 = vunpack.c.0.s8 %v2396
    %v2398 = vlaneseq
    %v2399 = vshrl.u32 %v2398, 7
    %v2400 = vsub.s32 %v2397, %v2399
    %v2401 = vrot.slane %v2387, %v2400
    %v2402 = vcombine.low %v2394, %v2401
    %s2404 = scalar_lea.vmem [#allocation4], 8
    %2405 = vst [vmem:[%s2404] sm:$0xff] %v2402
    %v2406 = vld [vmem:[%s516] sm:$0x3]
    %v2407 = vld [vmem:[%s1805] sm:$0x3]
    %2409 = vrot.lane.b32.xlu0 %v2407, 64
    %v2410 = vpop.permute.xlu0 %2409
    %v2412 = vsel %vm165, %v2406, %v2410
    %2413 = vmatprep.subr.mxu0 %v84
    %2414 = vmatpush1.msra.mxu0 %v83
    %2415 = vmatprep.subr.mxu0 %v88
    %2416 = vmatpush1.msra.mxu0 %v87
    %2417 = vmatprep.subr.mxu0 %v92
    %2418 = vmatpush1.msra.mxu0 %v91
    %2419 = vmatprep.subr.mxu0 %v96
    %2420 = vmatpush1.msra.mxu0 %v95
    %2421 = vmatprep.subr.mxu0 %v100
    %2422 = vmatpush1.msra.mxu0 %v99
    %2423 = vmatprep.subr.mxu0 %v104
    %2424 = vmatpush1.msra.mxu0 %v103
    %2425 = vmatprep.subr.mxu0 %v108
    %2426 = vmatpush1.msra.mxu0 %v107
    %2427 = vmatprep.subr.mxu0 %v112
    %2428 = vmatpush1.msra.mxu0 %v111
    %2429 = vmatprep.subr.mxu0 %v116
    %2430 = vmatpush1.msra.mxu0 %v115
    %2431 = vmatprep.subr.mxu0 %v120
    %2432 = vmatpush1.msra.mxu0 %v119
    %2433 = vmatprep.subr.mxu0 %v124
    %2434 = vmatpush1.msra.mxu0 %v123
    %2435 = vmatprep.subr.mxu0 %v128
    %2436 = vmatpush1.msra.mxu0 %v127
    %2437 = vmatprep.subr.mxu0 %v132
    %2438 = vmatpush1.msra.mxu0 %v131
    %2439 = vmatprep.subr.mxu0 %v136
    %2440 = vmatpush1.msra.mxu0 %v135
    %2441 = vmatprep.subr.mxu0 %v140
    %2442 = vmatpush1.msra.mxu0 %v139
    %2443 = vmatprep.subr.mxu0 %v144
    %2444 = vmatpush1.msra.mxu0 %v143
    %2445 = vmatprep.subr.mxu0 0.0
    %2446 = vmatpush1.msra.mxu0 0.0
    %2447 = vmatprep.subr.mxu0 0.0
    %2448 = vmatpush1.msra.mxu0 0.0
    %2449 = vmatprep.subr.mxu0 0.0
    %2450 = vmatpush1.msra.mxu0 0.0
    %2451 = vmatprep.subr.mxu0 0.0
    %2452 = vmatpush1.msra.mxu0 0.0
    %2453 = vmatprep.subr.mxu0 0.0
    %2454 = vmatpush1.msra.mxu0 0.0
    %2455 = vmatprep.subr.mxu0 0.0
    %2456 = vmatpush1.msra.mxu0 0.0
    %2457 = vmatprep.subr.mxu0 0.0
    %2458 = vmatpush1.msra.mxu0 0.0
    %2459 = vmatprep.subr.mxu0 0.0
    %2460 = vmatpush1.msra.mxu0 0.0
    %2461 = vmatprep.subr.mxu0 0.0
    %2462 = vmatpush1.msra.mxu0 0.0
    %2463 = vmatprep.subr.mxu0 0.0
    %2464 = vmatpush1.msra.mxu0 0.0
    %2465 = vmatprep.subr.mxu0 0.0
    %2466 = vmatpush1.msra.mxu0 0.0
    %2467 = vmatprep.subr.mxu0 0.0
    %2468 = vmatpush1.msra.mxu0 0.0
    %2469 = vmatprep.subr.mxu0 0.0
    %2470 = vmatpush1.msra.mxu0 0.0
    %2471 = vmatprep.subr.mxu0 0.0
    %2472 = vmatpush1.msra.mxu0 0.0
    %2473 = vmatprep.subr.mxu0 0.0
    %2474 = vmatpush1.msra.mxu0 0.0
    %2475 = vmatprep.subr.mxu0 0.0
    %2476 = vmatpush1.msra.mxu0 0.0
    %2477 = vmatprep.mubr.f32.mxu0 0.0
    %2478 = vmatmul.mubr.f32.gmra.mrb[0].mxu0 %v2412
    %v2479 = vpop.f32.mrb[0].mxu0
    %v2480 = vadd.f32 %v2051, %v2479
    %v2481 = vpop.f32.mrb[0].mxu0
    %v2482 = vadd.f32 %v2055, %v2481
    %2483 = vdwg.mxu0
    %2484 = vmatprep.subr.mxu0 %v86
    %2485 = vmatpush1.msra.mxu0 %v85
    %2486 = vmatprep.subr.mxu0 %v90
    %2487 = vmatpush1.msra.mxu0 %v89
    %2488 = vmatprep.subr.mxu0 %v94
    %2489 = vmatpush1.msra.mxu0 %v93
    %2490 = vmatprep.subr.mxu0 %v98
    %2491 = vmatpush1.msra.mxu0 %v97
    %2492 = vmatprep.subr.mxu0 %v102
    %2493 = vmatpush1.msra.mxu0 %v101
    %2494 = vmatprep.subr.mxu0 %v106
    %2495 = vmatpush1.msra.mxu0 %v105
    %2496 = vmatprep.subr.mxu0 %v110
    %2497 = vmatpush1.msra.mxu0 %v109
    %2498 = vmatprep.subr.mxu0 %v114
    %2499 = vmatpush1.msra.mxu0 %v113
    %2500 = vmatprep.subr.mxu0 %v118
    %2501 = vmatpush1.msra.mxu0 %v117
    %2502 = vmatprep.subr.mxu0 %v122
    %2503 = vmatpush1.msra.mxu0 %v121
    %2504 = vmatprep.subr.mxu0 %v126
    %2505 = vmatpush1.msra.mxu0 %v125
    %2506 = vmatprep.subr.mxu0 %v130
    %2507 = vmatpush1.msra.mxu0 %v129
    %2508 = vmatprep.subr.mxu0 %v134
    %2509 = vmatpush1.msra.mxu0 %v133
    %2510 = vmatprep.subr.mxu0 %v138
    %2511 = vmatpush1.msra.mxu0 %v137
    %2512 = vmatprep.subr.mxu0 %v142
    %2513 = vmatpush1.msra.mxu0 %v141
    %2514 = vmatprep.subr.mxu0 %v146
    %2515 = vmatpush1.msra.mxu0 %v145
    %2516 = vmatprep.subr.mxu0 0.0
    %2517 = vmatpush1.msra.mxu0 0.0
    %2518 = vmatprep.subr.mxu0 0.0
    %2519 = vmatpush1.msra.mxu0 0.0
    %2520 = vmatprep.subr.mxu0 0.0
    %2521 = vmatpush1.msra.mxu0 0.0
    %2522 = vmatprep.subr.mxu0 0.0
    %2523 = vmatpush1.msra.mxu0 0.0
    %2524 = vmatprep.subr.mxu0 0.0
    %2525 = vmatpush1.msra.mxu0 0.0
    %2526 = vmatprep.subr.mxu0 0.0
    %2527 = vmatpush1.msra.mxu0 0.0
    %2528 = vmatprep.subr.mxu0 0.0
    %2529 = vmatpush1.msra.mxu0 0.0
    %2530 = vmatprep.subr.mxu0 0.0
    %2531 = vmatpush1.msra.mxu0 0.0
    %2532 = vmatprep.subr.mxu0 0.0
    %2533 = vmatpush1.msra.mxu0 0.0
    %2534 = vmatprep.subr.mxu0 0.0
    %2535 = vmatpush1.msra.mxu0 0.0
    %2536 = vmatprep.subr.mxu0 0.0
    %2537 = vmatpush1.msra.mxu0 0.0
    %2538 = vmatprep.subr.mxu0 0.0
    %2539 = vmatpush1.msra.mxu0 0.0
    %2540 = vmatprep.subr.mxu0 0.0
    %2541 = vmatpush1.msra.mxu0 0.0
    %2542 = vmatprep.subr.mxu0 0.0
    %2543 = vmatpush1.msra.mxu0 0.0
    %2544 = vmatprep.subr.mxu0 0.0
    %2545 = vmatpush1.msra.mxu0 0.0
    %2546 = vmatprep.subr.mxu0 0.0
    %2547 = vmatpush1.msra.mxu0 0.0
    %2548 = vmatprep.mubr.f32.mxu0 0.0
    %2549 = vmatmul.mubr.f32.gmra.mrb[0].mxu0 %v2412
    %v2550 = vpop.f32.mrb[0].mxu0
    %v2551 = vadd.f32 %v2059, %v2550
    %v2552 = vpop.f32.mrb[0].mxu0
    %v2553 = vadd.f32 %v2063, %v2552
    %2554 = vdwg.mxu0
    %v2559 = vcombine.low %v2480, %v2482
    %v2560 = vcombine.low %v2551, %v2553
    %v2562 = vunpack.c.l.s4 1983009808
    %v2563 = vunpack.c.0.s8 %v2562
    %v2564 = vlaneseq
    %v2565 = vshrl.u32 %v2564, 7
    %v2566 = vsub.s32 %v2563, %v2565
    %v2567 = vrot.slane %v2559, %v2566
    %v2569 = vunpack.c.l.s4 1983009808
    %v2570 = vunpack.c.0.s8 %v2569
    %v2571 = vlaneseq
    %v2572 = vshrl.u32 %v2571, 7
    %v2573 = vsub.s32 %v2570, %v2572
    %v2574 = vrot.slane %v2560, %v2573
    %v2575 = vcombine.low %v2567, %v2574
    %s2577 = scalar_lea.vmem [#allocation4], 16
    %2578 = vst [vmem:[%s2577] sm:$0xff] %v2575
    %v2579 = vld [vmem:[%s634] sm:$0x3]
    %v2580 = vld [vmem:[%s1688] sm:$0x3]
    %2582 = vrot.lane.b32.xlu0 %v2580, 64
    %v2583 = vpop.permute.xlu0 %2582
    %v2585 = vsel %vm165, %v2579, %v2583
    %2586 = vmatprep.subr.mxu0 %v84
    %2587 = vmatpush1.msra.mxu0 %v83
    %2588 = vmatprep.subr.mxu0 %v88
    %2589 = vmatpush1.msra.mxu0 %v87
    %2590 = vmatprep.subr.mxu0 %v92
    %2591 = vmatpush1.msra.mxu0 %v91
    %2592 = vmatprep.subr.mxu0 %v96
    %2593 = vmatpush1.msra.mxu0 %v95
    %2594 = vmatprep.subr.mxu0 %v100
    %2595 = vmatpush1.msra.mxu0 %v99
    %2596 = vmatprep.subr.mxu0 %v104
    %2597 = vmatpush1.msra.mxu0 %v103
    %2598 = vmatprep.subr.mxu0 %v108
    %2599 = vmatpush1.msra.mxu0 %v107
    %2600 = vmatprep.subr.mxu0 %v112
    %2601 = vmatpush1.msra.mxu0 %v111
    %2602 = vmatprep.subr.mxu0 %v116
    %2603 = vmatpush1.msra.mxu0 %v115
    %2604 = vmatprep.subr.mxu0 %v120
    %2605 = vmatpush1.msra.mxu0 %v119
    %2606 = vmatprep.subr.mxu0 %v124
    %2607 = vmatpush1.msra.mxu0 %v123
    %2608 = vmatprep.subr.mxu0 %v128
    %2609 = vmatpush1.msra.mxu0 %v127
    %2610 = vmatprep.subr.mxu0 %v132
    %2611 = vmatpush1.msra.mxu0 %v131
    %2612 = vmatprep.subr.mxu0 %v136
    %2613 = vmatpush1.msra.mxu0 %v135
    %2614 = vmatprep.subr.mxu0 %v140
    %2615 = vmatpush1.msra.mxu0 %v139
    %2616 = vmatprep.subr.mxu0 %v144
    %2617 = vmatpush1.msra.mxu0 %v143
    %2618 = vmatprep.subr.mxu0 0.0
    %2619 = vmatpush1.msra.mxu0 0.0
    %2620 = vmatprep.subr.mxu0 0.0
    %2621 = vmatpush1.msra.mxu0 0.0
    %2622 = vmatprep.subr.mxu0 0.0
    %2623 = vmatpush1.msra.mxu0 0.0
    %2624 = vmatprep.subr.mxu0 0.0
    %2625 = vmatpush1.msra.mxu0 0.0
    %2626 = vmatprep.subr.mxu0 0.0
    %2627 = vmatpush1.msra.mxu0 0.0
    %2628 = vmatprep.subr.mxu0 0.0
    %2629 = vmatpush1.msra.mxu0 0.0
    %2630 = vmatprep.subr.mxu0 0.0
    %2631 = vmatpush1.msra.mxu0 0.0
    %2632 = vmatprep.subr.mxu0 0.0
    %2633 = vmatpush1.msra.mxu0 0.0
    %2634 = vmatprep.subr.mxu0 0.0
    %2635 = vmatpush1.msra.mxu0 0.0
    %2636 = vmatprep.subr.mxu0 0.0
    %2637 = vmatpush1.msra.mxu0 0.0
    %2638 = vmatprep.subr.mxu0 0.0
    %2639 = vmatpush1.msra.mxu0 0.0
    %2640 = vmatprep.subr.mxu0 0.0
    %2641 = vmatpush1.msra.mxu0 0.0
    %2642 = vmatprep.subr.mxu0 0.0
    %2643 = vmatpush1.msra.mxu0 0.0
    %2644 = vmatprep.subr.mxu0 0.0
    %2645 = vmatpush1.msra.mxu0 0.0
    %2646 = vmatprep.subr.mxu0 0.0
    %2647 = vmatpush1.msra.mxu0 0.0
    %2648 = vmatprep.subr.mxu0 0.0
    %2649 = vmatpush1.msra.mxu0 0.0
    %2650 = vmatprep.mubr.f32.mxu0 0.0
    %2651 = vmatmul.mubr.f32.gmra.mrb[0].mxu0 %v2585
    %v2652 = vpop.f32.mrb[0].mxu0
    %v2653 = vadd.f32 %v2051, %v2652
    %v2654 = vpop.f32.mrb[0].mxu0
    %v2655 = vadd.f32 %v2055, %v2654
    %2656 = vdwg.mxu0
    %2657 = vmatprep.subr.mxu0 %v86
    %2658 = vmatpush1.msra.mxu0 %v85
    %2659 = vmatprep.subr.mxu0 %v90
    %2660 = vmatpush1.msra.mxu0 %v89
    %2661 = vmatprep.subr.mxu0 %v94
    %2662 = vmatpush1.msra.mxu0 %v93
    %2663 = vmatprep.subr.mxu0 %v98
    %2664 = vmatpush1.msra.mxu0 %v97
    %2665 = vmatprep.subr.mxu0 %v102
    %2666 = vmatpush1.msra.mxu0 %v101
    %2667 = vmatprep.subr.mxu0 %v106
    %2668 = vmatpush1.msra.mxu0 %v105
    %2669 = vmatprep.subr.mxu0 %v110
    %2670 = vmatpush1.msra.mxu0 %v109
    %2671 = vmatprep.subr.mxu0 %v114
    %2672 = vmatpush1.msra.mxu0 %v113
    %2673 = vmatprep.subr.mxu0 %v118
    %2674 = vmatpush1.msra.mxu0 %v117
    %2675 = vmatprep.subr.mxu0 %v122
    %2676 = vmatpush1.msra.mxu0 %v121
    %2677 = vmatprep.subr.mxu0 %v126
    %2678 = vmatpush1.msra.mxu0 %v125
    %2679 = vmatprep.subr.mxu0 %v130
    %2680 = vmatpush1.msra.mxu0 %v129
    %2681 = vmatprep.subr.mxu0 %v134
    %2682 = vmatpush1.msra.mxu0 %v133
    %2683 = vmatprep.subr.mxu0 %v138
    %2684 = vmatpush1.msra.mxu0 %v137
    %2685 = vmatprep.subr.mxu0 %v142
    %2686 = vmatpush1.msra.mxu0 %v141
    %2687 = vmatprep.subr.mxu0 %v146
    %2688 = vmatpush1.msra.mxu0 %v145
    %2689 = vmatprep.subr.mxu0 0.0
    %2690 = vmatpush1.msra.mxu0 0.0
    %2691 = vmatprep.subr.mxu0 0.0
    %2692 = vmatpush1.msra.mxu0 0.0
    %2693 = vmatprep.subr.mxu0 0.0
    %2694 = vmatpush1.msra.mxu0 0.0
    %2695 = vmatprep.subr.mxu0 0.0
    %2696 = vmatpush1.msra.mxu0 0.0
    %2697 = vmatprep.subr.mxu0 0.0
    %2698 = vmatpush1.msra.mxu0 0.0
    %2699 = vmatprep.subr.mxu0 0.0
    %2700 = vmatpush1.msra.mxu0 0.0
    %2701 = vmatprep.subr.mxu0 0.0
    %2702 = vmatpush1.msra.mxu0 0.0
    %2703 = vmatprep.subr.mxu0 0.0
    %2704 = vmatpush1.msra.mxu0 0.0
    %2705 = vmatprep.subr.mxu0 0.0
    %2706 = vmatpush1.msra.mxu0 0.0
    %2707 = vmatprep.subr.mxu0 0.0
    %2708 = vmatpush1.msra.mxu0 0.0
    %2709 = vmatprep.subr.mxu0 0.0
    %2710 = vmatpush1.msra.mxu0 0.0
    %2711 = vmatprep.subr.mxu0 0.0
    %2712 = vmatpush1.msra.mxu0 0.0
    %2713 = vmatprep.subr.mxu0 0.0
    %2714 = vmatpush1.msra.mxu0 0.0
    %2715 = vmatprep.subr.mxu0 0.0
    %2716 = vmatpush1.msra.mxu0 0.0
    %2717 = vmatprep.subr.mxu0 0.0
    %2718 = vmatpush1.msra.mxu0 0.0
    %2719 = vmatprep.subr.mxu0 0.0
    %2720 = vmatpush1.msra.mxu0 0.0
    %2721 = vmatprep.mubr.f32.mxu0 0.0
    %2722 = vmatmul.mubr.f32.gmra.mrb[0].mxu0 %v2585
    %v2723 = vpop.f32.mrb[0].mxu0
    %v2724 = vadd.f32 %v2059, %v2723
    %v2725 = vpop.f32.mrb[0].mxu0
    %v2726 = vadd.f32 %v2063, %v2725
    %2727 = vdwg.mxu0
    %v2732 = vcombine.low %v2653, %v2655
    %v2733 = vcombine.low %v2724, %v2726
    %v2735 = vunpack.c.l.s4 1983009808
    %v2736 = vunpack.c.0.s8 %v2735
    %v2737 = vlaneseq
    %v2738 = vshrl.u32 %v2737, 7
    %v2739 = vsub.s32 %v2736, %v2738
    %v2740 = vrot.slane %v2732, %v2739
    %v2742 = vunpack.c.l.s4 1983009808
    %v2743 = vunpack.c.0.s8 %v2742
    %v2744 = vlaneseq
    %v2745 = vshrl.u32 %v2744, 7
    %v2746 = vsub.s32 %v2743, %v2745
    %v2747 = vrot.slane %v2733, %v2746
    %v2748 = vcombine.low %v2740, %v2747
    %s2750 = scalar_lea.vmem [#allocation4], 24
    %2751 = vst [vmem:[%s2750] sm:$0xff] %v2748
    %v2752 = vld [vmem:[%s752] sm:$0x3]
    %v2753 = vld [vmem:[%s1571] sm:$0x3]
    %2755 = vrot.lane.b32.xlu0 %v2753, 64
    %v2756 = vpop.permute.xlu0 %2755
    %v2758 = vsel %vm165, %v2752, %v2756
    %2759 = vmatprep.subr.mxu0 %v84
    %2760 = vmatpush1.msra.mxu0 %v83
    %2761 = vmatprep.subr.mxu0 %v88
    %2762 = vmatpush1.msra.mxu0 %v87
    %2763 = vmatprep.subr.mxu0 %v92
    %2764 = vmatpush1.msra.mxu0 %v91
    %2765 = vmatprep.subr.mxu0 %v96
    %2766 = vmatpush1.msra.mxu0 %v95
    %2767 = vmatprep.subr.mxu0 %v100
    %2768 = vmatpush1.msra.mxu0 %v99
    %2769 = vmatprep.subr.mxu0 %v104
    %2770 = vmatpush1.msra.mxu0 %v103
    %2771 = vmatprep.subr.mxu0 %v108
    %2772 = vmatpush1.msra.mxu0 %v107
    %2773 = vmatprep.subr.mxu0 %v112
    %2774 = vmatpush1.msra.mxu0 %v111
    %2775 = vmatprep.subr.mxu0 %v116
    %2776 = vmatpush1.msra.mxu0 %v115
    %2777 = vmatprep.subr.mxu0 %v120
    %2778 = vmatpush1.msra.mxu0 %v119
    %2779 = vmatprep.subr.mxu0 %v124
    %2780 = vmatpush1.msra.mxu0 %v123
    %2781 = vmatprep.subr.mxu0 %v128
    %2782 = vmatpush1.msra.mxu0 %v127
    %2783 = vmatprep.subr.mxu0 %v132
    %2784 = vmatpush1.msra.mxu0 %v131
    %2785 = vmatprep.subr.mxu0 %v136
    %2786 = vmatpush1.msra.mxu0 %v135
    %2787 = vmatprep.subr.mxu0 %v140
    %2788 = vmatpush1.msra.mxu0 %v139
    %2789 = vmatprep.subr.mxu0 %v144
    %2790 = vmatpush1.msra.mxu0 %v143
    %2791 = vmatprep.subr.mxu0 0.0
    %2792 = vmatpush1.msra.mxu0 0.0
    %2793 = vmatprep.subr.mxu0 0.0
    %2794 = vmatpush1.msra.mxu0 0.0
    %2795 = vmatprep.subr.mxu0 0.0
    %2796 = vmatpush1.msra.mxu0 0.0
    %2797 = vmatprep.subr.mxu0 0.0
    %2798 = vmatpush1.msra.mxu0 0.0
    %2799 = vmatprep.subr.mxu0 0.0
    %2800 = vmatpush1.msra.mxu0 0.0
    %2801 = vmatprep.subr.mxu0 0.0
    %2802 = vmatpush1.msra.mxu0 0.0
    %2803 = vmatprep.subr.mxu0 0.0
    %2804 = vmatpush1.msra.mxu0 0.0
    %2805 = vmatprep.subr.mxu0 0.0
    %2806 = vmatpush1.msra.mxu0 0.0
    %2807 = vmatprep.subr.mxu0 0.0
    %2808 = vmatpush1.msra.mxu0 0.0
    %2809 = vmatprep.subr.mxu0 0.0
    %2810 = vmatpush1.msra.mxu0 0.0
    %2811 = vmatprep.subr.mxu0 0.0
    %2812 = vmatpush1.msra.mxu0 0.0
    %2813 = vmatprep.subr.mxu0 0.0
    %2814 = vmatpush1.msra.mxu0 0.0
    %2815 = vmatprep.subr.mxu0 0.0
    %2816 = vmatpush1.msra.mxu0 0.0
    %2817 = vmatprep.subr.mxu0 0.0
    %2818 = vmatpush1.msra.mxu0 0.0
    %2819 = vmatprep.subr.mxu0 0.0
    %2820 = vmatpush1.msra.mxu0 0.0
    %2821 = vmatprep.subr.mxu0 0.0
    %2822 = vmatpush1.msra.mxu0 0.0
    %2823 = vmatprep.mubr.f32.mxu0 0.0
    %2824 = vmatmul.mubr.f32.gmra.mrb[0].mxu0 %v2758
    %v2825 = vpop.f32.mrb[0].mxu0
    %v2826 = vadd.f32 %v2051, %v2825
    %v2827 = vpop.f32.mrb[0].mxu0
    %v2828 = vadd.f32 %v2055, %v2827
    %2829 = vdwg.mxu0
    %2830 = vmatprep.subr.mxu0 %v86
    %2831 = vmatpush1.msra.mxu0 %v85
    %2832 = vmatprep.subr.mxu0 %v90
    %2833 = vmatpush1.msra.mxu0 %v89
    %2834 = vmatprep.subr.mxu0 %v94
    %2835 = vmatpush1.msra.mxu0 %v93
    %2836 = vmatprep.subr.mxu0 %v98
    %2837 = vmatpush1.msra.mxu0 %v97
    %2838 = vmatprep.subr.mxu0 %v102
    %2839 = vmatpush1.msra.mxu0 %v101
    %2840 = vmatprep.subr.mxu0 %v106
    %2841 = vmatpush1.msra.mxu0 %v105
    %2842 = vmatprep.subr.mxu0 %v110
    %2843 = vmatpush1.msra.mxu0 %v109
    %2844 = vmatprep.subr.mxu0 %v114
    %2845 = vmatpush1.msra.mxu0 %v113
    %2846 = vmatprep.subr.mxu0 %v118
    %2847 = vmatpush1.msra.mxu0 %v117
    %2848 = vmatprep.subr.mxu0 %v122
    %2849 = vmatpush1.msra.mxu0 %v121
    %2850 = vmatprep.subr.mxu0 %v126
    %2851 = vmatpush1.msra.mxu0 %v125
    %2852 = vmatprep.subr.mxu0 %v130
    %2853 = vmatpush1.msra.mxu0 %v129
    %2854 = vmatprep.subr.mxu0 %v134
    %2855 = vmatpush1.msra.mxu0 %v133
    %2856 = vmatprep.subr.mxu0 %v138
    %2857 = vmatpush1.msra.mxu0 %v137
    %2858 = vmatprep.subr.mxu0 %v142
    %2859 = vmatpush1.msra.mxu0 %v141
    %2860 = vmatprep.subr.mxu0 %v146
    %2861 = vmatpush1.msra.mxu0 %v145
    %2862 = vmatprep.subr.mxu0 0.0
    %2863 = vmatpush1.msra.mxu0 0.0
    %2864 = vmatprep.subr.mxu0 0.0
    %2865 = vmatpush1.msra.mxu0 0.0
    %2866 = vmatprep.subr.mxu0 0.0
    %2867 = vmatpush1.msra.mxu0 0.0
    %2868 = vmatprep.subr.mxu0 0.0
    %2869 = vmatpush1.msra.mxu0 0.0
    %2870 = vmatprep.subr.mxu0 0.0
    %2871 = vmatpush1.msra.mxu0 0.0
    %2872 = vmatprep.subr.mxu0 0.0
    %2873 = vmatpush1.msra.mxu0 0.0
    %2874 = vmatprep.subr.mxu0 0.0
    %2875 = vmatpush1.msra.mxu0 0.0
    %2876 = vmatprep.subr.mxu0 0.0
    %2877 = vmatpush1.msra.mxu0 0.0
    %2878 = vmatprep.subr.mxu0 0.0
    %2879 = vmatpush1.msra.mxu0 0.0
    %2880 = vmatprep.subr.mxu0 0.0
    %2881 = vmatpush1.msra.mxu0 0.0
    %2882 = vmatprep.subr.mxu0 0.0
    %2883 = vmatpush1.msra.mxu0 0.0
    %2884 = vmatprep.subr.mxu0 0.0
    %2885 = vmatpush1.msra.mxu0 0.0
    %2886 = vmatprep.subr.mxu0 0.0
    %2887 = vmatpush1.msra.mxu0 0.0
    %2888 = vmatprep.subr.mxu0 0.0
    %2889 = vmatpush1.msra.mxu0 0.0
    %2890 = vmatprep.subr.mxu0 0.0
    %2891 = vmatpush1.msra.mxu0 0.0
    %2892 = vmatprep.subr.mxu0 0.0
    %2893 = vmatpush1.msra.mxu0 0.0
    %2894 = vmatprep.mubr.f32.mxu0 0.0
    %2895 = vmatmul.mubr.f32.gmra.mrb[0].mxu0 %v2758
    %v2896 = vpop.f32.mrb[0].mxu0
    %v2897 = vadd.f32 %v2059, %v2896
    %v2898 = vpop.f32.mrb[0].mxu0
    %v2899 = vadd.f32 %v2063, %v2898
    %2900 = vdwg.mxu0
    %v2905 = vcombine.low %v2826, %v2828
    %v2906 = vcombine.low %v2897, %v2899
    %v2908 = vunpack.c.l.s4 1983009808
    %v2909 = vunpack.c.0.s8 %v2908
    %v2910 = vlaneseq
    %v2911 = vshrl.u32 %v2910, 7
    %v2912 = vsub.s32 %v2909, %v2911
    %v2913 = vrot.slane %v2905, %v2912
    %v2915 = vunpack.c.l.s4 1983009808
    %v2916 = vunpack.c.0.s8 %v2915
    %v2917 = vlaneseq
    %v2918 = vshrl.u32 %v2917, 7
    %v2919 = vsub.s32 %v2916, %v2918
    %v2920 = vrot.slane %v2906, %v2919
    %v2921 = vcombine.low %v2913, %v2920
    %s2923 = scalar_lea.vmem [#allocation4], 32
    %2924 = vst [vmem:[%s2923] sm:$0xff] %v2921
    %v2925 = vld [vmem:[%s870] sm:$0x3]
    %v2926 = vld [vmem:[%s1454] sm:$0x3]
    %2928 = vrot.lane.b32.xlu0 %v2926, 64
    %v2929 = vpop.permute.xlu0 %2928
    %v2931 = vsel %vm165, %v2925, %v2929
    %2932 = vmatprep.subr.mxu0 %v84
    %2933 = vmatpush1.msra.mxu0 %v83
    %2934 = vmatprep.subr.mxu0 %v88
    %2935 = vmatpush1.msra.mxu0 %v87
    %2936 = vmatprep.subr.mxu0 %v92
    %2937 = vmatpush1.msra.mxu0 %v91
    %2938 = vmatprep.subr.mxu0 %v96
    %2939 = vmatpush1.msra.mxu0 %v95
    %2940 = vmatprep.subr.mxu0 %v100
    %2941 = vmatpush1.msra.mxu0 %v99
    %2942 = vmatprep.subr.mxu0 %v104
    %2943 = vmatpush1.msra.mxu0 %v103
    %2944 = vmatprep.subr.mxu0 %v108
    %2945 = vmatpush1.msra.mxu0 %v107
    %2946 = vmatprep.subr.mxu0 %v112
    %2947 = vmatpush1.msra.mxu0 %v111
    %2948 = vmatprep.subr.mxu0 %v116
    %2949 = vmatpush1.msra.mxu0 %v115
    %2950 = vmatprep.subr.mxu0 %v120
    %2951 = vmatpush1.msra.mxu0 %v119
    %2952 = vmatprep.subr.mxu0 %v124
    %2953 = vmatpush1.msra.mxu0 %v123
    %2954 = vmatprep.subr.mxu0 %v128
    %2955 = vmatpush1.msra.mxu0 %v127
    %2956 = vmatprep.subr.mxu0 %v132
    %2957 = vmatpush1.msra.mxu0 %v131
    %2958 = vmatprep.subr.mxu0 %v136
    %2959 = vmatpush1.msra.mxu0 %v135
    %2960 = vmatprep.subr.mxu0 %v140
    %2961 = vmatpush1.msra.mxu0 %v139
    %2962 = vmatprep.subr.mxu0 %v144
    %2963 = vmatpush1.msra.mxu0 %v143
    %2964 = vmatprep.subr.mxu0 0.0
    %2965 = vmatpush1.msra.mxu0 0.0
    %2966 = vmatprep.subr.mxu0 0.0
    %2967 = vmatpush1.msra.mxu0 0.0
    %2968 = vmatprep.subr.mxu0 0.0
    %2969 = vmatpush1.msra.mxu0 0.0
    %2970 = vmatprep.subr.mxu0 0.0
    %2971 = vmatpush1.msra.mxu0 0.0
    %2972 = vmatprep.subr.mxu0 0.0
    %2973 = vmatpush1.msra.mxu0 0.0
    %2974 = vmatprep.subr.mxu0 0.0
    %2975 = vmatpush1.msra.mxu0 0.0
    %2976 = vmatprep.subr.mxu0 0.0
    %2977 = vmatpush1.msra.mxu0 0.0
    %2978 = vmatprep.subr.mxu0 0.0
    %2979 = vmatpush1.msra.mxu0 0.0
    %2980 = vmatprep.subr.mxu0 0.0
    %2981 = vmatpush1.msra.mxu0 0.0
    %2982 = vmatprep.subr.mxu0 0.0
    %2983 = vmatpush1.msra.mxu0 0.0
    %2984 = vmatprep.subr.mxu0 0.0
    %2985 = vmatpush1.msra.mxu0 0.0
    %2986 = vmatprep.subr.mxu0 0.0
    %2987 = vmatpush1.msra.mxu0 0.0
    %2988 = vmatprep.subr.mxu0 0.0
    %2989 = vmatpush1.msra.mxu0 0.0
    %2990 = vmatprep.subr.mxu0 0.0
    %2991 = vmatpush1.msra.mxu0 0.0
    %2992 = vmatprep.subr.mxu0 0.0
    %2993 = vmatpush1.msra.mxu0 0.0
    %2994 = vmatprep.subr.mxu0 0.0
    %2995 = vmatpush1.msra.mxu0 0.0
    %2996 = vmatprep.mubr.f32.mxu0 0.0
    %2997 = vmatmul.mubr.f32.gmra.mrb[0].mxu0 %v2931
    %v2998 = vpop.f32.mrb[0].mxu0
    %v2999 = vadd.f32 %v2051, %v2998
    %v3000 = vpop.f32.mrb[0].mxu0
    %v3001 = vadd.f32 %v2055, %v3000
    %3002 = vdwg.mxu0
    %3003 = vmatprep.subr.mxu0 %v86
    %3004 = vmatpush1.msra.mxu0 %v85
    %3005 = vmatprep.subr.mxu0 %v90
    %3006 = vmatpush1.msra.mxu0 %v89
    %3007 = vmatprep.subr.mxu0 %v94
    %3008 = vmatpush1.msra.mxu0 %v93
    %3009 = vmatprep.subr.mxu0 %v98
    %3010 = vmatpush1.msra.mxu0 %v97
    %3011 = vmatprep.subr.mxu0 %v102
    %3012 = vmatpush1.msra.mxu0 %v101
    %3013 = vmatprep.subr.mxu0 %v106
    %3014 = vmatpush1.msra.mxu0 %v105
    %3015 = vmatprep.subr.mxu0 %v110
    %3016 = vmatpush1.msra.mxu0 %v109
    %3017 = vmatprep.subr.mxu0 %v114
    %3018 = vmatpush1.msra.mxu0 %v113
    %3019 = vmatprep.subr.mxu0 %v118
    %3020 = vmatpush1.msra.mxu0 %v117
    %3021 = vmatprep.subr.mxu0 %v122
    %3022 = vmatpush1.msra.mxu0 %v121
    %3023 = vmatprep.subr.mxu0 %v126
    %3024 = vmatpush1.msra.mxu0 %v125
    %3025 = vmatprep.subr.mxu0 %v130
    %3026 = vmatpush1.msra.mxu0 %v129
    %3027 = vmatprep.subr.mxu0 %v134
    %3028 = vmatpush1.msra.mxu0 %v133
    %3029 = vmatprep.subr.mxu0 %v138
    %3030 = vmatpush1.msra.mxu0 %v137
    %3031 = vmatprep.subr.mxu0 %v142
    %3032 = vmatpush1.msra.mxu0 %v141
    %3033 = vmatprep.subr.mxu0 %v146
    %3034 = vmatpush1.msra.mxu0 %v145
    %3035 = vmatprep.subr.mxu0 0.0
    %3036 = vmatpush1.msra.mxu0 0.0
    %3037 = vmatprep.subr.mxu0 0.0
    %3038 = vmatpush1.msra.mxu0 0.0
    %3039 = vmatprep.subr.mxu0 0.0
    %3040 = vmatpush1.msra.mxu0 0.0
    %3041 = vmatprep.subr.mxu0 0.0
    %3042 = vmatpush1.msra.mxu0 0.0
    %3043 = vmatprep.subr.mxu0 0.0
    %3044 = vmatpush1.msra.mxu0 0.0
    %3045 = vmatprep.subr.mxu0 0.0
    %3046 = vmatpush1.msra.mxu0 0.0
    %3047 = vmatprep.subr.mxu0 0.0
    %3048 = vmatpush1.msra.mxu0 0.0
    %3049 = vmatprep.subr.mxu0 0.0
    %3050 = vmatpush1.msra.mxu0 0.0
    %3051 = vmatprep.subr.mxu0 0.0
    %3052 = vmatpush1.msra.mxu0 0.0
    %3053 = vmatprep.subr.mxu0 0.0
    %3054 = vmatpush1.msra.mxu0 0.0
    %3055 = vmatprep.subr.mxu0 0.0
    %3056 = vmatpush1.msra.mxu0 0.0
    %3057 = vmatprep.subr.mxu0 0.0
    %3058 = vmatpush1.msra.mxu0 0.0
    %3059 = vmatprep.subr.mxu0 0.0
    %3060 = vmatpush1.msra.mxu0 0.0
    %3061 = vmatprep.subr.mxu0 0.0
    %3062 = vmatpush1.msra.mxu0 0.0
    %3063 = vmatprep.subr.mxu0 0.0
    %3064 = vmatpush1.msra.mxu0 0.0
    %3065 = vmatprep.subr.mxu0 0.0
    %3066 = vmatpush1.msra.mxu0 0.0
    %3067 = vmatprep.mubr.f32.mxu0 0.0
    %3068 = vmatmul.mubr.f32.gmra.mrb[0].mxu0 %v2931
    %v3069 = vpop.f32.mrb[0].mxu0
    %v3070 = vadd.f32 %v2059, %v3069
    %v3071 = vpop.f32.mrb[0].mxu0
    %v3072 = vadd.f32 %v2063, %v3071
    %3073 = vdwg.mxu0
    %v3078 = vcombine.low %v2999, %v3001
    %v3079 = vcombine.low %v3070, %v3072
    %v3081 = vunpack.c.l.s4 1983009808
    %v3082 = vunpack.c.0.s8 %v3081
    %v3083 = vlaneseq
    %v3084 = vshrl.u32 %v3083, 7
    %v3085 = vsub.s32 %v3082, %v3084
    %v3086 = vrot.slane %v3078, %v3085
    %v3088 = vunpack.c.l.s4 1983009808
    %v3089 = vunpack.c.0.s8 %v3088
    %v3090 = vlaneseq
    %v3091 = vshrl.u32 %v3090, 7
    %v3092 = vsub.s32 %v3089, %v3091
    %v3093 = vrot.slane %v3079, %v3092
    %v3094 = vcombine.low %v3086, %v3093
    %s3096 = scalar_lea.vmem [#allocation4], 40
    %3097 = vst [vmem:[%s3096] sm:$0xff] %v3094
    %v3098 = vld [vmem:[%s988] sm:$0x3]
    %v3099 = vld [vmem:[%s1337] sm:$0x3]
    %3101 = vrot.lane.b32.xlu0 %v3099, 64
    %v3102 = vpop.permute.xlu0 %3101
    %v3104 = vsel %vm165, %v3098, %v3102
    %3105 = vmatprep.subr.mxu0 %v84
    %3106 = vmatpush1.msra.mxu0 %v83
    %3107 = vmatprep.subr.mxu0 %v88
    %3108 = vmatpush1.msra.mxu0 %v87
    %3109 = vmatprep.subr.mxu0 %v92
    %3110 = vmatpush1.msra.mxu0 %v91
    %3111 = vmatprep.subr.mxu0 %v96
    %3112 = vmatpush1.msra.mxu0 %v95
    %3113 = vmatprep.subr.mxu0 %v100
    %3114 = vmatpush1.msra.mxu0 %v99
    %3115 = vmatprep.subr.mxu0 %v104
    %3116 = vmatpush1.msra.mxu0 %v103
    %3117 = vmatprep.subr.mxu0 %v108
    %3118 = vmatpush1.msra.mxu0 %v107
    %3119 = vmatprep.subr.mxu0 %v112
    %3120 = vmatpush1.msra.mxu0 %v111
    %3121 = vmatprep.subr.mxu0 %v116
    %3122 = vmatpush1.msra.mxu0 %v115
    %3123 = vmatprep.subr.mxu0 %v120
    %3124 = vmatpush1.msra.mxu0 %v119
    %3125 = vmatprep.subr.mxu0 %v124
    %3126 = vmatpush1.msra.mxu0 %v123
    %3127 = vmatprep.subr.mxu0 %v128
    %3128 = vmatpush1.msra.mxu0 %v127
    %3129 = vmatprep.subr.mxu0 %v132
    %3130 = vmatpush1.msra.mxu0 %v131
    %3131 = vmatprep.subr.mxu0 %v136
    %3132 = vmatpush1.msra.mxu0 %v135
    %3133 = vmatprep.subr.mxu0 %v140
    %3134 = vmatpush1.msra.mxu0 %v139
    %3135 = vmatprep.subr.mxu0 %v144
    %3136 = vmatpush1.msra.mxu0 %v143
    %3137 = vmatprep.subr.mxu0 0.0
    %3138 = vmatpush1.msra.mxu0 0.0
    %3139 = vmatprep.subr.mxu0 0.0
    %3140 = vmatpush1.msra.mxu0 0.0
    %3141 = vmatprep.subr.mxu0 0.0
    %3142 = vmatpush1.msra.mxu0 0.0
    %3143 = vmatprep.subr.mxu0 0.0
    %3144 = vmatpush1.msra.mxu0 0.0
    %3145 = vmatprep.subr.mxu0 0.0
    %3146 = vmatpush1.msra.mxu0 0.0
    %3147 = vmatprep.subr.mxu0 0.0
    %3148 = vmatpush1.msra.mxu0 0.0
    %3149 = vmatprep.subr.mxu0 0.0
    %3150 = vmatpush1.msra.mxu0 0.0
    %3151 = vmatprep.subr.mxu0 0.0
    %3152 = vmatpush1.msra.mxu0 0.0
    %3153 = vmatprep.subr.mxu0 0.0
    %3154 = vmatpush1.msra.mxu0 0.0
    %3155 = vmatprep.subr.mxu0 0.0
    %3156 = vmatpush1.msra.mxu0 0.0
    %3157 = vmatprep.subr.mxu0 0.0
    %3158 = vmatpush1.msra.mxu0 0.0
    %3159 = vmatprep.subr.mxu0 0.0
    %3160 = vmatpush1.msra.mxu0 0.0
    %3161 = vmatprep.subr.mxu0 0.0
    %3162 = vmatpush1.msra.mxu0 0.0
    %3163 = vmatprep.subr.mxu0 0.0
    %3164 = vmatpush1.msra.mxu0 0.0
    %3165 = vmatprep.subr.mxu0 0.0
    %3166 = vmatpush1.msra.mxu0 0.0
    %3167 = vmatprep.subr.mxu0 0.0
    %3168 = vmatpush1.msra.mxu0 0.0
    %3169 = vmatprep.mubr.f32.mxu0 0.0
    %3170 = vmatmul.mubr.f32.gmra.mrb[0].mxu0 %v3104
    %v3171 = vpop.f32.mrb[0].mxu0
    %v3172 = vadd.f32 %v2051, %v3171
    %v3173 = vpop.f32.mrb[0].mxu0
    %v3174 = vadd.f32 %v2055, %v3173
    %3175 = vdwg.mxu0
    %3176 = vmatprep.subr.mxu0 %v86
    %3177 = vmatpush1.msra.mxu0 %v85
    %3178 = vmatprep.subr.mxu0 %v90
    %3179 = vmatpush1.msra.mxu0 %v89
    %3180 = vmatprep.subr.mxu0 %v94
    %3181 = vmatpush1.msra.mxu0 %v93
    %3182 = vmatprep.subr.mxu0 %v98
    %3183 = vmatpush1.msra.mxu0 %v97
    %3184 = vmatprep.subr.mxu0 %v102
    %3185 = vmatpush1.msra.mxu0 %v101
    %3186 = vmatprep.subr.mxu0 %v106
    %3187 = vmatpush1.msra.mxu0 %v105
    %3188 = vmatprep.subr.mxu0 %v110
    %3189 = vmatpush1.msra.mxu0 %v109
    %3190 = vmatprep.subr.mxu0 %v114
    %3191 = vmatpush1.msra.mxu0 %v113
    %3192 = vmatprep.subr.mxu0 %v118
    %3193 = vmatpush1.msra.mxu0 %v117
    %3194 = vmatprep.subr.mxu0 %v122
    %3195 = vmatpush1.msra.mxu0 %v121
    %3196 = vmatprep.subr.mxu0 %v126
    %3197 = vmatpush1.msra.mxu0 %v125
    %3198 = vmatprep.subr.mxu0 %v130
    %3199 = vmatpush1.msra.mxu0 %v129
    %3200 = vmatprep.subr.mxu0 %v134
    %3201 = vmatpush1.msra.mxu0 %v133
    %3202 = vmatprep.subr.mxu0 %v138
    %3203 = vmatpush1.msra.mxu0 %v137
    %3204 = vmatprep.subr.mxu0 %v142
    %3205 = vmatpush1.msra.mxu0 %v141
    %3206 = vmatprep.subr.mxu0 %v146
    %3207 = vmatpush1.msra.mxu0 %v145
    %3208 = vmatprep.subr.mxu0 0.0
    %3209 = vmatpush1.msra.mxu0 0.0
    %3210 = vmatprep.subr.mxu0 0.0
    %3211 = vmatpush1.msra.mxu0 0.0
    %3212 = vmatprep.subr.mxu0 0.0
    %3213 = vmatpush1.msra.mxu0 0.0
    %3214 = vmatprep.subr.mxu0 0.0
    %3215 = vmatpush1.msra.mxu0 0.0
    %3216 = vmatprep.subr.mxu0 0.0
    %3217 = vmatpush1.msra.mxu0 0.0
    %3218 = vmatprep.subr.mxu0 0.0
    %3219 = vmatpush1.msra.mxu0 0.0
    %3220 = vmatprep.subr.mxu0 0.0
    %3221 = vmatpush1.msra.mxu0 0.0
    %3222 = vmatprep.subr.mxu0 0.0
    %3223 = vmatpush1.msra.mxu0 0.0
    %3224 = vmatprep.subr.mxu0 0.0
    %3225 = vmatpush1.msra.mxu0 0.0
    %3226 = vmatprep.subr.mxu0 0.0
    %3227 = vmatpush1.msra.mxu0 0.0
    %3228 = vmatprep.subr.mxu0 0.0
    %3229 = vmatpush1.msra.mxu0 0.0
    %3230 = vmatprep.subr.mxu0 0.0
    %3231 = vmatpush1.msra.mxu0 0.0
    %3232 = vmatprep.subr.mxu0 0.0
    %3233 = vmatpush1.msra.mxu0 0.0
    %3234 = vmatprep.subr.mxu0 0.0
    %3235 = vmatpush1.msra.mxu0 0.0
    %3236 = vmatprep.subr.mxu0 0.0
    %3237 = vmatpush1.msra.mxu0 0.0
    %3238 = vmatprep.subr.mxu0 0.0
    %3239 = vmatpush1.msra.mxu0 0.0
    %3240 = vmatprep.mubr.f32.mxu0 0.0
    %3241 = vmatmul.mubr.f32.gmra.mrb[0].mxu0 %v3104
    %v3242 = vpop.f32.mrb[0].mxu0
    %v3243 = vadd.f32 %v2059, %v3242
    %v3244 = vpop.f32.mrb[0].mxu0
    %v3245 = vadd.f32 %v2063, %v3244
    %3246 = vdwg.mxu0
    %v3251 = vcombine.low %v3172, %v3174
    %v3252 = vcombine.low %v3243, %v3245
    %v3254 = vunpack.c.l.s4 1983009808
    %v3255 = vunpack.c.0.s8 %v3254
    %v3256 = vlaneseq
    %v3257 = vshrl.u32 %v3256, 7
    %v3258 = vsub.s32 %v3255, %v3257
    %v3259 = vrot.slane %v3251, %v3258
    %v3261 = vunpack.c.l.s4 1983009808
    %v3262 = vunpack.c.0.s8 %v3261
    %v3263 = vlaneseq
    %v3264 = vshrl.u32 %v3263, 7
    %v3265 = vsub.s32 %v3262, %v3264
    %v3266 = vrot.slane %v3252, %v3265
    %v3267 = vcombine.low %v3259, %v3266
    %s3269 = scalar_lea.vmem [#allocation4], 48
    %3270 = vst [vmem:[%s3269] sm:$0xff] %v3267
    %v3271 = vld [vmem:[%s1106] sm:$0x3]
    %v3272 = vld [vmem:[%s1220] sm:$0x3]
    %3274 = vrot.lane.b32.xlu0 %v3272, 64
    %v3275 = vpop.permute.xlu0 %3274
    %v3277 = vsel %vm165, %v3271, %v3275
    %3278 = vmatprep.subr.mxu0 %v84
    %3279 = vmatpush1.msra.mxu0 %v83
    %3280 = vmatprep.subr.mxu0 %v88
    %3281 = vmatpush1.msra.mxu0 %v87
    %3282 = vmatprep.subr.mxu0 %v92
    %3283 = vmatpush1.msra.mxu0 %v91
    %3284 = vmatprep.subr.mxu0 %v96
    %3285 = vmatpush1.msra.mxu0 %v95
    %3286 = vmatprep.subr.mxu0 %v100
    %3287 = vmatpush1.msra.mxu0 %v99
    %3288 = vmatprep.subr.mxu0 %v104
    %3289 = vmatpush1.msra.mxu0 %v103
    %3290 = vmatprep.subr.mxu0 %v108
    %3291 = vmatpush1.msra.mxu0 %v107
    %3292 = vmatprep.subr.mxu0 %v112
    %3293 = vmatpush1.msra.mxu0 %v111
    %3294 = vmatprep.subr.mxu0 %v116
    %3295 = vmatpush1.msra.mxu0 %v115
    %3296 = vmatprep.subr.mxu0 %v120
    %3297 = vmatpush1.msra.mxu0 %v119
    %3298 = vmatprep.subr.mxu0 %v124
    %3299 = vmatpush1.msra.mxu0 %v123
    %3300 = vmatprep.subr.mxu0 %v128
    %3301 = vmatpush1.msra.mxu0 %v127
    %3302 = vmatprep.subr.mxu0 %v132
    %3303 = vmatpush1.msra.mxu0 %v131
    %3304 = vmatprep.subr.mxu0 %v136
    %3305 = vmatpush1.msra.mxu0 %v135
    %3306 = vmatprep.subr.mxu0 %v140
    %3307 = vmatpush1.msra.mxu0 %v139
    %3308 = vmatprep.subr.mxu0 %v144
    %3309 = vmatpush1.msra.mxu0 %v143
    %3310 = vmatprep.subr.mxu0 0.0
    %3311 = vmatpush1.msra.mxu0 0.0
    %3312 = vmatprep.subr.mxu0 0.0
    %3313 = vmatpush1.msra.mxu0 0.0
    %3314 = vmatprep.subr.mxu0 0.0
    %3315 = vmatpush1.msra.mxu0 0.0
    %3316 = vmatprep.subr.mxu0 0.0
    %3317 = vmatpush1.msra.mxu0 0.0
    %3318 = vmatprep.subr.mxu0 0.0
    %3319 = vmatpush1.msra.mxu0 0.0
    %3320 = vmatprep.subr.mxu0 0.0
    %3321 = vmatpush1.msra.mxu0 0.0
    %3322 = vmatprep.subr.mxu0 0.0
    %3323 = vmatpush1.msra.mxu0 0.0
    %3324 = vmatprep.subr.mxu0 0.0
    %3325 = vmatpush1.msra.mxu0 0.0
    %3326 = vmatprep.subr.mxu0 0.0
    %3327 = vmatpush1.msra.mxu0 0.0
    %3328 = vmatprep.subr.mxu0 0.0
    %3329 = vmatpush1.msra.mxu0 0.0
    %3330 = vmatprep.subr.mxu0 0.0
    %3331 = vmatpush1.msra.mxu0 0.0
    %3332 = vmatprep.subr.mxu0 0.0
    %3333 = vmatpush1.msra.mxu0 0.0
    %3334 = vmatprep.subr.mxu0 0.0
    %3335 = vmatpush1.msra.mxu0 0.0
    %3336 = vmatprep.subr.mxu0 0.0
    %3337 = vmatpush1.msra.mxu0 0.0
    %3338 = vmatprep.subr.mxu0 0.0
    %3339 = vmatpush1.msra.mxu0 0.0
    %3340 = vmatprep.subr.mxu0 0.0
    %3341 = vmatpush1.msra.mxu0 0.0
    %3342 = vmatprep.mubr.f32.mxu0 0.0
    %3343 = vmatmul.mubr.f32.gmra.mrb[0].mxu0 %v3277
    %v3344 = vpop.f32.mrb[0].mxu0
    %v3345 = vadd.f32 %v2051, %v3344
    %v3346 = vpop.f32.mrb[0].mxu0
    %v3347 = vadd.f32 %v2055, %v3346
    %3348 = vdwg.mxu0
    %3349 = vmatprep.subr.mxu0 %v86
    %3350 = vmatpush1.msra.mxu0 %v85
    %3351 = vmatprep.subr.mxu0 %v90
    %3352 = vmatpush1.msra.mxu0 %v89
    %3353 = vmatprep.subr.mxu0 %v94
    %3354 = vmatpush1.msra.mxu0 %v93
    %3355 = vmatprep.subr.mxu0 %v98
    %3356 = vmatpush1.msra.mxu0 %v97
    %3357 = vmatprep.subr.mxu0 %v102
    %3358 = vmatpush1.msra.mxu0 %v101
    %3359 = vmatprep.subr.mxu0 %v106
    %3360 = vmatpush1.msra.mxu0 %v105
    %3361 = vmatprep.subr.mxu0 %v110
    %3362 = vmatpush1.msra.mxu0 %v109
    %3363 = vmatprep.subr.mxu0 %v114
    %3364 = vmatpush1.msra.mxu0 %v113
    %3365 = vmatprep.subr.mxu0 %v118
    %3366 = vmatpush1.msra.mxu0 %v117
    %3367 = vmatprep.subr.mxu0 %v122
    %3368 = vmatpush1.msra.mxu0 %v121
    %3369 = vmatprep.subr.mxu0 %v126
    %3370 = vmatpush1.msra.mxu0 %v125
    %3371 = vmatprep.subr.mxu0 %v130
    %3372 = vmatpush1.msra.mxu0 %v129
    %3373 = vmatprep.subr.mxu0 %v134
    %3374 = vmatpush1.msra.mxu0 %v133
    %3375 = vmatprep.subr.mxu0 %v138
    %3376 = vmatpush1.msra.mxu0 %v137
    %3377 = vmatprep.subr.mxu0 %v142
    %3378 = vmatpush1.msra.mxu0 %v141
    %3379 = vmatprep.subr.mxu0 %v146
    %3380 = vmatpush1.msra.mxu0 %v145
    %3381 = vmatprep.subr.mxu0 0.0
    %3382 = vmatpush1.msra.mxu0 0.0
    %3383 = vmatprep.subr.mxu0 0.0
    %3384 = vmatpush1.msra.mxu0 0.0
    %3385 = vmatprep.subr.mxu0 0.0
    %3386 = vmatpush1.msra.mxu0 0.0
    %3387 = vmatprep.subr.mxu0 0.0
    %3388 = vmatpush1.msra.mxu0 0.0
    %3389 = vmatprep.subr.mxu0 0.0
    %3390 = vmatpush1.msra.mxu0 0.0
    %3391 = vmatprep.subr.mxu0 0.0
    %3392 = vmatpush1.msra.mxu0 0.0
    %3393 = vmatprep.subr.mxu0 0.0
    %3394 = vmatpush1.msra.mxu0 0.0
    %3395 = vmatprep.subr.mxu0 0.0
    %3396 = vmatpush1.msra.mxu0 0.0
    %3397 = vmatprep.subr.mxu0 0.0
    %3398 = vmatpush1.msra.mxu0 0.0
    %3399 = vmatprep.subr.mxu0 0.0
    %3400 = vmatpush1.msra.mxu0 0.0
    %3401 = vmatprep.subr.mxu0 0.0
    %3402 = vmatpush1.msra.mxu0 0.0
    %3403 = vmatprep.subr.mxu0 0.0
    %3404 = vmatpush1.msra.mxu0 0.0
    %3405 = vmatprep.subr.mxu0 0.0
    %3406 = vmatpush1.msra.mxu0 0.0
    %3407 = vmatprep.subr.mxu0 0.0
    %3408 = vmatpush1.msra.mxu0 0.0
    %3409 = vmatprep.subr.mxu0 0.0
    %3410 = vmatpush1.msra.mxu0 0.0
    %3411 = vmatprep.subr.mxu0 0.0
    %3412 = vmatpush1.msra.mxu0 0.0
    %3413 = vmatprep.mubr.f32.mxu0 0.0
    %3414 = vmatmul.mubr.f32.gmra.mrb[0].mxu0 %v3277
    %v3415 = vpop.f32.mrb[0].mxu0
    %v3416 = vadd.f32 %v2059, %v3415
    %v3417 = vpop.f32.mrb[0].mxu0
    %v3418 = vadd.f32 %v2063, %v3417
    %3419 = vdwg.mxu0
    %v3424 = vcombine.low %v3345, %v3347
    %v3425 = vcombine.low %v3416, %v3418
    %v3427 = vunpack.c.l.s4 1983009808
    %v3428 = vunpack.c.0.s8 %v3427
    %v3429 = vlaneseq
    %v3430 = vshrl.u32 %v3429, 7
    %v3431 = vsub.s32 %v3428, %v3430
    %v3432 = vrot.slane %v3424, %v3431
    %v3434 = vunpack.c.l.s4 1983009808
    %v3435 = vunpack.c.0.s8 %v3434
    %v3436 = vlaneseq
    %v3437 = vshrl.u32 %v3436, 7
    %v3438 = vsub.s32 %v3435, %v3437
    %v3439 = vrot.slane %v3425, %v3438
    %v3440 = vcombine.low %v3432, %v3439
    %s3442 = scalar_lea.vmem [#allocation4], 56
    %3443 = vst [vmem:[%s3442] sm:$0xff] %v3440
    %v3444 = vld [vmem:[#allocation4] sm:$0xf]
    %3445 = vmatprep.subr.mxu0 %v149
    %3446 = vmatpush1.msra.mxu0 %v148
    %3447 = vmatprep.subr.mxu0 %v151
    %3448 = vmatpush1.msra.mxu0 %v150
    %3449 = vmatprep.subr.mxu0 %v153
    %3450 = vmatpush1.msra.mxu0 %v152
    %3451 = vmatprep.subr.mxu0 %v155
    %3452 = vmatpush1.msra.mxu0 %v154
    %3453 = vmatprep.subr.mxu0 %v157
    %3454 = vmatpush1.msra.mxu0 %v156
    %3455 = vmatprep.subr.mxu0 %v159
    %3456 = vmatpush1.msra.mxu0 %v158
    %3457 = vmatprep.subr.mxu0 %v161
    %3458 = vmatpush1.msra.mxu0 %v160
    %3459 = vmatprep.subr.mxu0 %v163
    %3460 = vmatpush1.msra.mxu0 %v162
    %3461 = vmatprep.subr.mxu0 0.0
    %3462 = vmatpush1.msra.mxu0 0.0
    %3463 = vmatprep.subr.mxu0 0.0
    %3464 = vmatpush1.msra.mxu0 0.0
    %3465 = vmatprep.subr.mxu0 0.0
    %3466 = vmatpush1.msra.mxu0 0.0
    %3467 = vmatprep.subr.mxu0 0.0
    %3468 = vmatpush1.msra.mxu0 0.0
    %3469 = vmatprep.subr.mxu0 0.0
    %3470 = vmatpush1.msra.mxu0 0.0
    %3471 = vmatprep.subr.mxu0 0.0
    %3472 = vmatpush1.msra.mxu0 0.0
    %3473 = vmatprep.subr.mxu0 0.0
    %3474 = vmatpush1.msra.mxu0 0.0
    %3475 = vmatprep.subr.mxu0 0.0
    %3476 = vmatpush1.msra.mxu0 0.0
    %3477 = vmatprep.subr.mxu0 0.0
    %3478 = vmatpush1.msra.mxu0 0.0
    %3479 = vmatprep.subr.mxu0 0.0
    %3480 = vmatpush1.msra.mxu0 0.0
    %3481 = vmatprep.subr.mxu0 0.0
    %3482 = vmatpush1.msra.mxu0 0.0
    %3483 = vmatprep.subr.mxu0 0.0
    %3484 = vmatpush1.msra.mxu0 0.0
    %3485 = vmatprep.subr.mxu0 0.0
    %3486 = vmatpush1.msra.mxu0 0.0
    %3487 = vmatprep.subr.mxu0 0.0
    %3488 = vmatpush1.msra.mxu0 0.0
    %3489 = vmatprep.subr.mxu0 0.0
    %3490 = vmatpush1.msra.mxu0 0.0
    %3491 = vmatprep.subr.mxu0 0.0
    %3492 = vmatpush1.msra.mxu0 0.0
    %3493 = vmatprep.subr.mxu0 0.0
    %3494 = vmatpush1.msra.mxu0 0.0
    %3495 = vmatprep.subr.mxu0 0.0
    %3496 = vmatpush1.msra.mxu0 0.0
    %3497 = vmatprep.subr.mxu0 0.0
    %3498 = vmatpush1.msra.mxu0 0.0
    %3499 = vmatprep.subr.mxu0 0.0
    %3500 = vmatpush1.msra.mxu0 0.0
    %3501 = vmatprep.subr.mxu0 0.0
    %3502 = vmatpush1.msra.mxu0 0.0
    %3503 = vmatprep.subr.mxu0 0.0
    %3504 = vmatpush1.msra.mxu0 0.0
    %3505 = vmatprep.subr.mxu0 0.0
    %3506 = vmatpush1.msra.mxu0 0.0
    %3507 = vmatprep.subr.mxu0 0.0
    %3508 = vmatpush1.msra.mxu0 0.0
    %3509 = vmatprep.mubr.f32.mxu0 0.0
    %3510 = vmatmul.mubr.f32.gmra.mrb[0].mxu0 %v167
    %v3511 = vpop.f32.mrb[0].mxu0
    %v3512 = vadd.f32 0.0, %v3511
    %v3513 = vpop.f32.mrb[0].mxu0
    %v3514 = vadd.f32 0.0, %v3513
    %3515 = vdwg.mxu0
    %v3518 = vcombine.low %v3512, %v3514
    %v3520 = vunpack.c.l.s4 1983009808
    %v3521 = vunpack.c.0.s8 %v3520
    %v3522 = vlaneseq
    %v3523 = vshrl.u32 %v3522, 7
    %v3524 = vsub.s32 %v3521, %v3523
    %v3525 = vrot.slane %v3518, %v3524
    %v3527 = vadd.f32 %v3444, %v3525
    %v3528 = vxor.u32 %v3527, 2147483648
    %v3529 = vmul.f32 %v3528, 1.442695
    %v3530 = vpow.pop %v3529
    %v3531 = vadd.f32 %v3530, 1.0
    %v3532 = vrcp.pop %v3531
    %v3533 = vmul.f32 1.0, %v3532
    %3535 = vrot.lane.b32.xlu0 %v3527, 64
    %v3536 = vpop.permute.xlu0 %3535
    %v3537 = vrot.slane %v3536, 2
    %v3539 = vtanh.pop %v3537
    %v3540 = vmul.f32 %v3533, 0.0
    %v3541 = vmul.f32 %v3533, %v3539
    %3543 = vrot.lane.b32.xlu0 %v3541, 64
    %v3544 = vpop.permute.xlu0 %3543
    %v3546 = vadd.f32 %v3540, %v3544
    %v3547 = vtanh.pop %v3546
    %v3549 = vrot.slane %v3533, 2
    %3552 = vrot.lane.b32.xlu0 %v3547, 64
    %v3553 = vpop.permute.xlu0 %3552
    %v3555 = vmul.f32 %v3549, %v3553
    %v3556 = vld [vmem:[%s2404] sm:$0xf]
    %v3558 = vsel %vm165, %v3555, 0
    %3560 = vmatprep.subr.mxu0 %v149
    %3561 = vmatpush1.msra.mxu0 %v148
    %3562 = vmatprep.subr.mxu0 %v151
    %3563 = vmatpush1.msra.mxu0 %v150
    %3564 = vmatprep.subr.mxu0 %v153
    %3565 = vmatpush1.msra.mxu0 %v152
    %3566 = vmatprep.subr.mxu0 %v155
    %3567 = vmatpush1.msra.mxu0 %v154
    %3568 = vmatprep.subr.mxu0 %v157
    %3569 = vmatpush1.msra.mxu0 %v156
    %3570 = vmatprep.subr.mxu0 %v159
    %3571 = vmatpush1.msra.mxu0 %v158
    %3572 = vmatprep.subr.mxu0 %v161
    %3573 = vmatpush1.msra.mxu0 %v160
    %3574 = vmatprep.subr.mxu0 %v163
    %3575 = vmatpush1.msra.mxu0 %v162
    %3576 = vmatprep.subr.mxu0 0.0
    %3577 = vmatpush1.msra.mxu0 0.0
    %3578 = vmatprep.subr.mxu0 0.0
    %3579 = vmatpush1.msra.mxu0 0.0
    %3580 = vmatprep.subr.mxu0 0.0
    %3581 = vmatpush1.msra.mxu0 0.0
    %3582 = vmatprep.subr.mxu0 0.0
    %3583 = vmatpush1.msra.mxu0 0.0
    %3584 = vmatprep.subr.mxu0 0.0
    %3585 = vmatpush1.msra.mxu0 0.0
    %3586 = vmatprep.subr.mxu0 0.0
    %3587 = vmatpush1.msra.mxu0 0.0
    %3588 = vmatprep.subr.mxu0 0.0
    %3589 = vmatpush1.msra.mxu0 0.0
    %3590 = vmatprep.subr.mxu0 0.0
    %3591 = vmatpush1.msra.mxu0 0.0
    %3592 = vmatprep.subr.mxu0 0.0
    %3593 = vmatpush1.msra.mxu0 0.0
    %3594 = vmatprep.subr.mxu0 0.0
    %3595 = vmatpush1.msra.mxu0 0.0
    %3596 = vmatprep.subr.mxu0 0.0
    %3597 = vmatpush1.msra.mxu0 0.0
    %3598 = vmatprep.subr.mxu0 0.0
    %3599 = vmatpush1.msra.mxu0 0.0
    %3600 = vmatprep.subr.mxu0 0.0
    %3601 = vmatpush1.msra.mxu0 0.0
    %3602 = vmatprep.subr.mxu0 0.0
    %3603 = vmatpush1.msra.mxu0 0.0
    %3604 = vmatprep.subr.mxu0 0.0
    %3605 = vmatpush1.msra.mxu0 0.0
    %3606 = vmatprep.subr.mxu0 0.0
    %3607 = vmatpush1.msra.mxu0 0.0
    %3608 = vmatprep.subr.mxu0 0.0
    %3609 = vmatpush1.msra.mxu0 0.0
    %3610 = vmatprep.subr.mxu0 0.0
    %3611 = vmatpush1.msra.mxu0 0.0
    %3612 = vmatprep.subr.mxu0 0.0
    %3613 = vmatpush1.msra.mxu0 0.0
    %3614 = vmatprep.subr.mxu0 0.0
    %3615 = vmatpush1.msra.mxu0 0.0
    %3616 = vmatprep.subr.mxu0 0.0
    %3617 = vmatpush1.msra.mxu0 0.0
    %3618 = vmatprep.subr.mxu0 0.0
    %3619 = vmatpush1.msra.mxu0 0.0
    %3620 = vmatprep.subr.mxu0 0.0
    %3621 = vmatpush1.msra.mxu0 0.0
    %3622 = vmatprep.subr.mxu0 0.0
    %3623 = vmatpush1.msra.mxu0 0.0
    %3624 = vmatprep.mubr.f32.mxu0 0.0
    %3625 = vmatmul.mubr.f32.gmra.mrb[0].mxu0 %v3558
    %v3626 = vpop.f32.mrb[0].mxu0
    %v3627 = vadd.f32 0.0, %v3626
    %v3628 = vpop.f32.mrb[0].mxu0
    %v3629 = vadd.f32 0.0, %v3628
    %3630 = vdwg.mxu0
    %v3633 = vcombine.low %v3627, %v3629
    %v3635 = vunpack.c.l.s4 1983009808
    %v3636 = vunpack.c.0.s8 %v3635
    %v3637 = vlaneseq
    %v3638 = vshrl.u32 %v3637, 7
    %v3639 = vsub.s32 %v3636, %v3638
    %v3640 = vrot.slane %v3633, %v3639
    %v3642 = vadd.f32 %v3556, %v3640
    %v3643 = vxor.u32 %v3642, 2147483648
    %v3644 = vmul.f32 %v3643, 1.442695
    %v3645 = vpow.pop %v3644
    %v3646 = vadd.f32 %v3645, 1.0
    %v3647 = vrcp.pop %v3646
    %v3648 = vmul.f32 1.0, %v3647
    %3650 = vrot.lane.b32.xlu0 %v3642, 64
    %v3651 = vpop.permute.xlu0 %3650
    %v3652 = vrot.slane %v3651, 2
    %v3654 = vtanh.pop %v3652
    %v3655 = vmul.f32 %v3648, %v3546
    %v3656 = vmul.f32 %v3648, %v3654
    %3658 = vrot.lane.b32.xlu0 %v3656, 64
    %v3659 = vpop.permute.xlu0 %3658
    %v3661 = vadd.f32 %v3655, %v3659
    %v3662 = vtanh.pop %v3661
    %v3664 = vrot.slane %v3648, 2
    %3667 = vrot.lane.b32.xlu0 %v3662, 64
    %v3668 = vpop.permute.xlu0 %3667
    %v3670 = vmul.f32 %v3664, %v3668
    %v3671 = vld [vmem:[%s2577] sm:$0xf]
    %v3673 = vsel %vm165, %v3670, 0
    %3675 = vmatprep.subr.mxu0 %v149
    %3676 = vmatpush1.msra.mxu0 %v148
    %3677 = vmatprep.subr.mxu0 %v151
    %3678 = vmatpush1.msra.mxu0 %v150
    %3679 = vmatprep.subr.mxu0 %v153
    %3680 = vmatpush1.msra.mxu0 %v152
    %3681 = vmatprep.subr.mxu0 %v155
    %3682 = vmatpush1.msra.mxu0 %v154
    %3683 = vmatprep.subr.mxu0 %v157
    %3684 = vmatpush1.msra.mxu0 %v156
    %3685 = vmatprep.subr.mxu0 %v159
    %3686 = vmatpush1.msra.mxu0 %v158
    %3687 = vmatprep.subr.mxu0 %v161
    %3688 = vmatpush1.msra.mxu0 %v160
    %3689 = vmatprep.subr.mxu0 %v163
    %3690 = vmatpush1.msra.mxu0 %v162
    %3691 = vmatprep.subr.mxu0 0.0
    %3692 = vmatpush1.msra.mxu0 0.0
    %3693 = vmatprep.subr.mxu0 0.0
    %3694 = vmatpush1.msra.mxu0 0.0
    %3695 = vmatprep.subr.mxu0 0.0
    %3696 = vmatpush1.msra.mxu0 0.0
    %3697 = vmatprep.subr.mxu0 0.0
    %3698 = vmatpush1.msra.mxu0 0.0
    %3699 = vmatprep.subr.mxu0 0.0
    %3700 = vmatpush1.msra.mxu0 0.0
    %3701 = vmatprep.subr.mxu0 0.0
    %3702 = vmatpush1.msra.mxu0 0.0
    %3703 = vmatprep.subr.mxu0 0.0
    %3704 = vmatpush1.msra.mxu0 0.0
    %3705 = vmatprep.subr.mxu0 0.0
    %3706 = vmatpush1.msra.mxu0 0.0
    %3707 = vmatprep.subr.mxu0 0.0
    %3708 = vmatpush1.msra.mxu0 0.0
    %3709 = vmatprep.subr.mxu0 0.0
    %3710 = vmatpush1.msra.mxu0 0.0
    %3711 = vmatprep.subr.mxu0 0.0
    %3712 = vmatpush1.msra.mxu0 0.0
    %3713 = vmatprep.subr.mxu0 0.0
    %3714 = vmatpush1.msra.mxu0 0.0
    %3715 = vmatprep.subr.mxu0 0.0
    %3716 = vmatpush1.msra.mxu0 0.0
    %3717 = vmatprep.subr.mxu0 0.0
    %3718 = vmatpush1.msra.mxu0 0.0
    %3719 = vmatprep.subr.mxu0 0.0
    %3720 = vmatpush1.msra.mxu0 0.0
    %3721 = vmatprep.subr.mxu0 0.0
    %3722 = vmatpush1.msra.mxu0 0.0
    %3723 = vmatprep.subr.mxu0 0.0
    %3724 = vmatpush1.msra.mxu0 0.0
    %3725 = vmatprep.subr.mxu0 0.0
    %3726 = vmatpush1.msra.mxu0 0.0
    %3727 = vmatprep.subr.mxu0 0.0
    %3728 = vmatpush1.msra.mxu0 0.0
    %3729 = vmatprep.subr.mxu0 0.0
    %3730 = vmatpush1.msra.mxu0 0.0
    %3731 = vmatprep.subr.mxu0 0.0
    %3732 = vmatpush1.msra.mxu0 0.0
    %3733 = vmatprep.subr.mxu0 0.0
    %3734 = vmatpush1.msra.mxu0 0.0
    %3735 = vmatprep.subr.mxu0 0.0
    %3736 = vmatpush1.msra.mxu0 0.0
    %3737 = vmatprep.subr.mxu0 0.0
    %3738 = vmatpush1.msra.mxu0 0.0
    %3739 = vmatprep.mubr.f32.mxu0 0.0
    %3740 = vmatmul.mubr.f32.gmra.mrb[0].mxu0 %v3673
    %v3741 = vpop.f32.mrb[0].mxu0
    %v3742 = vadd.f32 0.0, %v3741
    %v3743 = vpop.f32.mrb[0].mxu0
    %v3744 = vadd.f32 0.0, %v3743
    %3745 = vdwg.mxu0
    %v3748 = vcombine.low %v3742, %v3744
    %v3750 = vunpack.c.l.s4 1983009808
    %v3751 = vunpack.c.0.s8 %v3750
    %v3752 = vlaneseq
    %v3753 = vshrl.u32 %v3752, 7
    %v3754 = vsub.s32 %v3751, %v3753
    %v3755 = vrot.slane %v3748, %v3754
    %v3757 = vadd.f32 %v3671, %v3755
    %v3758 = vxor.u32 %v3757, 2147483648
    %v3759 = vmul.f32 %v3758, 1.442695
    %v3760 = vpow.pop %v3759
    %v3761 = vadd.f32 %v3760, 1.0
    %v3762 = vrcp.pop %v3761
    %v3763 = vmul.f32 1.0, %v3762
    %3765 = vrot.lane.b32.xlu0 %v3757, 64
    %v3766 = vpop.permute.xlu0 %3765
    %v3767 = vrot.slane %v3766, 2
    %v3769 = vtanh.pop %v3767
    %v3770 = vmul.f32 %v3763, %v3661
    %v3771 = vmul.f32 %v3763, %v3769
    %3773 = vrot.lane.b32.xlu0 %v3771, 64
    %v3774 = vpop.permute.xlu0 %3773
    %v3776 = vadd.f32 %v3770, %v3774
    %v3777 = vtanh.pop %v3776
    %v3779 = vrot.slane %v3763, 2
    %3782 = vrot.lane.b32.xlu0 %v3777, 64
    %v3783 = vpop.permute.xlu0 %3782
    %v3785 = vmul.f32 %v3779, %v3783
    %v3786 = vld [vmem:[%s2750] sm:$0xf]
    %v3788 = vsel %vm165, %v3785, 0
    %3790 = vmatprep.subr.mxu0 %v149
    %3791 = vmatpush1.msra.mxu0 %v148
    %3792 = vmatprep.subr.mxu0 %v151
    %3793 = vmatpush1.msra.mxu0 %v150
    %3794 = vmatprep.subr.mxu0 %v153
    %3795 = vmatpush1.msra.mxu0 %v152
    %3796 = vmatprep.subr.mxu0 %v155
    %3797 = vmatpush1.msra.mxu0 %v154
    %3798 = vmatprep.subr.mxu0 %v157
    %3799 = vmatpush1.msra.mxu0 %v156
    %3800 = vmatprep.subr.mxu0 %v159
    %3801 = vmatpush1.msra.mxu0 %v158
    %3802 = vmatprep.subr.mxu0 %v161
    %3803 = vmatpush1.msra.mxu0 %v160
    %3804 = vmatprep.subr.mxu0 %v163
    %3805 = vmatpush1.msra.mxu0 %v162
    %3806 = vmatprep.subr.mxu0 0.0
    %3807 = vmatpush1.msra.mxu0 0.0
    %3808 = vmatprep.subr.mxu0 0.0
    %3809 = vmatpush1.msra.mxu0 0.0
    %3810 = vmatprep.subr.mxu0 0.0
    %3811 = vmatpush1.msra.mxu0 0.0
    %3812 = vmatprep.subr.mxu0 0.0
    %3813 = vmatpush1.msra.mxu0 0.0
    %3814 = vmatprep.subr.mxu0 0.0
    %3815 = vmatpush1.msra.mxu0 0.0
    %3816 = vmatprep.subr.mxu0 0.0
    %3817 = vmatpush1.msra.mxu0 0.0
    %3818 = vmatprep.subr.mxu0 0.0
    %3819 = vmatpush1.msra.mxu0 0.0
    %3820 = vmatprep.subr.mxu0 0.0
    %3821 = vmatpush1.msra.mxu0 0.0
    %3822 = vmatprep.subr.mxu0 0.0
    %3823 = vmatpush1.msra.mxu0 0.0
    %3824 = vmatprep.subr.mxu0 0.0
    %3825 = vmatpush1.msra.mxu0 0.0
    %3826 = vmatprep.subr.mxu0 0.0
    %3827 = vmatpush1.msra.mxu0 0.0
    %3828 = vmatprep.subr.mxu0 0.0
    %3829 = vmatpush1.msra.mxu0 0.0
    %3830 = vmatprep.subr.mxu0 0.0
    %3831 = vmatpush1.msra.mxu0 0.0
    %3832 = vmatprep.subr.mxu0 0.0
    %3833 = vmatpush1.msra.mxu0 0.0
    %3834 = vmatprep.subr.mxu0 0.0
    %3835 = vmatpush1.msra.mxu0 0.0
    %3836 = vmatprep.subr.mxu0 0.0
    %3837 = vmatpush1.msra.mxu0 0.0
    %3838 = vmatprep.subr.mxu0 0.0
    %3839 = vmatpush1.msra.mxu0 0.0
    %3840 = vmatprep.subr.mxu0 0.0
    %3841 = vmatpush1.msra.mxu0 0.0
    %3842 = vmatprep.subr.mxu0 0.0
    %3843 = vmatpush1.msra.mxu0 0.0
    %3844 = vmatprep.subr.mxu0 0.0
    %3845 = vmatpush1.msra.mxu0 0.0
    %3846 = vmatprep.subr.mxu0 0.0
    %3847 = vmatpush1.msra.mxu0 0.0
    %3848 = vmatprep.subr.mxu0 0.0
    %3849 = vmatpush1.msra.mxu0 0.0
    %3850 = vmatprep.subr.mxu0 0.0
    %3851 = vmatpush1.msra.mxu0 0.0
    %3852 = vmatprep.subr.mxu0 0.0
    %3853 = vmatpush1.msra.mxu0 0.0
    %3854 = vmatprep.mubr.f32.mxu0 0.0
    %3855 = vmatmul.mubr.f32.gmra.mrb[0].mxu0 %v3788
    %v3856 = vpop.f32.mrb[0].mxu0
    %v3857 = vadd.f32 0.0, %v3856
    %v3858 = vpop.f32.mrb[0].mxu0
    %v3859 = vadd.f32 0.0, %v3858
    %3860 = vdwg.mxu0
    %v3863 = vcombine.low %v3857, %v3859
    %v3865 = vunpack.c.l.s4 1983009808
    %v3866 = vunpack.c.0.s8 %v3865
    %v3867 = vlaneseq
    %v3868 = vshrl.u32 %v3867, 7
    %v3869 = vsub.s32 %v3866, %v3868
    %v3870 = vrot.slane %v3863, %v3869
    %v3872 = vadd.f32 %v3786, %v3870
    %v3873 = vxor.u32 %v3872, 2147483648
    %v3874 = vmul.f32 %v3873, 1.442695
    %v3875 = vpow.pop %v3874
    %v3876 = vadd.f32 %v3875, 1.0
    %v3877 = vrcp.pop %v3876
    %v3878 = vmul.f32 1.0, %v3877
    %3880 = vrot.lane.b32.xlu0 %v3872, 64
    %v3881 = vpop.permute.xlu0 %3880
    %v3882 = vrot.slane %v3881, 2
    %v3884 = vtanh.pop %v3882
    %v3885 = vmul.f32 %v3878, %v3776
    %v3886 = vmul.f32 %v3878, %v3884
    %3888 = vrot.lane.b32.xlu0 %v3886, 64
    %v3889 = vpop.permute.xlu0 %3888
    %v3891 = vadd.f32 %v3885, %v3889
    %v3892 = vtanh.pop %v3891
    %v3894 = vrot.slane %v3878, 2
    %3897 = vrot.lane.b32.xlu0 %v3892, 64
    %v3898 = vpop.permute.xlu0 %3897
    %v3900 = vmul.f32 %v3894, %v3898
    %v3901 = vld [vmem:[%s2923] sm:$0xf]
    %v3903 = vsel %vm165, %v3900, 0
    %3905 = vmatprep.subr.mxu0 %v149
    %3906 = vmatpush1.msra.mxu0 %v148
    %3907 = vmatprep.subr.mxu0 %v151
    %3908 = vmatpush1.msra.mxu0 %v150
    %3909 = vmatprep.subr.mxu0 %v153
    %3910 = vmatpush1.msra.mxu0 %v152
    %3911 = vmatprep.subr.mxu0 %v155
    %3912 = vmatpush1.msra.mxu0 %v154
    %3913 = vmatprep.subr.mxu0 %v157
    %3914 = vmatpush1.msra.mxu0 %v156
    %3915 = vmatprep.subr.mxu0 %v159
    %3916 = vmatpush1.msra.mxu0 %v158
    %3917 = vmatprep.subr.mxu0 %v161
    %3918 = vmatpush1.msra.mxu0 %v160
    %3919 = vmatprep.subr.mxu0 %v163
    %3920 = vmatpush1.msra.mxu0 %v162
    %3921 = vmatprep.subr.mxu0 0.0
    %3922 = vmatpush1.msra.mxu0 0.0
    %3923 = vmatprep.subr.mxu0 0.0
    %3924 = vmatpush1.msra.mxu0 0.0
    %3925 = vmatprep.subr.mxu0 0.0
    %3926 = vmatpush1.msra.mxu0 0.0
    %3927 = vmatprep.subr.mxu0 0.0
    %3928 = vmatpush1.msra.mxu0 0.0
    %3929 = vmatprep.subr.mxu0 0.0
    %3930 = vmatpush1.msra.mxu0 0.0
    %3931 = vmatprep.subr.mxu0 0.0
    %3932 = vmatpush1.msra.mxu0 0.0
    %3933 = vmatprep.subr.mxu0 0.0
    %3934 = vmatpush1.msra.mxu0 0.0
    %3935 = vmatprep.subr.mxu0 0.0
    %3936 = vmatpush1.msra.mxu0 0.0
    %3937 = vmatprep.subr.mxu0 0.0
    %3938 = vmatpush1.msra.mxu0 0.0
    %3939 = vmatprep.subr.mxu0 0.0
    %3940 = vmatpush1.msra.mxu0 0.0
    %3941 = vmatprep.subr.mxu0 0.0
    %3942 = vmatpush1.msra.mxu0 0.0
    %3943 = vmatprep.subr.mxu0 0.0
    %3944 = vmatpush1.msra.mxu0 0.0
    %3945 = vmatprep.subr.mxu0 0.0
    %3946 = vmatpush1.msra.mxu0 0.0
    %3947 = vmatprep.subr.mxu0 0.0
    %3948 = vmatpush1.msra.mxu0 0.0
    %3949 = vmatprep.subr.mxu0 0.0
    %3950 = vmatpush1.msra.mxu0 0.0
    %3951 = vmatprep.subr.mxu0 0.0
    %3952 = vmatpush1.msra.mxu0 0.0
    %3953 = vmatprep.subr.mxu0 0.0
    %3954 = vmatpush1.msra.mxu0 0.0
    %3955 = vmatprep.subr.mxu0 0.0
    %3956 = vmatpush1.msra.mxu0 0.0
    %3957 = vmatprep.subr.mxu0 0.0
    %3958 = vmatpush1.msra.mxu0 0.0
    %3959 = vmatprep.subr.mxu0 0.0
    %3960 = vmatpush1.msra.mxu0 0.0
    %3961 = vmatprep.subr.mxu0 0.0
    %3962 = vmatpush1.msra.mxu0 0.0
    %3963 = vmatprep.subr.mxu0 0.0
    %3964 = vmatpush1.msra.mxu0 0.0
    %3965 = vmatprep.subr.mxu0 0.0
    %3966 = vmatpush1.msra.mxu0 0.0
    %3967 = vmatprep.subr.mxu0 0.0
    %3968 = vmatpush1.msra.mxu0 0.0
    %3969 = vmatprep.mubr.f32.mxu0 0.0
    %3970 = vmatmul.mubr.f32.gmra.mrb[0].mxu0 %v3903
    %v3971 = vpop.f32.mrb[0].mxu0
    %v3972 = vadd.f32 0.0, %v3971
    %v3973 = vpop.f32.mrb[0].mxu0
    %v3974 = vadd.f32 0.0, %v3973
    %3975 = vdwg.mxu0
    %v3978 = vcombine.low %v3972, %v3974
    %v3980 = vunpack.c.l.s4 1983009808
    %v3981 = vunpack.c.0.s8 %v3980
    %v3982 = vlaneseq
    %v3983 = vshrl.u32 %v3982, 7
    %v3984 = vsub.s32 %v3981, %v3983
    %v3985 = vrot.slane %v3978, %v3984
    %v3987 = vadd.f32 %v3901, %v3985
    %v3988 = vxor.u32 %v3987, 2147483648
    %v3989 = vmul.f32 %v3988, 1.442695
    %v3990 = vpow.pop %v3989
    %v3991 = vadd.f32 %v3990, 1.0
    %v3992 = vrcp.pop %v3991
    %v3993 = vmul.f32 1.0, %v3992
    %3995 = vrot.lane.b32.xlu0 %v3987, 64
    %v3996 = vpop.permute.xlu0 %3995
    %v3997 = vrot.slane %v3996, 2
    %v3999 = vtanh.pop %v3997
    %v4000 = vmul.f32 %v3993, %v3891
    %v4001 = vmul.f32 %v3993, %v3999
    %4003 = vrot.lane.b32.xlu0 %v4001, 64
    %v4004 = vpop.permute.xlu0 %4003
    %v4006 = vadd.f32 %v4000, %v4004
    %v4007 = vtanh.pop %v4006
    %v4009 = vrot.slane %v3993, 2
    %4012 = vrot.lane.b32.xlu0 %v4007, 64
    %v4013 = vpop.permute.xlu0 %4012
    %v4015 = vmul.f32 %v4009, %v4013
    %v4016 = vld [vmem:[%s3096] sm:$0xf]
    %v4018 = vsel %vm165, %v4015, 0
    %4020 = vmatprep.subr.mxu0 %v149
    %4021 = vmatpush1.msra.mxu0 %v148
    %4022 = vmatprep.subr.mxu0 %v151
    %4023 = vmatpush1.msra.mxu0 %v150
    %4024 = vmatprep.subr.mxu0 %v153
    %4025 = vmatpush1.msra.mxu0 %v152
    %4026 = vmatprep.subr.mxu0 %v155
    %4027 = vmatpush1.msra.mxu0 %v154
    %4028 = vmatprep.subr.mxu0 %v157
    %4029 = vmatpush1.msra.mxu0 %v156
    %4030 = vmatprep.subr.mxu0 %v159
    %4031 = vmatpush1.msra.mxu0 %v158
    %4032 = vmatprep.subr.mxu0 %v161
    %4033 = vmatpush1.msra.mxu0 %v160
    %4034 = vmatprep.subr.mxu0 %v163
    %4035 = vmatpush1.msra.mxu0 %v162
    %4036 = vmatprep.subr.mxu0 0.0
    %4037 = vmatpush1.msra.mxu0 0.0
    %4038 = vmatprep.subr.mxu0 0.0
    %4039 = vmatpush1.msra.mxu0 0.0
    %4040 = vmatprep.subr.mxu0 0.0
    %4041 = vmatpush1.msra.mxu0 0.0
    %4042 = vmatprep.subr.mxu0 0.0
    %4043 = vmatpush1.msra.mxu0 0.0
    %4044 = vmatprep.subr.mxu0 0.0
    %4045 = vmatpush1.msra.mxu0 0.0
    %4046 = vmatprep.subr.mxu0 0.0
    %4047 = vmatpush1.msra.mxu0 0.0
    %4048 = vmatprep.subr.mxu0 0.0
    %4049 = vmatpush1.msra.mxu0 0.0
    %4050 = vmatprep.subr.mxu0 0.0
    %4051 = vmatpush1.msra.mxu0 0.0
    %4052 = vmatprep.subr.mxu0 0.0
    %4053 = vmatpush1.msra.mxu0 0.0
    %4054 = vmatprep.subr.mxu0 0.0
    %4055 = vmatpush1.msra.mxu0 0.0
    %4056 = vmatprep.subr.mxu0 0.0
    %4057 = vmatpush1.msra.mxu0 0.0
    %4058 = vmatprep.subr.mxu0 0.0
    %4059 = vmatpush1.msra.mxu0 0.0
    %4060 = vmatprep.subr.mxu0 0.0
    %4061 = vmatpush1.msra.mxu0 0.0
    %4062 = vmatprep.subr.mxu0 0.0
    %4063 = vmatpush1.msra.mxu0 0.0
    %4064 = vmatprep.subr.mxu0 0.0
    %4065 = vmatpush1.msra.mxu0 0.0
    %4066 = vmatprep.subr.mxu0 0.0
    %4067 = vmatpush1.msra.mxu0 0.0
    %4068 = vmatprep.subr.mxu0 0.0
    %4069 = vmatpush1.msra.mxu0 0.0
    %4070 = vmatprep.subr.mxu0 0.0
    %4071 = vmatpush1.msra.mxu0 0.0
    %4072 = vmatprep.subr.mxu0 0.0
    %4073 = vmatpush1.msra.mxu0 0.0
    %4074 = vmatprep.subr.mxu0 0.0
    %4075 = vmatpush1.msra.mxu0 0.0
    %4076 = vmatprep.subr.mxu0 0.0
    %4077 = vmatpush1.msra.mxu0 0.0
    %4078 = vmatprep.subr.mxu0 0.0
    %4079 = vmatpush1.msra.mxu0 0.0
    %4080 = vmatprep.subr.mxu0 0.0
    %4081 = vmatpush1.msra.mxu0 0.0
    %4082 = vmatprep.subr.mxu0 0.0
    %4083 = vmatpush1.msra.mxu0 0.0
    %4084 = vmatprep.mubr.f32.mxu0 0.0
    %4085 = vmatmul.mubr.f32.gmra.mrb[0].mxu0 %v4018
    %v4086 = vpop.f32.mrb[0].mxu0
    %v4087 = vadd.f32 0.0, %v4086
    %v4088 = vpop.f32.mrb[0].mxu0
    %v4089 = vadd.f32 0.0, %v4088
    %4090 = vdwg.mxu0
    %v4093 = vcombine.low %v4087, %v4089
    %v4095 = vunpack.c.l.s4 1983009808
    %v4096 = vunpack.c.0.s8 %v4095
    %v4097 = vlaneseq
    %v4098 = vshrl.u32 %v4097, 7
    %v4099 = vsub.s32 %v4096, %v4098
    %v4100 = vrot.slane %v4093, %v4099
    %v4102 = vadd.f32 %v4016, %v4100
    %v4103 = vxor.u32 %v4102, 2147483648
    %v4104 = vmul.f32 %v4103, 1.442695
    %v4105 = vpow.pop %v4104
    %v4106 = vadd.f32 %v4105, 1.0
    %v4107 = vrcp.pop %v4106
    %v4108 = vmul.f32 1.0, %v4107
    %4110 = vrot.lane.b32.xlu0 %v4102, 64
    %v4111 = vpop.permute.xlu0 %4110
    %v4112 = vrot.slane %v4111, 2
    %v4114 = vtanh.pop %v4112
    %v4115 = vmul.f32 %v4108, %v4006
    %v4116 = vmul.f32 %v4108, %v4114
    %4118 = vrot.lane.b32.xlu0 %v4116, 64
    %v4119 = vpop.permute.xlu0 %4118
    %v4121 = vadd.f32 %v4115, %v4119
    %v4122 = vtanh.pop %v4121
    %v4124 = vrot.slane %v4108, 2
    %4127 = vrot.lane.b32.xlu0 %v4122, 64
    %v4128 = vpop.permute.xlu0 %4127
    %v4130 = vmul.f32 %v4124, %v4128
    %v4131 = vld [vmem:[%s3269] sm:$0xf]
    %v4133 = vsel %vm165, %v4130, 0
    %4135 = vmatprep.subr.mxu0 %v149
    %4136 = vmatpush1.msra.mxu0 %v148
    %4137 = vmatprep.subr.mxu0 %v151
    %4138 = vmatpush1.msra.mxu0 %v150
    %4139 = vmatprep.subr.mxu0 %v153
    %4140 = vmatpush1.msra.mxu0 %v152
    %4141 = vmatprep.subr.mxu0 %v155
    %4142 = vmatpush1.msra.mxu0 %v154
    %4143 = vmatprep.subr.mxu0 %v157
    %4144 = vmatpush1.msra.mxu0 %v156
    %4145 = vmatprep.subr.mxu0 %v159
    %4146 = vmatpush1.msra.mxu0 %v158
    %4147 = vmatprep.subr.mxu0 %v161
    %4148 = vmatpush1.msra.mxu0 %v160
    %4149 = vmatprep.subr.mxu0 %v163
    %4150 = vmatpush1.msra.mxu0 %v162
    %4151 = vmatprep.subr.mxu0 0.0
    %4152 = vmatpush1.msra.mxu0 0.0
    %4153 = vmatprep.subr.mxu0 0.0
    %4154 = vmatpush1.msra.mxu0 0.0
    %4155 = vmatprep.subr.mxu0 0.0
    %4156 = vmatpush1.msra.mxu0 0.0
    %4157 = vmatprep.subr.mxu0 0.0
    %4158 = vmatpush1.msra.mxu0 0.0
    %4159 = vmatprep.subr.mxu0 0.0
    %4160 = vmatpush1.msra.mxu0 0.0
    %4161 = vmatprep.subr.mxu0 0.0
    %4162 = vmatpush1.msra.mxu0 0.0
    %4163 = vmatprep.subr.mxu0 0.0
    %4164 = vmatpush1.msra.mxu0 0.0
    %4165 = vmatprep.subr.mxu0 0.0
    %4166 = vmatpush1.msra.mxu0 0.0
    %4167 = vmatprep.subr.mxu0 0.0
    %4168 = vmatpush1.msra.mxu0 0.0
    %4169 = vmatprep.subr.mxu0 0.0
    %4170 = vmatpush1.msra.mxu0 0.0
    %4171 = vmatprep.subr.mxu0 0.0
    %4172 = vmatpush1.msra.mxu0 0.0
    %4173 = vmatprep.subr.mxu0 0.0
    %4174 = vmatpush1.msra.mxu0 0.0
    %4175 = vmatprep.subr.mxu0 0.0
    %4176 = vmatpush1.msra.mxu0 0.0
    %4177 = vmatprep.subr.mxu0 0.0
    %4178 = vmatpush1.msra.mxu0 0.0
    %4179 = vmatprep.subr.mxu0 0.0
    %4180 = vmatpush1.msra.mxu0 0.0
    %4181 = vmatprep.subr.mxu0 0.0
    %4182 = vmatpush1.msra.mxu0 0.0
    %4183 = vmatprep.subr.mxu0 0.0
    %4184 = vmatpush1.msra.mxu0 0.0
    %4185 = vmatprep.subr.mxu0 0.0
    %4186 = vmatpush1.msra.mxu0 0.0
    %4187 = vmatprep.subr.mxu0 0.0
    %4188 = vmatpush1.msra.mxu0 0.0
    %4189 = vmatprep.subr.mxu0 0.0
    %4190 = vmatpush1.msra.mxu0 0.0
    %4191 = vmatprep.subr.mxu0 0.0
    %4192 = vmatpush1.msra.mxu0 0.0
    %4193 = vmatprep.subr.mxu0 0.0
    %4194 = vmatpush1.msra.mxu0 0.0
    %4195 = vmatprep.subr.mxu0 0.0
    %4196 = vmatpush1.msra.mxu0 0.0
    %4197 = vmatprep.subr.mxu0 0.0
    %4198 = vmatpush1.msra.mxu0 0.0
    %4199 = vmatprep.mubr.f32.mxu0 0.0
    %4200 = vmatmul.mubr.f32.gmra.mrb[0].mxu0 %v4133
    %v4201 = vpop.f32.mrb[0].mxu0
    %v4202 = vadd.f32 0.0, %v4201
    %v4203 = vpop.f32.mrb[0].mxu0
    %v4204 = vadd.f32 0.0, %v4203
    %4205 = vdwg.mxu0
    %v4208 = vcombine.low %v4202, %v4204
    %v4210 = vunpack.c.l.s4 1983009808
    %v4211 = vunpack.c.0.s8 %v4210
    %v4212 = vlaneseq
    %v4213 = vshrl.u32 %v4212, 7
    %v4214 = vsub.s32 %v4211, %v4213
    %v4215 = vrot.slane %v4208, %v4214
    %v4217 = vadd.f32 %v4131, %v4215
    %v4218 = vxor.u32 %v4217, 2147483648
    %v4219 = vmul.f32 %v4218, 1.442695
    %v4220 = vpow.pop %v4219
    %v4221 = vadd.f32 %v4220, 1.0
    %v4222 = vrcp.pop %v4221
    %v4223 = vmul.f32 1.0, %v4222
    %4225 = vrot.lane.b32.xlu0 %v4217, 64
    %v4226 = vpop.permute.xlu0 %4225
    %v4227 = vrot.slane %v4226, 2
    %v4229 = vtanh.pop %v4227
    %v4230 = vmul.f32 %v4223, %v4121
    %v4231 = vmul.f32 %v4223, %v4229
    %4233 = vrot.lane.b32.xlu0 %v4231, 64
    %v4234 = vpop.permute.xlu0 %4233
    %v4236 = vadd.f32 %v4230, %v4234
    %v4237 = vtanh.pop %v4236
    %v4239 = vrot.slane %v4223, 2
    %4242 = vrot.lane.b32.xlu0 %v4237, 64
    %v4243 = vpop.permute.xlu0 %4242
    %v4245 = vmul.f32 %v4239, %v4243
    %v4246 = vld [vmem:[%s3442] sm:$0xf]
    %v4248 = vsel %vm165, %v4245, 0
    %4250 = vmatprep.subr.mxu0 %v149
    %4251 = vmatpush1.msra.mxu0 %v148
    %4252 = vmatprep.subr.mxu0 %v151
    %4253 = vmatpush1.msra.mxu0 %v150
    %4254 = vmatprep.subr.mxu0 %v153
    %4255 = vmatpush1.msra.mxu0 %v152
    %4256 = vmatprep.subr.mxu0 %v155
    %4257 = vmatpush1.msra.mxu0 %v154
    %4258 = vmatprep.subr.mxu0 %v157
    %4259 = vmatpush1.msra.mxu0 %v156
    %4260 = vmatprep.subr.mxu0 %v159
    %4261 = vmatpush1.msra.mxu0 %v158
    %4262 = vmatprep.subr.mxu0 %v161
    %4263 = vmatpush1.msra.mxu0 %v160
    %4264 = vmatprep.subr.mxu0 %v163
    %4265 = vmatpush1.msra.mxu0 %v162
    %4266 = vmatprep.subr.mxu0 0.0
    %4267 = vmatpush1.msra.mxu0 0.0
    %4268 = vmatprep.subr.mxu0 0.0
    %4269 = vmatpush1.msra.mxu0 0.0
    %4270 = vmatprep.subr.mxu0 0.0
    %4271 = vmatpush1.msra.mxu0 0.0
    %4272 = vmatprep.subr.mxu0 0.0
    %4273 = vmatpush1.msra.mxu0 0.0
    %4274 = vmatprep.subr.mxu0 0.0
    %4275 = vmatpush1.msra.mxu0 0.0
    %4276 = vmatprep.subr.mxu0 0.0
    %4277 = vmatpush1.msra.mxu0 0.0
    %4278 = vmatprep.subr.mxu0 0.0
    %4279 = vmatpush1.msra.mxu0 0.0
    %4280 = vmatprep.subr.mxu0 0.0
    %4281 = vmatpush1.msra.mxu0 0.0
    %4282 = vmatprep.subr.mxu0 0.0
    %4283 = vmatpush1.msra.mxu0 0.0
    %4284 = vmatprep.subr.mxu0 0.0
    %4285 = vmatpush1.msra.mxu0 0.0
    %4286 = vmatprep.subr.mxu0 0.0
    %4287 = vmatpush1.msra.mxu0 0.0
    %4288 = vmatprep.subr.mxu0 0.0
    %4289 = vmatpush1.msra.mxu0 0.0
    %4290 = vmatprep.subr.mxu0 0.0
    %4291 = vmatpush1.msra.mxu0 0.0
    %4292 = vmatprep.subr.mxu0 0.0
    %4293 = vmatpush1.msra.mxu0 0.0
    %4294 = vmatprep.subr.mxu0 0.0
    %4295 = vmatpush1.msra.mxu0 0.0
    %4296 = vmatprep.subr.mxu0 0.0
    %4297 = vmatpush1.msra.mxu0 0.0
    %4298 = vmatprep.subr.mxu0 0.0
    %4299 = vmatpush1.msra.mxu0 0.0
    %4300 = vmatprep.subr.mxu0 0.0
    %4301 = vmatpush1.msra.mxu0 0.0
    %4302 = vmatprep.subr.mxu0 0.0
    %4303 = vmatpush1.msra.mxu0 0.0
    %4304 = vmatprep.subr.mxu0 0.0
    %4305 = vmatpush1.msra.mxu0 0.0
    %4306 = vmatprep.subr.mxu0 0.0
    %4307 = vmatpush1.msra.mxu0 0.0
    %4308 = vmatprep.subr.mxu0 0.0
    %4309 = vmatpush1.msra.mxu0 0.0
    %4310 = vmatprep.subr.mxu0 0.0
    %4311 = vmatpush1.msra.mxu0 0.0
    %4312 = vmatprep.subr.mxu0 0.0
    %4313 = vmatpush1.msra.mxu0 0.0
    %4314 = vmatprep.mubr.f32.mxu0 0.0
    %4315 = vmatmul.mubr.f32.gmra.mrb[0].mxu0 %v4248
    %v4316 = vpop.f32.mrb[0].mxu0
    %v4317 = vadd.f32 0.0, %v4316
    %v4318 = vpop.f32.mrb[0].mxu0
    %v4319 = vadd.f32 0.0, %v4318
    %4320 = vdwg.mxu0
    %v4323 = vcombine.low %v4317, %v4319
    %v4325 = vunpack.c.l.s4 1983009808
    %v4326 = vunpack.c.0.s8 %v4325
    %v4327 = vlaneseq
    %v4328 = vshrl.u32 %v4327, 7
    %v4329 = vsub.s32 %v4326, %v4328
    %v4330 = vrot.slane %v4323, %v4329
    %v4332 = vadd.f32 %v4246, %v4330
    %v4333 = vxor.u32 %v4332, 2147483648
    %v4334 = vmul.f32 %v4333, 1.442695
    %v4335 = vpow.pop %v4334
    %v4336 = vadd.f32 %v4335, 1.0
    %v4337 = vrcp.pop %v4336
    %v4338 = vmul.f32 1.0, %v4337
    %4340 = vrot.lane.b32.xlu0 %v4332, 64
    %v4341 = vpop.permute.xlu0 %4340
    %v4342 = vrot.slane %v4341, 2
    %v4344 = vtanh.pop %v4342
    %v4345 = vmul.f32 %v4338, %v4236
    %v4346 = vmul.f32 %v4338, %v4344
    %4348 = vrot.lane.b32.xlu0 %v4346, 64
    %v4349 = vpop.permute.xlu0 %4348
    %v4351 = vadd.f32 %v4345, %v4349
    %v4352 = vtanh.pop %v4351
    %v4354 = vrot.slane %v4338, 2
    %4357 = vrot.lane.b32.xlu0 %v4352, 64
    %v4358 = vpop.permute.xlu0 %4357
    %v4360 = vmul.f32 %v4354, %v4358
    %v4361 = vld [vmem:[%s3442 + $0x4] sm:$0xf]
    %v4362 = vxor.u32 %v4361, 2147483648
    %v4363 = vmul.f32 %v4362, 1.442695
    %v4364 = vpow.pop %v4363
    %v4365 = vadd.f32 %v4364, 1.0
    %v4366 = vrcp.pop %v4365
    %v4367 = vmul.f32 1.0, %v4366
    %4369 = vrot.lane.b32.xlu0 %v4361, 64
    %v4370 = vpop.permute.xlu0 %4369
    %v4371 = vrot.slane %v4370, 2
    %v4373 = vtanh.pop %v4371
    %v4374 = vmul.f32 %v4367, 0.0
    %v4375 = vmul.f32 %v4367, %v4373
    %4377 = vrot.lane.b32.xlu0 %v4375, 64
    %v4378 = vpop.permute.xlu0 %4377
    %v4380 = vadd.f32 %v4374, %v4378
    %v4381 = vtanh.pop %v4380
    %v4383 = vrot.slane %v4367, 2
    %4386 = vrot.lane.b32.xlu0 %v4381, 64
    %v4387 = vpop.permute.xlu0 %4386
    %v4389 = vmul.f32 %v4383, %v4387
    %v4392 = vunpack.c.l.s4 1983009808
    %v4393 = vunpack.c.0.s8 %v4392
    %v4394 = vlaneseq
    %v4395 = vshrl.u32 %v4394, 7
    %v4396 = vsub.s32 %v4393, %v4395
    %v4397 = vrot.slane %v4389, %v4396
    %4398 = vrot.lane.b32.xlu0 %v4397, 64
    %v4399 = vpop.permute.xlu0 %4398
    %v4401 = vsel %vm165, %v4360, %v4399
    %v4402 = vld [vmem:[%s6] sm:$0xff]
    %v4403 = vld [vmem:[%s6 + $0x8] sm:$0xff]
    %v4404 = vld [vmem:[%s6 + $0x10] sm:$0xff]
    %v4405 = vld [vmem:[%s6 + $0x18] sm:$0xff]
    %v4406 = vld [vmem:[%s6 + $0x20] sm:$0xff]
    %v4407 = vld [vmem:[%s6 + $0x28] sm:$0xff]
    %v4408 = vld [vmem:[%s6 + $0x30] sm:$0xff]
    %v4409 = vld [vmem:[%s6 + $0x38] sm:$0xff]
    %v4410 = vld [vmem:[%s6 + $0x40] sm:$0xff]
    %v4411 = vld [vmem:[%s6 + $0x48] sm:$0xff]
    %v4412 = vld [vmem:[%s6 + $0x50] sm:$0xff]
    %v4413 = vld [vmem:[%s6 + $0x58] sm:$0xff]
    %v4414 = vld [vmem:[%s6 + $0x60] sm:$0xff]
    %v4415 = vld [vmem:[%s6 + $0x68] sm:$0xff]
    %v4416 = vld [vmem:[%s6 + $0x70] sm:$0xff]
    %v4417 = vld [vmem:[%s6 + $0x78] sm:$0xff]
    %v4418 = vld [vmem:[%s7] sm:$0x1]
    %v4420 = vlaneseq
    %v4421 = vshrl.u32 %v4420, 7
    %v4422 = vsub.s32 0, %v4421
    %v4423 = vrot.slane %v4418, %v4422
    %4425 = vmatprep.subr.mxu0 0.0
    %4426 = vmatpush1.msra.mxu0 %v4402
    %4427 = vmatprep.subr.mxu0 0.0
    %4428 = vmatpush1.msra.mxu0 %v4403
    %4429 = vmatprep.subr.mxu0 0.0
    %4430 = vmatpush1.msra.mxu0 %v4404
    %4431 = vmatprep.subr.mxu0 0.0
    %4432 = vmatpush1.msra.mxu0 %v4405
    %4433 = vmatprep.subr.mxu0 0.0
    %4434 = vmatpush1.msra.mxu0 %v4406
    %4435 = vmatprep.subr.mxu0 0.0
    %4436 = vmatpush1.msra.mxu0 %v4407
    %4437 = vmatprep.subr.mxu0 0.0
    %4438 = vmatpush1.msra.mxu0 %v4408
    %4439 = vmatprep.subr.mxu0 0.0
    %4440 = vmatpush1.msra.mxu0 %v4409
    %4441 = vmatprep.subr.mxu0 0.0
    %4442 = vmatpush1.msra.mxu0 %v4410
    %4443 = vmatprep.subr.mxu0 0.0
    %4444 = vmatpush1.msra.mxu0 %v4411
    %4445 = vmatprep.subr.mxu0 0.0
    %4446 = vmatpush1.msra.mxu0 %v4412
    %4447 = vmatprep.subr.mxu0 0.0
    %4448 = vmatpush1.msra.mxu0 %v4413
    %4449 = vmatprep.subr.mxu0 0.0
    %4450 = vmatpush1.msra.mxu0 %v4414
    %4451 = vmatprep.subr.mxu0 0.0
    %4452 = vmatpush1.msra.mxu0 %v4415
    %4453 = vmatprep.subr.mxu0 0.0
    %4454 = vmatpush1.msra.mxu0 %v4416
    %4455 = vmatprep.subr.mxu0 0.0
    %4456 = vmatpush1.msra.mxu0 %v4417
    %4457 = vmatprep.subr.mxu0 0.0
    %4458 = vmatpush1.msra.mxu0 0.0
    %4459 = vmatprep.subr.mxu0 0.0
    %4460 = vmatpush1.msra.mxu0 0.0
    %4461 = vmatprep.subr.mxu0 0.0
    %4462 = vmatpush1.msra.mxu0 0.0
    %4463 = vmatprep.subr.mxu0 0.0
    %4464 = vmatpush1.msra.mxu0 0.0
    %4465 = vmatprep.subr.mxu0 0.0
    %4466 = vmatpush1.msra.mxu0 0.0
    %4467 = vmatprep.subr.mxu0 0.0
    %4468 = vmatpush1.msra.mxu0 0.0
    %4469 = vmatprep.subr.mxu0 0.0
    %4470 = vmatpush1.msra.mxu0 0.0
    %4471 = vmatprep.subr.mxu0 0.0
    %4472 = vmatpush1.msra.mxu0 0.0
    %4473 = vmatprep.subr.mxu0 0.0
    %4474 = vmatpush1.msra.mxu0 0.0
    %4475 = vmatprep.subr.mxu0 0.0
    %4476 = vmatpush1.msra.mxu0 0.0
    %4477 = vmatprep.subr.mxu0 0.0
    %4478 = vmatpush1.msra.mxu0 0.0
    %4479 = vmatprep.subr.mxu0 0.0
    %4480 = vmatpush1.msra.mxu0 0.0
    %4481 = vmatprep.subr.mxu0 0.0
    %4482 = vmatpush1.msra.mxu0 0.0
    %4483 = vmatprep.subr.mxu0 0.0
    %4484 = vmatpush1.msra.mxu0 0.0
    %4485 = vmatprep.subr.mxu0 0.0
    %4486 = vmatpush1.msra.mxu0 0.0
    %4487 = vmatprep.subr.mxu0 0.0
    %4488 = vmatpush1.msra.mxu0 0.0
    %4489 = vmatprep.mubr.f32.mxu0 0.0
    %4490 = vmatmul.mubr.f32.gmra.mrb[0].mxu0 %v4401
    %v4491 = vpop.f32.mrb[0].mxu0
    %v4492 = vadd.f32 %v4423, %v4491
    %v4493 = vpop.f32.mrb[0].mxu0
    %4494 = vdwg.mxu0
    %v4495 = vmax.f32 %v4492, 0.0
    %v4496 = vld [vmem:[%s8] sm:$0xff]
    %v4497 = vld [vmem:[%s8 + $0x8] sm:$0xff]
    %v4498 = vld [vmem:[%s8 + $0x10] sm:$0xff]
    %v4499 = vld [vmem:[%s8 + $0x18] sm:$0xff]
    %v4500 = vld [vmem:[#allocation5] sm:$0x1]
    %v4502 = vlaneseq
    %v4503 = vshrl.u32 %v4502, 7
    %v4504 = vsub.s32 0, %v4503
    %v4505 = vrot.slane %v4500, %v4504
    %vm4507 = vcmask 261120
    %v4509 = vsel %vm4507, %v4495, 0
    %4511 = vmatprep.subr.mxu0 0.0
    %4512 = vmatpush1.msra.mxu0 %v4496
    %4513 = vmatprep.subr.mxu0 0.0
    %4514 = vmatpush1.msra.mxu0 %v4497
    %4515 = vmatprep.subr.mxu0 0.0
    %4516 = vmatpush1.msra.mxu0 %v4498
    %4517 = vmatprep.subr.mxu0 0.0
    %4518 = vmatpush1.msra.mxu0 %v4499
    %4519 = vmatprep.subr.mxu0 0.0
    %4520 = vmatpush1.msra.mxu0 0.0
    %4521 = vmatprep.subr.mxu0 0.0
    %4522 = vmatpush1.msra.mxu0 0.0
    %4523 = vmatprep.subr.mxu0 0.0
    %4524 = vmatpush1.msra.mxu0 0.0
    %4525 = vmatprep.subr.mxu0 0.0
    %4526 = vmatpush1.msra.mxu0 0.0
    %4527 = vmatprep.subr.mxu0 0.0
    %4528 = vmatpush1.msra.mxu0 0.0
    %4529 = vmatprep.subr.mxu0 0.0
    %4530 = vmatpush1.msra.mxu0 0.0
    %4531 = vmatprep.subr.mxu0 0.0
    %4532 = vmatpush1.msra.mxu0 0.0
    %4533 = vmatprep.subr.mxu0 0.0
    %4534 = vmatpush1.msra.mxu0 0.0
    %4535 = vmatprep.subr.mxu0 0.0
    %4536 = vmatpush1.msra.mxu0 0.0
    %4537 = vmatprep.subr.mxu0 0.0
    %4538 = vmatpush1.msra.mxu0 0.0
    %4539 = vmatprep.subr.mxu0 0.0
    %4540 = vmatpush1.msra.mxu0 0.0
    %4541 = vmatprep.subr.mxu0 0.0
    %4542 = vmatpush1.msra.mxu0 0.0
    %4543 = vmatprep.subr.mxu0 0.0
    %4544 = vmatpush1.msra.mxu0 0.0
    %4545 = vmatprep.subr.mxu0 0.0
    %4546 = vmatpush1.msra.mxu0 0.0
    %4547 = vmatprep.subr.mxu0 0.0
    %4548 = vmatpush1.msra.mxu0 0.0
    %4549 = vmatprep.subr.mxu0 0.0
    %4550 = vmatpush1.msra.mxu0 0.0
    %4551 = vmatprep.subr.mxu0 0.0
    %4552 = vmatpush1.msra.mxu0 0.0
    %4553 = vmatprep.subr.mxu0 0.0
    %4554 = vmatpush1.msra.mxu0 0.0
    %4555 = vmatprep.subr.mxu0 0.0
    %4556 = vmatpush1.msra.mxu0 0.0
    %4557 = vmatprep.subr.mxu0 0.0
    %4558 = vmatpush1.msra.mxu0 0.0
    %4559 = vmatprep.subr.mxu0 0.0
    %4560 = vmatpush1.msra.mxu0 0.0
    %4561 = vmatprep.subr.mxu0 0.0
    %4562 = vmatpush1.msra.mxu0 0.0
    %4563 = vmatprep.subr.mxu0 0.0
    %4564 = vmatpush1.msra.mxu0 0.0
    %4565 = vmatprep.subr.mxu0 0.0
    %4566 = vmatpush1.msra.mxu0 0.0
    %4567 = vmatprep.subr.mxu0 0.0
    %4568 = vmatpush1.msra.mxu0 0.0
    %4569 = vmatprep.subr.mxu0 0.0
    %4570 = vmatpush1.msra.mxu0 0.0
    %4571 = vmatprep.subr.mxu0 0.0
    %4572 = vmatpush1.msra.mxu0 0.0
    %4573 = vmatprep.subr.mxu0 0.0
    %4574 = vmatpush1.msra.mxu0 0.0
    %4575 = vmatprep.mubr.f32.mxu0 0.0
    %4576 = vmatmul.mubr.f32.gmra.mrb[0].mxu0 %v4509
    %v4577 = vpop.f32.mrb[0].mxu0
    %v4578 = vadd.f32 %v4505, %v4577
    %v4579 = vpop.f32.mrb[0].mxu0
    %4580 = vdwg.mxu0
    %v4581 = vxor.u32 %v4578, 2147483648
    %v4582 = vmul.f32 %v4581, 1.442695
    %v4583 = vpow.pop %v4582
    %v4584 = vadd.f32 %v4583, 1.0
    %v4585 = vrcp.pop %v4584
    %v4586 = vmul.f32 1.0, %v4585
    %vm4587 = vcmask 1024
    %4588 = vst.msk [vmem:[%s10] sm:$0x3] %vm4587, %v4586
    // Predicated region
    $region46: #{lstm_classifier_forward.1} parent=1 // pred_check
      _
    $region47: #{lstm_classifier_forward.1} parent=1 // pred_check_branch
      %4590 = sbr.rel (0) target = $region49
    $region48: #{lstm_classifier_forward.1} parent=1 // pred_region
      _
    $region49: #{lstm_classifier_forward.1} parent=1 // pred_fallthru
      _
    // Predicated region
    $region50: #{lstm_classifier_forward.1} parent=1 // pred_check
      _
    $region51: #{lstm_classifier_forward.1} parent=1 // pred_check_branch
      %4592 = sbr.rel (0) target = $region53
    $region52: #{lstm_classifier_forward.1} parent=1 // pred_region
      _
    $region53: #{lstm_classifier_forward.1} parent=1 // pred_fallthru
      _
    %4593 = vsyncpa [#allocation7], 1

</llo_original>
